<compile_context>
chip_gen: v6e
topology: v6e:2x2x1
jax: 0.10.0
libtpu: 0.0.40
codegen_flags: <defaults>
</compile_context>

<pallas_src>
import jax
import jax.numpy as jnp
from jax.experimental import pallas as pl
from jax.experimental.pallas import tpu as pltpu

C_IN = 4            # input channels (cfgs.dataset.dim_x channels)
C_ENC = 128         # encoder output channels (matches pre_quant conv in_ch)
DIM_DICT = 64       # cfgs.quantization.dim_dict (pre_quant conv out_ch)
SIZE_DICT = 128     # cfgs.quantization.size_dict
MAX_TILE = 2048     # rows (pixels) per grid step, upper bound


def _round_up(a, b):
    return (a + b - 1) // b * b


def _sqvae_kernel(half_prec_ref, nvalid_ref,               # SMEM scalars
                  x_ref, xt_ref,                           # pixel rows / transposed pixels
                  wenc_ref, benc_ref,                      # encoder stand-in
                  wpre_ref, bpre_ref,                      # pre_quantization_conv_m
                  wg_ref, bg_ref,                          # fused logit weights / bias
                  wdec_ref, bdec_ref,                      # fused decoder stand-in (transposed)
                  xr_ref, idx_ref, loss_ref):
    step = pl.program_id(0)
    tile = x_ref.shape[0]
    half_prec = half_prec_ref[0, 0]
    n_valid = nvalid_ref[0, 0]

    x = x_ref[...]                                                     # (T, Cin) f32

    # TODO(synk): real EncoderVq_* net is external; 1x1-conv + ReLU stand-in.
    h = jnp.dot(x.astype(jnp.bfloat16), wenc_ref[...],
                preferred_element_type=jnp.float32) + benc_ref[...]
    h = jnp.maximum(h, 0.0)                                            # (T, 128) f32
    hb = h.astype(jnp.bfloat16)

    # pre_quantization_conv_m (Conv2d(128,64,k=1) == per-pixel matmul); only
    # ||z||^2 is needed downstream (cross term / zq come from fused weights).
    z = jnp.dot(hb, wpre_ref[...],
                preferred_element_type=jnp.float32) + bpre_ref[...]    # (T, D) f32
    z2h = half_prec * jnp.sum(z * z, axis=-1, keepdims=True)           # (T, 1)

    # g_k = 2*half_prec*<z, e_k> - half_prec*||e_k||^2 ; logit_k = g_k - z2h.
    # The -z2h shift is row-constant -> softmax / argmax run directly on g.
    g = jnp.dot(hb, wg_ref[...],
                preferred_element_type=jnp.float32) + bg_ref[...]      # (T, K) f32

    m = jnp.max(g, axis=-1, keepdims=True)                             # (T, 1)
    sh = g - m
    ex = jnp.exp(sh)
    s = jnp.sum(ex, axis=-1, keepdims=True)
    # fused softmax-KL: sum_k p_k*log(p_k) per row, no prob/logprob temporaries
    row_kld = jnp.sum(ex * sh, axis=-1, keepdims=True) / s - jnp.log(s)

    # deterministic (hard) quantization: first index attaining the max logit
    K = g.shape[-1]
    lane = jax.lax.broadcasted_iota(jnp.int32, g.shape, 1)
    idx = jnp.min(jnp.where(g == m, lane, K), axis=-1, keepdims=True)  # (T, 1)
    onehot = (lane == idx).astype(jnp.bfloat16)                        # (T, K)

    # kld_continuous row term: half_prec*||z - zq||^2 == min_k dist_k == z2h - m
    row_kld_cont = z2h - m                                             # (T, 1)

    # ---- transposed decoder tail (lane-dense along pixels) ----
    # TODO(synk): real DecoderVq_* net is external; 1x1-conv + sigmoid stand-in.
    # wdec_ref == (codebook @ w_dec)^T, so zq @ w_dec == wdec_ref @ onehot^T.
    xr_t = jnp.einsum('ck,tk->ct', wdec_ref[...], onehot,
                      preferred_element_type=jnp.float32) + bdec_ref[...]   # (C, T)
    xr_t = jax.nn.sigmoid(xr_t)

    x_t = xt_ref[...]                                                  # (C, T) f32
    se = (xr_t - x_t) ** 2

    # lane-dense code indices: one-hot matmul against [0..K-1] (exact in bf16)
    kvals = jax.lax.broadcasted_iota(jnp.int32, (1, K), 1).astype(jnp.bfloat16)
    idx_lane = jnp.einsum('ok,tk->ot', kvals, onehot,
                          preferred_element_type=jnp.float32)          # (1, T)

    # pad-row masks (only relevant in the last tile)
    row0 = step * tile
    valid_r = ((row0 + jax.lax.broadcasted_iota(jnp.int32, (tile, 1), 0))
               < n_valid).astype(jnp.float32)                          # (T, 1)
    valid_c = ((row0 + jax.lax.broadcasted_iota(jnp.int32, (1, tile), 1))
               < n_valid).astype(jnp.float32)                          # (1, T)

    kld_disc = jnp.sum(row_kld * valid_r)
    kld_cont = jnp.sum(row_kld_cont * valid_r)
    mse = jnp.sum(se * valid_c)
    nval = jnp.sum(valid_r)

    xr_ref[...] = xr_t                                                 # (C, T) lane-dense
    idx_ref[...] = idx_lane.astype(jnp.int32).reshape(idx_ref.shape)   # (1, 1, T)

    # per-tile partial sums, lane-dense (1, 8, 128) block: lanes 0..3 carry
    # [kld_disc, kld_cont, mse, n_valid_rows], replicated across sublanes.
    li = jax.lax.broadcasted_iota(jnp.int32, loss_ref.shape, 2)
    loss_ref[...] = (jnp.where(li == 0, kld_disc, 0.0)
                     + jnp.where(li == 1, kld_cont, 0.0)
                     + jnp.where(li == 2, mse, 0.0)
                     + jnp.where(li == 3, nval, 0.0))


def init_params(key):
    """Deterministic init mirroring weights_init (conv ~ N(0, 0.02), codebook ~ randn)."""
    ks = jax.random.split(key, 4)
    return {
        "w_enc": 0.02 * jax.random.normal(ks[0], (C_IN, C_ENC), jnp.float32),
        "b_enc": jnp.zeros((1, C_ENC), jnp.float32),
        "w_pre": 0.02 * jax.random.normal(ks[1], (C_ENC, DIM_DICT), jnp.float32),
        "b_pre": jnp.zeros((1, DIM_DICT), jnp.float32),
        "codebook": jax.random.normal(ks[2], (SIZE_DICT, DIM_DICT), jnp.float32),
        "w_dec": 0.02 * jax.random.normal(ks[3], (DIM_DICT, C_IN), jnp.float32),
        "b_dec": jnp.zeros((1, C_IN), jnp.float32),
        "log_param_q_scalar": jnp.float32(0.0),   # cfgs.model.log_param_q_init
    }


@jax.jit
def sqvae_forward(x, params):
    B, C, H, W = x.shape
    N = B * H * W
    x_rows = jnp.transpose(x, (0, 2, 3, 1)).reshape(N, C)

    K, D = params["codebook"].shape

    # self.param_q = exp(log_var_q=0) + exp(log_param_q_scalar); precision = 1/clamp(.)
    param_q = jnp.exp(jnp.float32(0.0)) + jnp.exp(params["log_param_q_scalar"])
    precision_q = 1.0 / jnp.maximum(param_q, 1e-10)
    half_prec = (0.5 * precision_q).astype(jnp.float32)
    half_prec_smem = half_prec.reshape(1, 1)
    n_valid = jnp.full((1, 1), N, jnp.int32)

    # Tile choice: as large as possible (<=2048) but >=2 grid steps when N
    # allows (v7x megacore); multiple of 128 for lane-dense packed outputs.
    tile = max(128, min(MAX_TILE, _round_up(pl.cdiv(N, 2), 128)))
    n_tiles = pl.cdiv(N, tile)
    n_pad = n_tiles * tile
    if n_pad != N:
        x_rows = jnp.pad(x_rows, ((0, n_pad - N), (0, 0)))
    x_cols = x_rows.T                                                  # (C, n_pad)

    # ---- fused weight prep (all f32 in the wrapper, bf16 copies for the MXU) ----
    cb = params["codebook"].astype(jnp.float32)                        # (K, D)
    e2h = half_prec * jnp.sum(cb * cb, axis=-1)[None, :]               # (1, K)
    cb2h = (2.0 * half_prec) * cb                                      # (K, D)

    w_pre_f = params["w_pre"].astype(jnp.float32)
    b_pre_f = params["b_pre"].astype(jnp.float32)
    w_g = (w_pre_f @ cb2h.T).astype(jnp.bfloat16)                      # (C_ENC, K)
    b_g = (b_pre_f @ cb2h.T) - e2h                                     # (1, K) f32

    w_dec2 = (cb @ params["w_dec"].astype(jnp.float32)).T.astype(jnp.bfloat16)  # (C, K)
    b_dec_t = params["b_dec"].T                                        # (C, 1) f32

    w_enc_bf = params["w_enc"].astype(jnp.bfloat16)
    w_pre_bf = params["w_pre"].astype(jnp.bfloat16)

    grid_spec = pl.GridSpec(
        grid=(n_tiles,),
        in_specs=[
            pl.BlockSpec(memory_space=pltpu.MemorySpace.SMEM),          # half_prec
            pl.BlockSpec(memory_space=pltpu.MemorySpace.SMEM),          # n_valid
            pl.BlockSpec((tile, C), lambda i: (i, 0)),                  # x rows
            pl.BlockSpec((C, tile), lambda i: (0, i)),                  # x cols (transposed)
            pl.BlockSpec((C, C_ENC), lambda i: (0, 0)),                 # w_enc (bf16)
            pl.BlockSpec((1, C_ENC), lambda i: (0, 0)),                 # b_enc
            pl.BlockSpec((C_ENC, D), lambda i: (0, 0)),                 # w_pre (bf16)
            pl.BlockSpec((1, D), lambda i: (0, 0)),                     # b_pre
            pl.BlockSpec((C_ENC, K), lambda i: (0, 0)),                 # w_g   (fused logits)
            pl.BlockSpec((1, K), lambda i: (0, 0)),                     # b_g
            pl.BlockSpec((C, K), lambda i: (0, 0)),                     # w_dec2 (fused decoder)
            pl.BlockSpec((C, 1), lambda i: (0, 0)),                     # b_dec (transposed)
        ],
        out_specs=[
            pl.BlockSpec((C, tile), lambda i: (0, i)),                  # x_reconst (transposed)
            pl.BlockSpec((1, 1, tile), lambda i: (i, 0, 0)),            # e_indices (lane-dense)
            pl.BlockSpec((1, 8, 128), lambda i: (i, 0, 0)),             # per-tile loss partials
        ],
    )

    xr_cols, idx_packed, loss_partials = pl.pallas_call(
        _sqvae_kernel,
        out_shape=(
            jax.ShapeDtypeStruct((C, n_pad), jnp.float32),
            jax.ShapeDtypeStruct((n_tiles, 1, tile), jnp.int32),
            jax.ShapeDtypeStruct((n_tiles, 8, 128), jnp.float32),
        ),
        grid_spec=grid_spec,
        compiler_params=pltpu.CompilerParams(
            dimension_semantics=("parallel",),
            vmem_limit_bytes=32 * 1024 * 1024),
    )(half_prec_smem, n_valid, x_rows, x_cols,
      w_enc_bf, params["b_enc"],
      w_pre_bf, params["b_pre"],
      w_g, b_g, w_dec2, b_dec_t)

    # un-pack lane-dense outputs back to the reference layouts
    x_reconst = xr_cols[:, :N].reshape(C, B, H, W).transpose(1, 0, 2, 3)
    e_idx_flat = idx_packed.reshape(n_pad)[:N]
    e_indices = e_idx_flat[:, None]

    # one-hot min_encodings rebuilt outside the kernel (kernel only emits indices)
    min_encodings = jax.nn.one_hot(e_idx_flat, K, dtype=jnp.float32)

    loss_sums = jnp.sum(loss_partials[:, 0, :4], axis=0)               # (4,)
    kld_discrete = loss_sums[0] / B
    kld_continuous = loss_sums[1] / B
    loss_latent = kld_discrete + kld_continuous
    mse = loss_sums[2] / (loss_sums[3] * C)        # F.mse_loss-style mean over elements
    # TODO(synk): SQVAE._calc_loss is abstract (NotImplementedError) in the reference;
    # assemble a standard Gaussian-SQVAE style loss dict from the kernel partial sums.
    loss = {
        "all": mse + loss_latent,
        "mse": mse,
        "latent": loss_latent,
        "kld_discrete": kld_discrete,
        "kld_continuous": kld_continuous,
    }
    return x_reconst, min_encodings, e_indices, loss


if __name__ == "__main__":
    key = jax.random.PRNGKey(0)
    k_x, k_p = jax.random.split(key)

    B, C, H, W = 2, C_IN, 16, 16
    x = jax.random.uniform(k_x, (B, C, H, W), jnp.float32)
    params = init_params(k_p)

    x_reconst, min_encodings, e_indices, loss = sqvae_forward(x, params)
    jax.block_until_ready((x_reconst, min_encodings, e_indices, loss))

    N = B * H * W
    assert x_reconst.shape == (B, C, H, W)
    assert min_encodings.shape == (N, SIZE_DICT)
    assert e_indices.shape == (N, 1)
    assert bool(jnp.all((e_indices >= 0) & (e_indices < SIZE_DICT)))
    assert bool(jnp.allclose(jnp.sum(min_encodings, axis=-1), 1.0))
    assert all(bool(jnp.isfinite(v).all()) for v in loss.values())
    print("KERNEL_OK")
</pallas_src>

<mosaic_0001>
module attributes {stable_mosaic.version = 11 : i64} {
  func.func @_sqvae_kernel(%arg0: i32, %arg1: memref<1x1xf32, #tpu.memory_space<smem>>, %arg2: memref<1x1xi32, #tpu.memory_space<smem>>, %arg3: memref<256x4xf32, #tpu.memory_space<vmem>>, %arg4: memref<4x256xf32, #tpu.memory_space<vmem>>, %arg5: memref<4x128xbf16, #tpu.memory_space<vmem>>, %arg6: memref<1x128xf32, #tpu.memory_space<vmem>>, %arg7: memref<128x64xbf16, #tpu.memory_space<vmem>>, %arg8: memref<1x64xf32, #tpu.memory_space<vmem>>, %arg9: memref<128x128xbf16, #tpu.memory_space<vmem>>, %arg10: memref<1x128xf32, #tpu.memory_space<vmem>>, %arg11: memref<4x128xbf16, #tpu.memory_space<vmem>>, %arg12: memref<4x1xf32, #tpu.memory_space<vmem>>, %arg13: memref<4x256xf32, #tpu.memory_space<vmem>>, %arg14: memref<1x1x256xi32, #tpu.memory_space<vmem>>, %arg15: memref<1x8x128xf32, #tpu.memory_space<vmem>>) attributes {dimension_semantics = [#tpu.dimension_semantics<parallel>], iteration_bounds = array<i64: 2>, scalar_prefetch = 0 : i64, scratch_operands = 0 : i64, tpu.core_type = #tpu.core_type<tc>, window_params = [{transform_indices = @transform_0, window_bounds = array<i64: 1, 1>}, {transform_indices = @transform_1, window_bounds = array<i64: 1, 1>}, {transform_indices = @transform_2, window_bounds = array<i64: 256, 4>}, {transform_indices = @transform_3, window_bounds = array<i64: 4, 256>}, {pipeline_mode = #tpu.pipeline_mode<synchronous>, transform_indices = @transform_4, window_bounds = array<i64: 4, 128>}, {pipeline_mode = #tpu.pipeline_mode<synchronous>, transform_indices = @transform_5, window_bounds = array<i64: 1, 128>}, {pipeline_mode = #tpu.pipeline_mode<synchronous>, transform_indices = @transform_6, window_bounds = array<i64: 128, 64>}, {pipeline_mode = #tpu.pipeline_mode<synchronous>, transform_indices = @transform_7, window_bounds = array<i64: 1, 64>}, {pipeline_mode = #tpu.pipeline_mode<synchronous>, transform_indices = @transform_8, window_bounds = array<i64: 128, 128>}, {pipeline_mode = #tpu.pipeline_mode<synchronous>, transform_indices = @transform_9, window_bounds = array<i64: 1, 128>}, {pipeline_mode = #tpu.pipeline_mode<synchronous>, transform_indices = @transform_10, window_bounds = array<i64: 4, 128>}, {pipeline_mode = #tpu.pipeline_mode<synchronous>, transform_indices = @transform_11, window_bounds = array<i64: 4, 1>}, {transform_indices = @transform_12, window_bounds = array<i64: 4, 256>}, {transform_indices = @transform_13, window_bounds = array<i64: 1, 1, 256>}, {transform_indices = @transform_14, window_bounds = array<i64: 1, 8, 128>}]} {
    %c0 = arith.constant 0 : index
    %c0_0 = arith.constant 0 : index
    %0 = memref.load %arg1[%c0, %c0_0] : memref<1x1xf32, #tpu.memory_space<smem>>
    %c0_1 = arith.constant 0 : index
    %c0_2 = arith.constant 0 : index
    %1 = memref.load %arg2[%c0_1, %c0_2] : memref<1x1xi32, #tpu.memory_space<smem>>
    %c0_3 = arith.constant 0 : index
    %c0_4 = arith.constant 0 : index
    %2 = vector.load %arg3[%c0_3, %c0_4] : memref<256x4xf32, #tpu.memory_space<vmem>>, vector<256x4xf32>
    %3 = arith.truncf %2 : vector<256x4xf32> to vector<256x4xbf16>
    %c0_5 = arith.constant 0 : index
    %c0_6 = arith.constant 0 : index
    %4 = vector.load %arg5[%c0_5, %c0_6] : memref<4x128xbf16, #tpu.memory_space<vmem>>, vector<4x128xbf16>
    %cst = arith.constant dense<0.000000e+00> : vector<256x128xf32>
    %5 = tpu.matmul %3, %4, %cst {dimension_numbers = #tpu.dot_dimension_numbers<[1], [0], [0], [1], [0, 0, 1, 1], [], []>} : vector<256x4xbf16>, vector<4x128xbf16>, vector<256x128xf32> -> vector<256x128xf32>
    %c0_7 = arith.constant 0 : index
    %c0_8 = arith.constant 0 : index
    %6 = vector.load %arg6[%c0_7, %c0_8] : memref<1x128xf32, #tpu.memory_space<vmem>>, vector<1x128xf32>
    %7 = vector.broadcast %6 : vector<1x128xf32> to vector<256x128xf32>
    %8 = arith.addf %5, %7 : vector<256x128xf32>
    %cst_9 = arith.constant 0.000000e+00 : f32
    %9 = vector.broadcast %cst_9 : f32 to vector<256x128xf32>
    %10 = arith.maximumf %8, %9 : vector<256x128xf32>
    %11 = arith.truncf %10 : vector<256x128xf32> to vector<256x128xbf16>
    %c0_10 = arith.constant 0 : index
    %c0_11 = arith.constant 0 : index
    %12 = vector.load %arg7[%c0_10, %c0_11] : memref<128x64xbf16, #tpu.memory_space<vmem>>, vector<128x64xbf16>
    %cst_12 = arith.constant dense<0.000000e+00> : vector<256x64xf32>
    %13 = tpu.matmul %11, %12, %cst_12 {dimension_numbers = #tpu.dot_dimension_numbers<[1], [0], [0], [1], [0, 0, 1, 1], [], []>} : vector<256x128xbf16>, vector<128x64xbf16>, vector<256x64xf32> -> vector<256x64xf32>
    %c0_13 = arith.constant 0 : index
    %c0_14 = arith.constant 0 : index
    %14 = vector.load %arg8[%c0_13, %c0_14] : memref<1x64xf32, #tpu.memory_space<vmem>>, vector<1x64xf32>
    %15 = vector.broadcast %14 : vector<1x64xf32> to vector<256x64xf32>
    %16 = arith.addf %13, %15 : vector<256x64xf32>
    %17 = arith.mulf %16, %16 : vector<256x64xf32>
    %cst_15 = arith.constant dense<0.000000e+00> : vector<256xf32>
    %18 = vector.multi_reduction <add>, %17, %cst_15 [1] : vector<256x64xf32> to vector<256xf32>
    %19 = vector.shape_cast %18 : vector<256xf32> to vector<256x1xf32>
    %20 = vector.broadcast %0 : f32 to vector<256x1xf32>
    %21 = arith.mulf %20, %19 : vector<256x1xf32>
    %c0_16 = arith.constant 0 : index
    %c0_17 = arith.constant 0 : index
    %22 = vector.load %arg9[%c0_16, %c0_17] : memref<128x128xbf16, #tpu.memory_space<vmem>>, vector<128x128xbf16>
    %cst_18 = arith.constant dense<0.000000e+00> : vector<256x128xf32>
    %23 = tpu.matmul %11, %22, %cst_18 {dimension_numbers = #tpu.dot_dimension_numbers<[1], [0], [0], [1], [0, 0, 1, 1], [], []>} : vector<256x128xbf16>, vector<128x128xbf16>, vector<256x128xf32> -> vector<256x128xf32>
    %c0_19 = arith.constant 0 : index
    %c0_20 = arith.constant 0 : index
    %24 = vector.load %arg10[%c0_19, %c0_20] : memref<1x128xf32, #tpu.memory_space<vmem>>, vector<1x128xf32>
    %25 = vector.broadcast %24 : vector<1x128xf32> to vector<256x128xf32>
    %26 = arith.addf %23, %25 : vector<256x128xf32>
    %cst_21 = arith.constant dense<0xFF800000> : vector<256xf32>
    %27 = vector.multi_reduction <maximumf>, %26, %cst_21 [1] : vector<256x128xf32> to vector<256xf32>
    %28 = vector.shape_cast %27 : vector<256xf32> to vector<256x1xf32>
    %29 = vector.broadcast %28 : vector<256x1xf32> to vector<256x128xf32>
    %30 = arith.subf %26, %29 : vector<256x128xf32>
    %31 = math.exp %30 : vector<256x128xf32>
    %cst_22 = arith.constant dense<0.000000e+00> : vector<256xf32>
    %32 = vector.multi_reduction <add>, %31, %cst_22 [1] : vector<256x128xf32> to vector<256xf32>
    %33 = vector.shape_cast %32 : vector<256xf32> to vector<256x1xf32>
    %34 = arith.mulf %31, %30 : vector<256x128xf32>
    %cst_23 = arith.constant dense<0.000000e+00> : vector<256xf32>
    %35 = vector.multi_reduction <add>, %34, %cst_23 [1] : vector<256x128xf32> to vector<256xf32>
    %36 = vector.shape_cast %35 : vector<256xf32> to vector<256x1xf32>
    %37 = arith.divf %36, %33 : vector<256x1xf32>
    %38 = math.log %33 : vector<256x1xf32>
    %39 = arith.subf %37, %38 : vector<256x1xf32>
    %40 = tpu.iota {dimensions = array<i32: 1>} : vector<256x128xi32>
    %41 = vector.broadcast %28 : vector<256x1xf32> to vector<256x128xf32>
    %42 = arith.cmpf oeq, %26, %41 : vector<256x128xf32>
    %c128_i32 = arith.constant 128 : i32
    %43 = vector.broadcast %c128_i32 : i32 to vector<256x128xi32>
    %44 = arith.select %42, %40, %43 : vector<256x128xi1>, vector<256x128xi32>
    %cst_24 = arith.constant dense<2147483647> : vector<256xi32>
    %45 = vector.multi_reduction <minsi>, %44, %cst_24 [1] : vector<256x128xi32> to vector<256xi32>
    %46 = vector.shape_cast %45 : vector<256xi32> to vector<256x1xi32>
    %47 = vector.broadcast %46 : vector<256x1xi32> to vector<256x128xi32>
    %48 = arith.cmpi eq, %40, %47 : vector<256x128xi32>
    %49 = arith.extui %48 : vector<256x128xi1> to vector<256x128xi32>
    %50 = arith.sitofp %49 : vector<256x128xi32> to vector<256x128xf32>
    %51 = arith.truncf %50 : vector<256x128xf32> to vector<256x128xbf16>
    %52 = arith.subf %21, %28 : vector<256x1xf32>
    %c0_25 = arith.constant 0 : index
    %c0_26 = arith.constant 0 : index
    %53 = vector.load %arg11[%c0_25, %c0_26] : memref<4x128xbf16, #tpu.memory_space<vmem>>, vector<4x128xbf16>
    "tpu.trace_start"() <{level = 10 : i32, message = "ck,tk->ct"}> : () -> ()
    %cst_27 = arith.constant dense<0.000000e+00> : vector<4x256xf32>
    %54 = tpu.matmul %53, %51, %cst_27 {dimension_numbers = #tpu.dot_dimension_numbers<[1], [1], [0], [0], [0, 0, 1, 0], [], []>} : vector<4x128xbf16>, vector<256x128xbf16>, vector<4x256xf32> -> vector<4x256xf32>
    "tpu.trace_stop"() : () -> ()
    %c0_28 = arith.constant 0 : index
    %c0_29 = arith.constant 0 : index
    %55 = vector.load %arg12[%c0_28, %c0_29] : memref<4x1xf32, #tpu.memory_space<vmem>>, vector<4x1xf32>
    %56 = vector.broadcast %55 : vector<4x1xf32> to vector<4x256xf32>
    %57 = arith.addf %54, %56 : vector<4x256xf32>
    %58 = arith.negf %57 : vector<4x256xf32>
    %59 = math.exp %58 : vector<4x256xf32>
    %cst_30 = arith.constant 1.000000e+00 : f32
    %60 = vector.broadcast %cst_30 : f32 to vector<4x256xf32>
    %61 = arith.addf %60, %59 : vector<4x256xf32>
    %62 = arith.divf %60, %61 : vector<4x256xf32>
    %c0_31 = arith.constant 0 : index
    %c0_32 = arith.constant 0 : index
    %63 = vector.load %arg4[%c0_31, %c0_32] : memref<4x256xf32, #tpu.memory_space<vmem>>, vector<4x256xf32>
    %64 = arith.subf %62, %63 : vector<4x256xf32>
    %65 = arith.mulf %64, %64 : vector<4x256xf32>
    %66 = tpu.iota {dimensions = array<i32: 1>} : vector<1x128xi32>
    %67 = arith.sitofp %66 : vector<1x128xi32> to vector<1x128xbf16>
    "tpu.trace_start"() <{level = 10 : i32, message = "ok,tk->ot"}> : () -> ()
    %cst_33 = arith.constant dense<0.000000e+00> : vector<1x256xf32>
    %68 = tpu.matmul %67, %51, %cst_33 {dimension_numbers = #tpu.dot_dimension_numbers<[1], [1], [0], [0], [0, 0, 1, 0], [], []>} : vector<1x128xbf16>, vector<256x128xbf16>, vector<1x256xf32> -> vector<1x256xf32>
    "tpu.trace_stop"() : () -> ()
    %c256_i32 = arith.constant 256 : i32
    %69 = arith.muli %arg0, %c256_i32 : i32
    %70 = tpu.iota {dimensions = array<i32: 0>} : vector<256x1xi32>
    %71 = vector.broadcast %69 : i32 to vector<256x1xi32>
    %72 = arith.addi %71, %70 : vector<256x1xi32>
    %73 = vector.broadcast %1 : i32 to vector<256x1xi32>
    %74 = arith.cmpi slt, %72, %73 : vector<256x1xi32>
    %75 = arith.extui %74 : vector<256x1xi1> to vector<256x1xi32>
    %76 = arith.sitofp %75 : vector<256x1xi32> to vector<256x1xf32>
    %77 = tpu.iota {dimensions = array<i32: 1>} : vector<1x256xi32>
    %78 = vector.broadcast %69 : i32 to vector<1x256xi32>
    %79 = arith.addi %78, %77 : vector<1x256xi32>
    %80 = vector.broadcast %1 : i32 to vector<1x256xi32>
    %81 = arith.cmpi slt, %79, %80 : vector<1x256xi32>
    %82 = arith.extui %81 : vector<1x256xi1> to vector<1x256xi32>
    %83 = arith.sitofp %82 : vector<1x256xi32> to vector<1x256xf32>
    %84 = arith.mulf %39, %76 : vector<256x1xf32>
    %85 = vector.shape_cast %84 : vector<256x1xf32> to vector<1x256x1xf32>
    %cst_34 = arith.constant dense<0.000000e+00> : vector<1xf32>
    %86 = vector.multi_reduction <add>, %85, %cst_34 [1, 2] : vector<1x256x1xf32> to vector<1xf32>
    %87 = vector.shape_cast %86 : vector<1xf32> to vector<1x1x1xf32>
    %88 = vector.extract %87[0, 0, 0] : f32 from vector<1x1x1xf32>
    %89 = arith.mulf %52, %76 : vector<256x1xf32>
    %90 = vector.shape_cast %89 : vector<256x1xf32> to vector<1x256x1xf32>
    %cst_35 = arith.constant dense<0.000000e+00> : vector<1xf32>
    %91 = vector.multi_reduction <add>, %90, %cst_35 [1, 2] : vector<1x256x1xf32> to vector<1xf32>
    %92 = vector.shape_cast %91 : vector<1xf32> to vector<1x1x1xf32>
    %93 = vector.extract %92[0, 0, 0] : f32 from vector<1x1x1xf32>
    %94 = vector.broadcast %83 : vector<1x256xf32> to vector<4x256xf32>
    %95 = arith.mulf %65, %94 : vector<4x256xf32>
    %96 = vector.shape_cast %95 : vector<4x256xf32> to vector<1x4x256xf32>
    %cst_36 = arith.constant dense<0.000000e+00> : vector<1xf32>
    %97 = vector.multi_reduction <add>, %96, %cst_36 [1, 2] : vector<1x4x256xf32> to vector<1xf32>
    %98 = vector.shape_cast %97 : vector<1xf32> to vector<1x1x1xf32>
    %99 = vector.extract %98[0, 0, 0] : f32 from vector<1x1x1xf32>
    %100 = vector.shape_cast %76 : vector<256x1xf32> to vector<1x256x1xf32>
    %cst_37 = arith.constant dense<0.000000e+00> : vector<1xf32>
    %101 = vector.multi_reduction <add>, %100, %cst_37 [1, 2] : vector<1x256x1xf32> to vector<1xf32>
    %102 = vector.shape_cast %101 : vector<1xf32> to vector<1x1x1xf32>
    %103 = vector.extract %102[0, 0, 0] : f32 from vector<1x1x1xf32>
    %c0_38 = arith.constant 0 : index
    %c0_39 = arith.constant 0 : index
    %104 = vector.load %arg13[%c0_38, %c0_39] : memref<4x256xf32, #tpu.memory_space<vmem>>, vector<4x256xf32>
    tpu.vector_store %arg13[%c0_38, %c0_39], %62 {strides = array<i32>} : memref<4x256xf32, #tpu.memory_space<vmem>>, vector<4x256xf32>,
    %105 = arith.fptosi %68 : vector<1x256xf32> to vector<1x256xi32>
    %106 = vector.shape_cast %105 : vector<1x256xi32> to vector<1x1x256xi32>
    %c0_40 = arith.constant 0 : index
    %c0_41 = arith.constant 0 : index
    %c0_42 = arith.constant 0 : index
    %107 = vector.load %arg14[%c0_40, %c0_41, %c0_42] : memref<1x1x256xi32, #tpu.memory_space<vmem>>, vector<1x1x256xi32>
    tpu.vector_store %arg14[%c0_40, %c0_41, %c0_42], %106 {strides = array<i32>} : memref<1x1x256xi32, #tpu.memory_space<vmem>>, vector<1x1x256xi32>,
    %108 = tpu.iota {dimensions = array<i32: 2>} : vector<1x8x128xi32>
    %c0_i32 = arith.constant 0 : i32
    %109 = vector.broadcast %c0_i32 : i32 to vector<1x8x128xi32>
    %110 = arith.cmpi eq, %108, %109 : vector<1x8x128xi32>
    %cst_43 = arith.constant 0.000000e+00 : f32
    %111 = vector.broadcast %88 : f32 to vector<1x8x128xf32>
    %112 = vector.broadcast %cst_43 : f32 to vector<1x8x128xf32>
    %113 = arith.select %110, %111, %112 : vector<1x8x128xi1>, vector<1x8x128xf32>
    %c1_i32 = arith.constant 1 : i32
    %114 = vector.broadcast %c1_i32 : i32 to vector<1x8x128xi32>
    %115 = arith.cmpi eq, %108, %114 : vector<1x8x128xi32>
    %cst_44 = arith.constant 0.000000e+00 : f32
    %116 = vector.broadcast %93 : f32 to vector<1x8x128xf32>
    %117 = vector.broadcast %cst_44 : f32 to vector<1x8x128xf32>
    %118 = arith.select %115, %116, %117 : vector<1x8x128xi1>, vector<1x8x128xf32>
    %119 = arith.addf %113, %118 : vector<1x8x128xf32>
    %c2_i32 = arith.constant 2 : i32
    %120 = vector.broadcast %c2_i32 : i32 to vector<1x8x128xi32>
    %121 = arith.cmpi eq, %108, %120 : vector<1x8x128xi32>
    %cst_45 = arith.constant 0.000000e+00 : f32
    %122 = vector.broadcast %99 : f32 to vector<1x8x128xf32>
    %123 = vector.broadcast %cst_45 : f32 to vector<1x8x128xf32>
    %124 = arith.select %121, %122, %123 : vector<1x8x128xi1>, vector<1x8x128xf32>
    %125 = arith.addf %119, %124 : vector<1x8x128xf32>
    %c3_i32 = arith.constant 3 : i32
    %126 = vector.broadcast %c3_i32 : i32 to vector<1x8x128xi32>
    %127 = arith.cmpi eq, %108, %126 : vector<1x8x128xi32>
    %cst_46 = arith.constant 0.000000e+00 : f32
    %128 = vector.broadcast %103 : f32 to vector<1x8x128xf32>
    %129 = vector.broadcast %cst_46 : f32 to vector<1x8x128xf32>
    %130 = arith.select %127, %128, %129 : vector<1x8x128xi1>, vector<1x8x128xf32>
    %131 = arith.addf %125, %130 : vector<1x8x128xf32>
    %c0_47 = arith.constant 0 : index
    %c0_48 = arith.constant 0 : index
    %c0_49 = arith.constant 0 : index
    %132 = vector.load %arg15[%c0_47, %c0_48, %c0_49] : memref<1x8x128xf32, #tpu.memory_space<vmem>>, vector<1x8x128xf32>
    tpu.vector_store %arg15[%c0_47, %c0_48, %c0_49], %131 {strides = array<i32>} : memref<1x8x128xf32, #tpu.memory_space<vmem>>, vector<1x8x128xf32>,
    return
  }
  func.func @transform_0(%arg0: i32) -> (i32, i32) {
    %c0_i32 = arith.constant 0 : i32
    %c0_i32_0 = arith.constant 0 : i32
    %c0_i32_1 = arith.constant 0 : i32
    return %c0_i32, %c0_i32_0 : i32, i32
  }
  func.func @transform_1(%arg0: i32) -> (i32, i32) {
    %c0_i32 = arith.constant 0 : i32
    %c0_i32_0 = arith.constant 0 : i32
    %c0_i32_1 = arith.constant 0 : i32
    return %c0_i32, %c0_i32_0 : i32, i32
  }
  func.func @transform_2(%arg0: i32) -> (i32, i32) {
    %c0_i32 = arith.constant 0 : i32
    %c0_i32_0 = arith.constant 0 : i32
    return %arg0, %c0_i32 : i32, i32
  }
  func.func @transform_3(%arg0: i32) -> (i32, i32) {
    %c0_i32 = arith.constant 0 : i32
    %c0_i32_0 = arith.constant 0 : i32
    return %c0_i32, %arg0 : i32, i32
  }
  func.func @transform_4(%arg0: i32) -> (i32, i32) {
    %c0_i32 = arith.constant 0 : i32
    %c0_i32_0 = arith.constant 0 : i32
    %c0_i32_1 = arith.constant 0 : i32
    return %c0_i32, %c0_i32_0 : i32, i32
  }
  func.func @transform_5(%arg0: i32) -> (i32, i32) {
    %c0_i32 = arith.constant 0 : i32
    %c0_i32_0 = arith.constant 0 : i32
    %c0_i32_1 = arith.constant 0 : i32
    return %c0_i32, %c0_i32_0 : i32, i32
  }
  func.func @transform_6(%arg0: i32) -> (i32, i32) {
    %c0_i32 = arith.constant 0 : i32
    %c0_i32_0 = arith.constant 0 : i32
    %c0_i32_1 = arith.constant 0 : i32
    return %c0_i32, %c0_i32_0 : i32, i32
  }
  func.func @transform_7(%arg0: i32) -> (i32, i32) {
    %c0_i32 = arith.constant 0 : i32
    %c0_i32_0 = arith.constant 0 : i32
    %c0_i32_1 = arith.constant 0 : i32
    return %c0_i32, %c0_i32_0 : i32, i32
  }
  func.func @transform_8(%arg0: i32) -> (i32, i32) {
    %c0_i32 = arith.constant 0 : i32
    %c0_i32_0 = arith.constant 0 : i32
    %c0_i32_1 = arith.constant 0 : i32
    return %c0_i32, %c0_i32_0 : i32, i32
  }
  func.func @transform_9(%arg0: i32) -> (i32, i32) {
    %c0_i32 = arith.constant 0 : i32
    %c0_i32_0 = arith.constant 0 : i32
    %c0_i32_1 = arith.constant 0 : i32
    return %c0_i32, %c0_i32_0 : i32, i32
  }
  func.func @transform_10(%arg0: i32) -> (i32, i32) {
    %c0_i32 = arith.constant 0 : i32
    %c0_i32_0 = arith.constant 0 : i32
    %c0_i32_1 = arith.constant 0 : i32
    return %c0_i32, %c0_i32_0 : i32, i32
  }
  func.func @transform_11(%arg0: i32) -> (i32, i32) {
    %c0_i32 = arith.constant 0 : i32
    %c0_i32_0 = arith.constant 0 : i32
    %c0_i32_1 = arith.constant 0 : i32
    return %c0_i32, %c0_i32_0 : i32, i32
  }
  func.func @transform_12(%arg0: i32) -> (i32, i32) {
    %c0_i32 = arith.constant 0 : i32
    %c0_i32_0 = arith.constant 0 : i32
    return %c0_i32, %arg0 : i32, i32
  }
  func.func @transform_13(%arg0: i32) -> (i32, i32, i32) {
    %c0_i32 = arith.constant 0 : i32
    %c0_i32_0 = arith.constant 0 : i32
    %c0_i32_1 = arith.constant 0 : i32
    return %arg0, %c0_i32, %c0_i32_0 : i32, i32, i32
  }
  func.func @transform_14(%arg0: i32) -> (i32, i32, i32) {
    %c0_i32 = arith.constant 0 : i32
    %c0_i32_0 = arith.constant 0 : i32
    %c0_i32_1 = arith.constant 0 : i32
    return %arg0, %c0_i32, %c0_i32_0 : i32, i32, i32
  }
}

</mosaic_0001>

<llo_original>
// kernel: sqvae_forward.1
$region0: #{sqvae_forward.1}
  #allocation0 [shape = 'u32[]', space=smem, size = 0x4, offset = 0x4, fixed_abs, tag = 'smem constant byte address 0x4 - core index']
  #allocation1 [shape = 'u32[144,128]{1,0:T(1,128)}', space=vmem, size = 0x12000, scoped, tag = 'internal scratch']
  #allocation2 [shape = 'f32[1,1]{1,0:T(1,128)S(6)}', space=smem, size = 0x200, scoped, tag = 'scoped memory for sqvae_forward.1']
  #allocation3 [shape = 's32[1,1]{1,0:T(1,128)S(6)}', space=smem, size = 0x200, scoped, tag = 'scoped memory for sqvae_forward.1']
  %s0 = inlined_call_operand.<no memory space> [shape: f32[1,1], index: 0, kind: input, shape index: {}]
  %s1 = inlined_call_operand.<no memory space> [shape: s32[1,1], index: 1, kind: input, shape index: {}]
  %s2 = inlined_call_operand.vmem [shape: f32[512,4], index: 2, kind: input, shape index: {}]
  %s3 = inlined_call_operand.vmem [shape: f32[4,512], index: 3, kind: input, shape index: {}]
  %s4 = inlined_call_operand.vmem [shape: bf16[4,128], index: 4, kind: input, shape index: {}]
  %s5 = inlined_call_operand.vmem [shape: f32[1,128], index: 5, kind: input, shape index: {}]
  %s6 = inlined_call_operand.vmem [shape: bf16[128,64], index: 6, kind: input, shape index: {}]
  %s7 = inlined_call_operand.vmem [shape: f32[1,64], index: 7, kind: input, shape index: {}]
  %s8 = inlined_call_operand.vmem [shape: bf16[128,128], index: 8, kind: input, shape index: {}]
  %s9 = inlined_call_operand.vmem [shape: f32[1,128], index: 9, kind: input, shape index: {}]
  %s10 = inlined_call_operand.vmem [shape: bf16[4,128], index: 10, kind: input, shape index: {}]
  %s11 = inlined_call_operand.vmem [shape: f32[4,1], index: 11, kind: input, shape index: {}]
  %s12 = inlined_call_operand.vmem [shape: f32[4,512], index: 12, kind: output, shape index: {0}]
  %s13 = inlined_call_operand.vmem [shape: s32[2,1,256], index: 13, kind: output, shape index: {1}]
  %s14 = inlined_call_operand.vmem [shape: f32[2,8,128], index: 14, kind: output, shape index: {2}]
  %15 = xla_tuple %s12, %s13, %s14
  %s16 = sld [smem:[#allocation0]]
  $region97: #{sqvae_forward.1} parent=0
    _
  %s18 = ssub.s32 1, %s16
  %s19 = scalar_select 0, %s18, %s16
  %20 = sst [smem:[#allocation2]] %s0
  %21 = sst [smem:[#allocation3]] %s1
  loop: start=0, step=1, limit=4
  $region2: #{sqvae_forward.1} parent=0 // loop_pre_header
    _
  $region3: #{sqvae_forward.1} parent=0 // loop_header
    %s23 = sphi 0, %s27
    %p24 = scmp.ge.s32.totalorder %s23, 4
    %s31 = sphi 0, %s31
    %s33 = sphi 0, %s31
    %s34 = sphi 0, %s33
    %s48 = sphi 0, %s34
    %s52 = sphi 0, %s52
    %s54 = sphi 0, %s52
    %s55 = sphi 0, %s54
    %s69 = sphi 0, %s55
    %s75 = sphi 0, %s77
    %s78 = sphi 0, %s75
    %s79 = sphi 0, %s78
    %s95 = sphi 0, %s79
    %s101 = sphi 0, %s103
    %s104 = sphi 0, %s101
    %s105 = sphi 0, %s104
    %s121 = sphi 0, %s105
    %s125 = sphi 0, %s125
    %s127 = sphi 0, %s125
    %s128 = sphi 0, %s127
    %s142 = sphi 0, %s128
    %s146 = sphi 0, %s146
    %s148 = sphi 0, %s146
    %s149 = sphi 0, %s148
    %s163 = sphi 0, %s149
    %s167 = sphi 0, %s167
    %s169 = sphi 0, %s167
    %s170 = sphi 0, %s169
    %s184 = sphi 0, %s170
    %s188 = sphi 0, %s188
    %s190 = sphi 0, %s188
    %s191 = sphi 0, %s190
    %s205 = sphi 0, %s191
    %s209 = sphi 0, %s209
    %s211 = sphi 0, %s209
    %s212 = sphi 0, %s211
    %s226 = sphi 0, %s212
    %s230 = sphi 0, %s230
    %s232 = sphi 0, %s230
    %s233 = sphi 0, %s232
    %s247 = sphi 0, %s233
    %s251 = sphi 0, %s251
    %s253 = sphi 0, %s251
    %s254 = sphi 0, %s253
    %s268 = sphi 0, %s254
    %s272 = sphi 0, %s272
    %s274 = sphi 0, %s272
    %s275 = sphi 0, %s274
    %s289 = sphi 0, %s275
    %s295 = sphi 0, %s297
    %s298 = sphi 0, %s295
    %s299 = sphi 0, %s298
    %s315 = sphi 0, %s299
    %s321 = sphi 0, %s323
    %s324 = sphi 0, %s321
    %s325 = sphi 0, %s324
    %s341 = sphi 0, %s325
    %s347 = sphi 0, %s349
    %s350 = sphi 0, %s347
    %s351 = sphi 0, %s350
    %s367 = sphi 0, %s351
  $region4: #{sqvae_forward.1} parent=0 // loop_header_branch
    %26 = sbr.rel (%p24) target = $region8
  $region5: #{sqvae_forward.1} parent=0 // loop_body
    %s28 = ssub.s32 %s23, 1
    %s29 = ssub.s32 %s23, 2
    %s30 = sadd.s32 %s23, 1
    %s32 = sadd.s32 %s31, 1
    %p35 = scmp.eq.s32.totalorder %s23, 1
    %p36 = scmp.ne.s32.totalorder %s31, %s33
    %p37 = scmp.eq.s32.totalorder %s23, 0
    %p38 = por %p36, %p37
    %p39 = scmp.ne.s32.totalorder %s31, %s33
    %p40 = scmp.eq.s32.totalorder %s28, 1
    %p41 = por %p39, %p40
    %p42 = scmp.ne.s32.totalorder %s33, %s34
    %p43 = scmp.eq.s32.totalorder %s28, 0
    %p44 = por %p42, %p43
    %p45 = scmp.ne.s32.totalorder %s33, %s34
    %p46 = scmp.eq.s32.totalorder %s29, 1
    %p47 = por %p45, %p46
    %p49 = scmp.ne.s32.totalorder %s34, %s48
    %p50 = scmp.eq.s32.totalorder %s29, 0
    %p51 = por %p49, %p50
    %s53 = sadd.s32 %s52, 1
    %p56 = scmp.eq.s32.totalorder %s23, 1
    %p57 = scmp.ne.s32.totalorder %s52, %s54
    %p58 = scmp.eq.s32.totalorder %s23, 0
    %p59 = por %p57, %p58
    %p60 = scmp.ne.s32.totalorder %s52, %s54
    %p61 = scmp.eq.s32.totalorder %s28, 1
    %p62 = por %p60, %p61
    %p63 = scmp.ne.s32.totalorder %s54, %s55
    %p64 = scmp.eq.s32.totalorder %s28, 0
    %p65 = por %p63, %p64
    %p66 = scmp.ne.s32.totalorder %s54, %s55
    %p67 = scmp.eq.s32.totalorder %s29, 1
    %p68 = por %p66, %p67
    %p70 = scmp.ne.s32.totalorder %s55, %s69
    %p71 = scmp.eq.s32.totalorder %s29, 0
    %p72 = por %p70, %p71
    %s73 = ssub.s32 %s23, %s30
    %p74 = scmp.eq.s32.totalorder %s73, 0
    %s76 = sadd.s32 %s75, 1
    %s77 = scalar_select %p74, %s75, %s76
    %p80 = pneg %p74
    %p81 = scmp.eq.s32.totalorder %s23, 1
    %p82 = por %p80, %p81
    %p83 = scmp.ne.s32.totalorder %s75, %s78
    %p84 = scmp.eq.s32.totalorder %s23, 0
    %p85 = por %p83, %p84
    %p86 = scmp.ne.s32.totalorder %s75, %s78
    %p87 = scmp.eq.s32.totalorder %s28, 1
    %p88 = por %p86, %p87
    %p89 = scmp.ne.s32.totalorder %s78, %s79
    %p90 = scmp.eq.s32.totalorder %s28, 0
    %p91 = por %p89, %p90
    %p92 = scmp.ne.s32.totalorder %s78, %s79
    %p93 = scmp.eq.s32.totalorder %s29, 1
    %p94 = por %p92, %p93
    %p96 = scmp.ne.s32.totalorder %s79, %s95
    %p97 = scmp.eq.s32.totalorder %s29, 0
    %p98 = por %p96, %p97
    %s99 = ssub.s32 %s23, %s30
    %p100 = scmp.eq.s32.totalorder %s99, 0
    %s102 = sadd.s32 %s101, 1
    %s103 = scalar_select %p100, %s101, %s102
    %p106 = pneg %p100
    %p107 = scmp.eq.s32.totalorder %s23, 1
    %p108 = por %p106, %p107
    %p109 = scmp.ne.s32.totalorder %s101, %s104
    %p110 = scmp.eq.s32.totalorder %s23, 0
    %p111 = por %p109, %p110
    %p112 = scmp.ne.s32.totalorder %s101, %s104
    %p113 = scmp.eq.s32.totalorder %s28, 1
    %p114 = por %p112, %p113
    %p115 = scmp.ne.s32.totalorder %s104, %s105
    %p116 = scmp.eq.s32.totalorder %s28, 0
    %p117 = por %p115, %p116
    %p118 = scmp.ne.s32.totalorder %s104, %s105
    %p119 = scmp.eq.s32.totalorder %s29, 1
    %p120 = por %p118, %p119
    %p122 = scmp.ne.s32.totalorder %s105, %s121
    %p123 = scmp.eq.s32.totalorder %s29, 0
    %p124 = por %p122, %p123
    %s126 = sadd.s32 %s125, 1
    %p129 = scmp.eq.s32.totalorder %s23, 1
    %p130 = scmp.ne.s32.totalorder %s125, %s127
    %p131 = scmp.eq.s32.totalorder %s23, 0
    %p132 = por %p130, %p131
    %p133 = scmp.ne.s32.totalorder %s125, %s127
    %p134 = scmp.eq.s32.totalorder %s28, 1
    %p135 = por %p133, %p134
    %p136 = scmp.ne.s32.totalorder %s127, %s128
    %p137 = scmp.eq.s32.totalorder %s28, 0
    %p138 = por %p136, %p137
    %p139 = scmp.ne.s32.totalorder %s127, %s128
    %p140 = scmp.eq.s32.totalorder %s29, 1
    %p141 = por %p139, %p140
    %p143 = scmp.ne.s32.totalorder %s128, %s142
    %p144 = scmp.eq.s32.totalorder %s29, 0
    %p145 = por %p143, %p144
    %s147 = sadd.s32 %s146, 1
    %p150 = scmp.eq.s32.totalorder %s23, 1
    %p151 = scmp.ne.s32.totalorder %s146, %s148
    %p152 = scmp.eq.s32.totalorder %s23, 0
    %p153 = por %p151, %p152
    %p154 = scmp.ne.s32.totalorder %s146, %s148
    %p155 = scmp.eq.s32.totalorder %s28, 1
    %p156 = por %p154, %p155
    %p157 = scmp.ne.s32.totalorder %s148, %s149
    %p158 = scmp.eq.s32.totalorder %s28, 0
    %p159 = por %p157, %p158
    %p160 = scmp.ne.s32.totalorder %s148, %s149
    %p161 = scmp.eq.s32.totalorder %s29, 1
    %p162 = por %p160, %p161
    %p164 = scmp.ne.s32.totalorder %s149, %s163
    %p165 = scmp.eq.s32.totalorder %s29, 0
    %p166 = por %p164, %p165
    %s168 = sadd.s32 %s167, 1
    %p171 = scmp.eq.s32.totalorder %s23, 1
    %p172 = scmp.ne.s32.totalorder %s167, %s169
    %p173 = scmp.eq.s32.totalorder %s23, 0
    %p174 = por %p172, %p173
    %p175 = scmp.ne.s32.totalorder %s167, %s169
    %p176 = scmp.eq.s32.totalorder %s28, 1
    %p177 = por %p175, %p176
    %p178 = scmp.ne.s32.totalorder %s169, %s170
    %p179 = scmp.eq.s32.totalorder %s28, 0
    %p180 = por %p178, %p179
    %p181 = scmp.ne.s32.totalorder %s169, %s170
    %p182 = scmp.eq.s32.totalorder %s29, 1
    %p183 = por %p181, %p182
    %p185 = scmp.ne.s32.totalorder %s170, %s184
    %p186 = scmp.eq.s32.totalorder %s29, 0
    %p187 = por %p185, %p186
    %s189 = sadd.s32 %s188, 1
    %p192 = scmp.eq.s32.totalorder %s23, 1
    %p193 = scmp.ne.s32.totalorder %s188, %s190
    %p194 = scmp.eq.s32.totalorder %s23, 0
    %p195 = por %p193, %p194
    %p196 = scmp.ne.s32.totalorder %s188, %s190
    %p197 = scmp.eq.s32.totalorder %s28, 1
    %p198 = por %p196, %p197
    %p199 = scmp.ne.s32.totalorder %s190, %s191
    %p200 = scmp.eq.s32.totalorder %s28, 0
    %p201 = por %p199, %p200
    %p202 = scmp.ne.s32.totalorder %s190, %s191
    %p203 = scmp.eq.s32.totalorder %s29, 1
    %p204 = por %p202, %p203
    %p206 = scmp.ne.s32.totalorder %s191, %s205
    %p207 = scmp.eq.s32.totalorder %s29, 0
    %p208 = por %p206, %p207
    %s210 = sadd.s32 %s209, 1
    %p213 = scmp.eq.s32.totalorder %s23, 1
    %p214 = scmp.ne.s32.totalorder %s209, %s211
    %p215 = scmp.eq.s32.totalorder %s23, 0
    %p216 = por %p214, %p215
    %p217 = scmp.ne.s32.totalorder %s209, %s211
    %p218 = scmp.eq.s32.totalorder %s28, 1
    %p219 = por %p217, %p218
    %p220 = scmp.ne.s32.totalorder %s211, %s212
    %p221 = scmp.eq.s32.totalorder %s28, 0
    %p222 = por %p220, %p221
    %p223 = scmp.ne.s32.totalorder %s211, %s212
    %p224 = scmp.eq.s32.totalorder %s29, 1
    %p225 = por %p223, %p224
    %p227 = scmp.ne.s32.totalorder %s212, %s226
    %p228 = scmp.eq.s32.totalorder %s29, 0
    %p229 = por %p227, %p228
    %s231 = sadd.s32 %s230, 1
    %p234 = scmp.eq.s32.totalorder %s23, 1
    %p235 = scmp.ne.s32.totalorder %s230, %s232
    %p236 = scmp.eq.s32.totalorder %s23, 0
    %p237 = por %p235, %p236
    %p238 = scmp.ne.s32.totalorder %s230, %s232
    %p239 = scmp.eq.s32.totalorder %s28, 1
    %p240 = por %p238, %p239
    %p241 = scmp.ne.s32.totalorder %s232, %s233
    %p242 = scmp.eq.s32.totalorder %s28, 0
    %p243 = por %p241, %p242
    %p244 = scmp.ne.s32.totalorder %s232, %s233
    %p245 = scmp.eq.s32.totalorder %s29, 1
    %p246 = por %p244, %p245
    %p248 = scmp.ne.s32.totalorder %s233, %s247
    %p249 = scmp.eq.s32.totalorder %s29, 0
    %p250 = por %p248, %p249
    %s252 = sadd.s32 %s251, 1
    %p255 = scmp.eq.s32.totalorder %s23, 1
    %p256 = scmp.ne.s32.totalorder %s251, %s253
    %p257 = scmp.eq.s32.totalorder %s23, 0
    %p258 = por %p256, %p257
    %p259 = scmp.ne.s32.totalorder %s251, %s253
    %p260 = scmp.eq.s32.totalorder %s28, 1
    %p261 = por %p259, %p260
    %p262 = scmp.ne.s32.totalorder %s253, %s254
    %p263 = scmp.eq.s32.totalorder %s28, 0
    %p264 = por %p262, %p263
    %p265 = scmp.ne.s32.totalorder %s253, %s254
    %p266 = scmp.eq.s32.totalorder %s29, 1
    %p267 = por %p265, %p266
    %p269 = scmp.ne.s32.totalorder %s254, %s268
    %p270 = scmp.eq.s32.totalorder %s29, 0
    %p271 = por %p269, %p270
    %s273 = sadd.s32 %s272, 1
    %p276 = scmp.eq.s32.totalorder %s23, 1
    %p277 = scmp.ne.s32.totalorder %s272, %s274
    %p278 = scmp.eq.s32.totalorder %s23, 0
    %p279 = por %p277, %p278
    %p280 = scmp.ne.s32.totalorder %s272, %s274
    %p281 = scmp.eq.s32.totalorder %s28, 1
    %p282 = por %p280, %p281
    %p283 = scmp.ne.s32.totalorder %s274, %s275
    %p284 = scmp.eq.s32.totalorder %s28, 0
    %p285 = por %p283, %p284
    %p286 = scmp.ne.s32.totalorder %s274, %s275
    %p287 = scmp.eq.s32.totalorder %s29, 1
    %p288 = por %p286, %p287
    %p290 = scmp.ne.s32.totalorder %s275, %s289
    %p291 = scmp.eq.s32.totalorder %s29, 0
    %p292 = por %p290, %p291
    %s293 = ssub.s32 %s23, %s30
    %p294 = scmp.eq.s32.totalorder %s293, 0
    %s296 = sadd.s32 %s295, 1
    %s297 = scalar_select %p294, %s295, %s296
    %p300 = pneg %p294
    %p301 = scmp.eq.s32.totalorder %s23, 1
    %p302 = por %p300, %p301
    %p303 = scmp.ne.s32.totalorder %s295, %s298
    %p304 = scmp.eq.s32.totalorder %s23, 0
    %p305 = por %p303, %p304
    %p306 = scmp.ne.s32.totalorder %s295, %s298
    %p307 = scmp.eq.s32.totalorder %s28, 1
    %p308 = por %p306, %p307
    %p309 = scmp.ne.s32.totalorder %s298, %s299
    %p310 = scmp.eq.s32.totalorder %s28, 0
    %p311 = por %p309, %p310
    %p312 = scmp.ne.s32.totalorder %s298, %s299
    %p313 = scmp.eq.s32.totalorder %s29, 1
    %p314 = por %p312, %p313
    %p316 = scmp.ne.s32.totalorder %s299, %s315
    %p317 = scmp.eq.s32.totalorder %s29, 0
    %p318 = por %p316, %p317
    %s319 = ssub.s32 %s23, %s30
    %p320 = scmp.eq.s32.totalorder %s319, 0
    %s322 = sadd.s32 %s321, 1
    %s323 = scalar_select %p320, %s321, %s322
    %p326 = pneg %p320
    %p327 = scmp.eq.s32.totalorder %s23, 1
    %p328 = por %p326, %p327
    %p329 = scmp.ne.s32.totalorder %s321, %s324
    %p330 = scmp.eq.s32.totalorder %s23, 0
    %p331 = por %p329, %p330
    %p332 = scmp.ne.s32.totalorder %s321, %s324
    %p333 = scmp.eq.s32.totalorder %s28, 1
    %p334 = por %p332, %p333
    %p335 = scmp.ne.s32.totalorder %s324, %s325
    %p336 = scmp.eq.s32.totalorder %s28, 0
    %p337 = por %p335, %p336
    %p338 = scmp.ne.s32.totalorder %s324, %s325
    %p339 = scmp.eq.s32.totalorder %s29, 1
    %p340 = por %p338, %p339
    %p342 = scmp.ne.s32.totalorder %s325, %s341
    %p343 = scmp.eq.s32.totalorder %s29, 0
    %p344 = por %p342, %p343
    %s345 = ssub.s32 %s23, %s30
    %p346 = scmp.eq.s32.totalorder %s345, 0
    %s348 = sadd.s32 %s347, 1
    %s349 = scalar_select %p346, %s347, %s348
    %p352 = pneg %p346
    %p353 = scmp.eq.s32.totalorder %s23, 1
    %p354 = por %p352, %p353
    %p355 = scmp.ne.s32.totalorder %s347, %s350
    %p356 = scmp.eq.s32.totalorder %s23, 0
    %p357 = por %p355, %p356
    %p358 = scmp.ne.s32.totalorder %s347, %s350
    %p359 = scmp.eq.s32.totalorder %s28, 1
    %p360 = por %p358, %p359
    %p361 = scmp.ne.s32.totalorder %s350, %s351
    %p362 = scmp.eq.s32.totalorder %s28, 0
    %p363 = por %p361, %p362
    %p364 = scmp.ne.s32.totalorder %s350, %s351
    %p365 = scmp.eq.s32.totalorder %s29, 1
    %p366 = por %p364, %p365
    %p368 = scmp.ne.s32.totalorder %s351, %s367
    %p369 = scmp.eq.s32.totalorder %s29, 0
    %p370 = por %p368, %p369
    %p371 = scmp.le.s32.totalorder 1, %s23
    %p372 = scmp.lt.s32.totalorder %s23, 3
    %p373 = pnand %p371, %p372
    %p374 = pneg %p373
    // Predicated region
    $region9: #{sqvae_forward.1} parent=5 // pred_check
      _
    $region10: #{sqvae_forward.1} parent=5 // pred_check_branch
      %376 = sbr.rel (%p373) target = $region12
    $region11: #{sqvae_forward.1} parent=5 // pred_region
      %s377 = ssub.s32 %s23, 1
      // Predicated region
      $region13: #{sqvae_forward.1} parent=11 // pred_check
        %p378 = pneg %p44
      $region14: #{sqvae_forward.1} parent=11 // pred_check_branch
        %380 = sbr.rel (%p378) target = $region16
      $region15: #{sqvae_forward.1} parent=11 // pred_region
        _
      $region16: #{sqvae_forward.1} parent=11 // pred_fallthru
        _
      // Predicated region
      $region17: #{sqvae_forward.1} parent=11 // pred_check
        %p381 = pneg %p65
      $region18: #{sqvae_forward.1} parent=11 // pred_check_branch
        %383 = sbr.rel (%p381) target = $region20
      $region19: #{sqvae_forward.1} parent=11 // pred_region
        _
      $region20: #{sqvae_forward.1} parent=11 // pred_fallthru
        _
      // Predicated region
      $region21: #{sqvae_forward.1} parent=11 // pred_check
        %p384 = pneg %p138
      $region22: #{sqvae_forward.1} parent=11 // pred_check_branch
        %386 = sbr.rel (%p384) target = $region24
      $region23: #{sqvae_forward.1} parent=11 // pred_region
        _
      $region24: #{sqvae_forward.1} parent=11 // pred_fallthru
        _
      // Predicated region
      $region25: #{sqvae_forward.1} parent=11 // pred_check
        %p387 = pneg %p159
      $region26: #{sqvae_forward.1} parent=11 // pred_check_branch
        %389 = sbr.rel (%p387) target = $region28
      $region27: #{sqvae_forward.1} parent=11 // pred_region
        _
      $region28: #{sqvae_forward.1} parent=11 // pred_fallthru
        _
      // Predicated region
      $region29: #{sqvae_forward.1} parent=11 // pred_check
        %p390 = pneg %p180
      $region30: #{sqvae_forward.1} parent=11 // pred_check_branch
        %392 = sbr.rel (%p390) target = $region32
      $region31: #{sqvae_forward.1} parent=11 // pred_region
        _
      $region32: #{sqvae_forward.1} parent=11 // pred_fallthru
        _
      // Predicated region
      $region33: #{sqvae_forward.1} parent=11 // pred_check
        %p393 = pneg %p201
      $region34: #{sqvae_forward.1} parent=11 // pred_check_branch
        %395 = sbr.rel (%p393) target = $region36
      $region35: #{sqvae_forward.1} parent=11 // pred_region
        _
      $region36: #{sqvae_forward.1} parent=11 // pred_fallthru
        _
      // Predicated region
      $region37: #{sqvae_forward.1} parent=11 // pred_check
        %p396 = pneg %p222
      $region38: #{sqvae_forward.1} parent=11 // pred_check_branch
        %398 = sbr.rel (%p396) target = $region40
      $region39: #{sqvae_forward.1} parent=11 // pred_region
        _
      $region40: #{sqvae_forward.1} parent=11 // pred_fallthru
        _
      // Predicated region
      $region41: #{sqvae_forward.1} parent=11 // pred_check
        %p399 = pneg %p243
      $region42: #{sqvae_forward.1} parent=11 // pred_check_branch
        %401 = sbr.rel (%p399) target = $region44
      $region43: #{sqvae_forward.1} parent=11 // pred_region
        _
      $region44: #{sqvae_forward.1} parent=11 // pred_fallthru
        _
      // Predicated region
      $region45: #{sqvae_forward.1} parent=11 // pred_check
        %p402 = pneg %p264
      $region46: #{sqvae_forward.1} parent=11 // pred_check_branch
        %404 = sbr.rel (%p402) target = $region48
      $region47: #{sqvae_forward.1} parent=11 // pred_region
        _
      $region48: #{sqvae_forward.1} parent=11 // pred_fallthru
        _
      // Predicated region
      $region49: #{sqvae_forward.1} parent=11 // pred_check
        %p405 = pneg %p285
      $region50: #{sqvae_forward.1} parent=11 // pred_check_branch
        %407 = sbr.rel (%p405) target = $region52
      $region51: #{sqvae_forward.1} parent=11 // pred_region
        _
      $region52: #{sqvae_forward.1} parent=11 // pred_fallthru
        _
    $region12: #{sqvae_forward.1} parent=5 // pred_fallthru
      _
    %p408 = scmp.lt.s32.totalorder %s23, 2
    // Predicated region
    $region53: #{sqvae_forward.1} parent=5 // pred_check
      %p409 = pneg %p408
    $region54: #{sqvae_forward.1} parent=5 // pred_check_branch
      %411 = sbr.rel (%p409) target = $region56
    $region55: #{sqvae_forward.1} parent=5 // pred_region
      // Predicated region
      $region57: #{sqvae_forward.1} parent=55 // pred_check
        %p412 = pneg %p85
      $region58: #{sqvae_forward.1} parent=55 // pred_check_branch
        %414 = sbr.rel (%p412) target = $region60
      $region59: #{sqvae_forward.1} parent=55 // pred_region
        %s415 = smul.u32 32, %s23
        %p416 = scmp.lt.s32.totalorder %s415, 63
        %s417 = scalar_select %p416, %s415, 63
        %s418 = smul.addr %s417, 8
        %s419 = scalar_lea.vmem %s2, %s418
        %s420 = smul.u32 32, %s23
      $region60: #{sqvae_forward.1} parent=55 // pred_fallthru
        _
      // Predicated region
      $region61: #{sqvae_forward.1} parent=55 // pred_check
        %p421 = pneg %p111
      $region62: #{sqvae_forward.1} parent=55 // pred_check_branch
        %423 = sbr.rel (%p421) target = $region64
      $region63: #{sqvae_forward.1} parent=55 // pred_region
        %s424 = smul.u32 2, %s23
        %p425 = scmp.lt.s32.totalorder %s424, 3
        %s426 = scalar_select %p425, %s424, 3
        %s427 = smul.addr %s426, 4
        %s428 = scalar_lea.vmem %s3, %s427
        %s429 = smul.u32 2, %s23
      $region64: #{sqvae_forward.1} parent=55 // pred_fallthru
        _
    $region56: #{sqvae_forward.1} parent=5 // pred_fallthru
      _
    %p430 = scmp.le.s32.totalorder 1, %s23
    %p431 = scmp.lt.s32.totalorder %s23, 3
    %p432 = pnand %p430, %p431
    %p433 = pneg %p432
    // Predicated region
    $region65: #{sqvae_forward.1} parent=5 // pred_check
      _
    $region66: #{sqvae_forward.1} parent=5 // pred_check_branch
      %435 = sbr.rel (%p432) target = $region68
    $region67: #{sqvae_forward.1} parent=5 // pred_region
      %s436 = ssub.s32 %s23, 1
      %p437 = pneg %p44
      %p438 = pneg %p41
      %p439 = pneg %p65
      %p440 = pneg %p62
      %s441 = smul.u32 32, %s28
      %p442 = scmp.lt.s32.totalorder %s441, 63
      %s443 = scalar_select %p442, %s441, 63
      %s444 = smul.addr %s443, 8
      %s445 = scalar_lea.vmem %s2, %s444
      %p446 = pneg %p91
      %p447 = pneg %p88
      %s448 = smul.u32 2, %s28
      %p449 = scmp.lt.s32.totalorder %s448, 3
      %s450 = scalar_select %p449, %s448, 3
      %s451 = smul.addr %s450, 4
      %s452 = scalar_lea.vmem %s3, %s451
      %p453 = pneg %p117
      %p454 = pneg %p114
      %p455 = pneg %p138
      %p456 = pneg %p135
      %p457 = pneg %p159
      %p458 = pneg %p156
      %p459 = pneg %p180
      %p460 = pneg %p177
      %p461 = pneg %p201
      %p462 = pneg %p198
      %p463 = pneg %p222
      %p464 = pneg %p219
      %p465 = pneg %p243
      %p466 = pneg %p240
      %p467 = pneg %p264
      %p468 = pneg %p261
      %p469 = pneg %p285
      %p470 = pneg %p282
      %p471 = pneg %p311
      %p472 = pneg %p308
      %s473 = smul.u32 2, %s28
      %p474 = scmp.lt.s32.totalorder %s473, 3
      %s475 = scalar_select %p474, %s473, 3
      %s476 = smul.addr %s475, 4
      %s477 = scalar_lea.vmem %s12, %s476
      %p478 = pneg %p337
      %p479 = pneg %p334
      %p480 = scmp.lt.s32.totalorder %s28, 1
      %s481 = scalar_select %p480, %s28, 1
      %s482 = smul.addr %s481, 2
      %s483 = scalar_lea.vmem %s13, %s482
      %p484 = pneg %p363
      %p485 = pneg %p360
      %p486 = scmp.lt.s32.totalorder %s28, 1
      %s487 = scalar_select %p486, %s28, 1
      %s488 = smul.addr %s487, 8
      %s489 = scalar_lea.vmem %s14, %s488
      %s490 = smul.u32 32, %s28
      %p491 = scmp.lt.s32.totalorder %s490, 63
      %s492 = scalar_select %p491, %s490, 63
      %s493 = smul.addr %s492, 8
      %s494 = scalar_lea.vmem %s2, %s493
      %s495 = smul.u32 32, %s28
      %s496 = smul.u32 2, %s28
      %p497 = scmp.lt.s32.totalorder %s496, 3
      %s498 = scalar_select %p497, %s496, 3
      %s499 = smul.addr %s498, 4
      %s500 = scalar_lea.vmem %s3, %s499
      %s501 = smul.u32 2, %s28
      %s502 = smul.u32 2, %s28
      %p503 = scmp.lt.s32.totalorder %s502, 3
      %s504 = scalar_select %p503, %s502, 3
      %s505 = smul.addr %s504, 4
      %s506 = scalar_lea.vmem %s12, %s505
      %s507 = smul.u32 2, %s28
      %p508 = scmp.lt.s32.totalorder %s28, 1
      %s509 = scalar_select %p508, %s28, 1
      %s510 = smul.addr %s509, 2
      %s511 = scalar_lea.vmem %s13, %s510
      %p512 = scmp.lt.s32.totalorder %s28, 1
      %s513 = scalar_select %p512, %s28, 1
      %s514 = smul.addr %s513, 8
      %s515 = scalar_lea.vmem %s14, %s514
      %s517 = sld [smem:[#allocation2]]
      %s518 = sld [smem:[#allocation3]]
      %v519 = vld [vmem:[%s494] sm:$0xff]
      %v520 = vld [vmem:[%s494 + $0x8] sm:$0xff]
      %v521 = vld [vmem:[%s494 + $0x10] sm:$0xff]
      %v522 = vld [vmem:[%s494 + $0x18] sm:$0xff]
      %v523 = vld [vmem:[%s494 + $0x20] sm:$0xff]
      %v524 = vld [vmem:[%s494 + $0x28] sm:$0xff]
      %v525 = vld [vmem:[%s494 + $0x30] sm:$0xff]
      %v526 = vld [vmem:[%s494 + $0x38] sm:$0xff]
      %v527 = vld [vmem:[%s494 + $0x40] sm:$0xff]
      %v528 = vld [vmem:[%s494 + $0x48] sm:$0xff]
      %v529 = vld [vmem:[%s494 + $0x50] sm:$0xff]
      %v530 = vld [vmem:[%s494 + $0x58] sm:$0xff]
      %v531 = vld [vmem:[%s494 + $0x60] sm:$0xff]
      %v532 = vld [vmem:[%s494 + $0x68] sm:$0xff]
      %v533 = vld [vmem:[%s494 + $0x70] sm:$0xff]
      %v534 = vld [vmem:[%s494 + $0x78] sm:$0xff]
      %v535 = vld [vmem:[%s494 + $0x80] sm:$0xff]
      %v536 = vld [vmem:[%s494 + $0x88] sm:$0xff]
      %v537 = vld [vmem:[%s494 + $0x90] sm:$0xff]
      %v538 = vld [vmem:[%s494 + $0x98] sm:$0xff]
      %v539 = vld [vmem:[%s494 + $0xa0] sm:$0xff]
      %v540 = vld [vmem:[%s494 + $0xa8] sm:$0xff]
      %v541 = vld [vmem:[%s494 + $0xb0] sm:$0xff]
      %v542 = vld [vmem:[%s494 + $0xb8] sm:$0xff]
      %v543 = vld [vmem:[%s494 + $0xc0] sm:$0xff]
      %v544 = vld [vmem:[%s494 + $0xc8] sm:$0xff]
      %v545 = vld [vmem:[%s494 + $0xd0] sm:$0xff]
      %v546 = vld [vmem:[%s494 + $0xd8] sm:$0xff]
      %v547 = vld [vmem:[%s494 + $0xe0] sm:$0xff]
      %v548 = vld [vmem:[%s494 + $0xe8] sm:$0xff]
      %v549 = vld [vmem:[%s494 + $0xf0] sm:$0xff]
      %v550 = vld [vmem:[%s494 + $0xf8] sm:$0xff]
      %v551 = vpack.c.bf16 %v520, %v519
      %v552 = vpack.c.bf16 %v522, %v521
      %v553 = vpack.c.bf16 %v524, %v523
      %v554 = vpack.c.bf16 %v526, %v525
      %v555 = vpack.c.bf16 %v528, %v527
      %v556 = vpack.c.bf16 %v530, %v529
      %v557 = vpack.c.bf16 %v532, %v531
      %v558 = vpack.c.bf16 %v534, %v533
      %v559 = vpack.c.bf16 %v536, %v535
      %v560 = vpack.c.bf16 %v538, %v537
      %v561 = vpack.c.bf16 %v540, %v539
      %v562 = vpack.c.bf16 %v542, %v541
      %v563 = vpack.c.bf16 %v544, %v543
      %v564 = vpack.c.bf16 %v546, %v545
      %v565 = vpack.c.bf16 %v548, %v547
      %v566 = vpack.c.bf16 %v550, %v549
      %v567 = vld [vmem:[%s4] sm:$0x3]
      %v568 = vld [vmem:[%s5] sm:$0x1]
      %v570 = vlaneseq
      %v571 = vshrl.u32 %v570, 7
      %v572 = vsub.s32 0, %v571
      %v573 = vrot.slane %v568, %v572
      %vm575 = vcmask 31744
      %v577 = vsel %vm575, %v551, 0
      %v580 = vsel %vm575, %v552, 0
      %v583 = vsel %vm575, %v553, 0
      %v586 = vsel %vm575, %v554, 0
      %v589 = vsel %vm575, %v555, 0
      %v592 = vsel %vm575, %v556, 0
      %v595 = vsel %vm575, %v557, 0
      %v598 = vsel %vm575, %v558, 0
      %v601 = vsel %vm575, %v559, 0
      %v604 = vsel %vm575, %v560, 0
      %v607 = vsel %vm575, %v561, 0
      %v610 = vsel %vm575, %v562, 0
      %v613 = vsel %vm575, %v563, 0
      %v616 = vsel %vm575, %v564, 0
      %v619 = vsel %vm575, %v565, 0
      %v622 = vsel %vm575, %v566, 0
      %vm624 = vcmask 1041408
      %v626 = vsel %vm624, %v567, 0
      %628 = vmatprep.subr.bf16.mxu0 0
      %629 = vmatpush1.bf16.msra.mxu0 0
      %630 = vmatprep.subr.bf16.mxu0 0
      %631 = vmatpush1.bf16.msra.mxu0 0
      %632 = vmatprep.subr.bf16.mxu0 0
      %633 = vmatpush1.bf16.msra.mxu0 0
      %634 = vmatprep.subr.bf16.mxu0 0
      %635 = vmatpush1.bf16.msra.mxu0 0
      %636 = vmatprep.subr.bf16.mxu0 0
      %637 = vmatpush1.bf16.msra.mxu0 0
      %638 = vmatprep.subr.bf16.mxu0 0
      %639 = vmatpush1.bf16.msra.mxu0 0
      %640 = vmatprep.subr.bf16.mxu0 0
      %641 = vmatpush1.bf16.msra.mxu0 0
      %642 = vmatprep.subr.bf16.mxu0 0
      %643 = vmatpush1.bf16.msra.mxu0 %v626
      %644 = vmatprep.subr.bf16.mxu0 0
      %645 = vmatpush2.bf16.msra.mxu0 0
      %646 = vmatprep.subr.bf16.mxu0 0
      %647 = vmatpush2.bf16.msra.mxu0 0
      %648 = vmatprep.subr.bf16.mxu0 0
      %649 = vmatpush2.bf16.msra.mxu0 0
      %650 = vmatprep.subr.bf16.mxu0 0
      %651 = vmatpush2.bf16.msra.mxu0 0
      %652 = vmatprep.subr.bf16.mxu0 0
      %653 = vmatpush2.bf16.msra.mxu0 0
      %654 = vmatprep.subr.bf16.mxu0 0
      %655 = vmatpush2.bf16.msra.mxu0 0
      %656 = vmatprep.subr.bf16.mxu0 0
      %657 = vmatpush2.bf16.msra.mxu0 0
      %658 = vmatprep.subr.bf16.mxu0 0
      %659 = vmatpush2.bf16.msra.mxu0 0
      %660 = vmatprep.mubr.bf16.mxu0 0
      %661 = vmatmul.mubr.bf16.gmra.mxu0 %v577
      %v662 = vpop.f32.mrf.mxu0
      %v663 = vadd.f32 %v573, %v662
      %v664 = vpop.f32.mrf.mxu0
      %v665 = vpop.f32.mrf.mxu0
      %v666 = vadd.f32 %v573, %v665
      %v667 = vpop.f32.mrf.mxu0
      %668 = vmatprep.mubr.bf16.mxu0 0
      %669 = vmatmul.mubr.bf16.gmra.mxu0 %v580
      %v670 = vpop.f32.mrf.mxu0
      %v671 = vadd.f32 %v573, %v670
      %v672 = vpop.f32.mrf.mxu0
      %v673 = vpop.f32.mrf.mxu0
      %v674 = vadd.f32 %v573, %v673
      %v675 = vpop.f32.mrf.mxu0
      %676 = vmatprep.mubr.bf16.mxu0 0
      %677 = vmatmul.mubr.bf16.gmra.mxu0 %v583
      %v678 = vpop.f32.mrf.mxu0
      %v679 = vadd.f32 %v573, %v678
      %v680 = vpop.f32.mrf.mxu0
      %v681 = vpop.f32.mrf.mxu0
      %v682 = vadd.f32 %v573, %v681
      %v683 = vpop.f32.mrf.mxu0
      %684 = vmatprep.mubr.bf16.mxu0 0
      %685 = vmatmul.mubr.bf16.gmra.mxu0 %v586
      %v686 = vpop.f32.mrf.mxu0
      %v687 = vadd.f32 %v573, %v686
      %v688 = vpop.f32.mrf.mxu0
      %v689 = vpop.f32.mrf.mxu0
      %v690 = vadd.f32 %v573, %v689
      %v691 = vpop.f32.mrf.mxu0
      %692 = vmatprep.mubr.bf16.mxu0 0
      %693 = vmatmul.mubr.bf16.gmra.mxu0 %v589
      %v694 = vpop.f32.mrf.mxu0
      %v695 = vadd.f32 %v573, %v694
      %v696 = vpop.f32.mrf.mxu0
      %v697 = vpop.f32.mrf.mxu0
      %v698 = vadd.f32 %v573, %v697
      %v699 = vpop.f32.mrf.mxu0
      %700 = vmatprep.mubr.bf16.mxu0 0
      %701 = vmatmul.mubr.bf16.gmra.mxu0 %v592
      %v702 = vpop.f32.mrf.mxu0
      %v703 = vadd.f32 %v573, %v702
      %v704 = vpop.f32.mrf.mxu0
      %v705 = vpop.f32.mrf.mxu0
      %v706 = vadd.f32 %v573, %v705
      %v707 = vpop.f32.mrf.mxu0
      %708 = vmatprep.mubr.bf16.mxu0 0
      %709 = vmatmul.mubr.bf16.gmra.mxu0 %v595
      %v710 = vpop.f32.mrf.mxu0
      %v711 = vadd.f32 %v573, %v710
      %v712 = vpop.f32.mrf.mxu0
      %v713 = vpop.f32.mrf.mxu0
      %v714 = vadd.f32 %v573, %v713
      %v715 = vpop.f32.mrf.mxu0
      %716 = vmatprep.mubr.bf16.mxu0 0
      %717 = vmatmul.mubr.bf16.gmra.mxu0 %v598
      %v718 = vpop.f32.mrf.mxu0
      %v719 = vadd.f32 %v573, %v718
      %v720 = vpop.f32.mrf.mxu0
      %v721 = vpop.f32.mrf.mxu0
      %v722 = vadd.f32 %v573, %v721
      %v723 = vpop.f32.mrf.mxu0
      %724 = vmatprep.mubr.bf16.mxu0 0
      %725 = vmatmul.mubr.bf16.gmra.mxu0 %v601
      %v726 = vpop.f32.mrf.mxu0
      %v727 = vadd.f32 %v573, %v726
      %v728 = vpop.f32.mrf.mxu0
      %v729 = vpop.f32.mrf.mxu0
      %v730 = vadd.f32 %v573, %v729
      %v731 = vpop.f32.mrf.mxu0
      %732 = vmatprep.mubr.bf16.mxu0 0
      %733 = vmatmul.mubr.bf16.gmra.mxu0 %v604
      %v734 = vpop.f32.mrf.mxu0
      %v735 = vadd.f32 %v573, %v734
      %v736 = vpop.f32.mrf.mxu0
      %v737 = vpop.f32.mrf.mxu0
      %v738 = vadd.f32 %v573, %v737
      %v739 = vpop.f32.mrf.mxu0
      %740 = vmatprep.mubr.bf16.mxu0 0
      %741 = vmatmul.mubr.bf16.gmra.mxu0 %v607
      %v742 = vpop.f32.mrf.mxu0
      %v743 = vadd.f32 %v573, %v742
      %v744 = vpop.f32.mrf.mxu0
      %v745 = vpop.f32.mrf.mxu0
      %v746 = vadd.f32 %v573, %v745
      %v747 = vpop.f32.mrf.mxu0
      %748 = vmatprep.mubr.bf16.mxu0 0
      %749 = vmatmul.mubr.bf16.gmra.mxu0 %v610
      %v750 = vpop.f32.mrf.mxu0
      %v751 = vadd.f32 %v573, %v750
      %v752 = vpop.f32.mrf.mxu0
      %v753 = vpop.f32.mrf.mxu0
      %v754 = vadd.f32 %v573, %v753
      %v755 = vpop.f32.mrf.mxu0
      %756 = vmatprep.mubr.bf16.mxu0 0
      %757 = vmatmul.mubr.bf16.gmra.mxu0 %v613
      %v758 = vpop.f32.mrf.mxu0
      %v759 = vadd.f32 %v573, %v758
      %v760 = vpop.f32.mrf.mxu0
      %v761 = vpop.f32.mrf.mxu0
      %v762 = vadd.f32 %v573, %v761
      %v763 = vpop.f32.mrf.mxu0
      %764 = vmatprep.mubr.bf16.mxu0 0
      %765 = vmatmul.mubr.bf16.gmra.mxu0 %v616
      %v766 = vpop.f32.mrf.mxu0
      %v767 = vadd.f32 %v573, %v766
      %v768 = vpop.f32.mrf.mxu0
      %v769 = vpop.f32.mrf.mxu0
      %v770 = vadd.f32 %v573, %v769
      %v771 = vpop.f32.mrf.mxu0
      %772 = vmatprep.mubr.bf16.mxu0 0
      %773 = vmatmul.mubr.bf16.gmra.mxu0 %v619
      %v774 = vpop.f32.mrf.mxu0
      %v775 = vadd.f32 %v573, %v774
      %v776 = vpop.f32.mrf.mxu0
      %v777 = vpop.f32.mrf.mxu0
      %v778 = vadd.f32 %v573, %v777
      %v779 = vpop.f32.mrf.mxu0
      %780 = vmatprep.mubr.bf16.mxu0 0
      %781 = vmatmul.mubr.bf16.gmra.mxu0 %v622
      %v782 = vpop.f32.mrf.mxu0
      %v783 = vadd.f32 %v573, %v782
      %v784 = vpop.f32.mrf.mxu0
      %v785 = vpop.f32.mrf.mxu0
      %v786 = vadd.f32 %v573, %v785
      %v787 = vpop.f32.mrf.mxu0
      %788 = vdwg.mxu0
      %v789 = vmax.f32 %v663, 0.0
      %v790 = vmax.f32 %v666, 0.0
      %v791 = vmax.f32 %v671, 0.0
      %v792 = vmax.f32 %v674, 0.0
      %v793 = vmax.f32 %v679, 0.0
      %v794 = vmax.f32 %v682, 0.0
      %v795 = vmax.f32 %v687, 0.0
      %v796 = vmax.f32 %v690, 0.0
      %v797 = vmax.f32 %v695, 0.0
      %v798 = vmax.f32 %v698, 0.0
      %v799 = vmax.f32 %v703, 0.0
      %v800 = vmax.f32 %v706, 0.0
      %v801 = vmax.f32 %v711, 0.0
      %v802 = vmax.f32 %v714, 0.0
      %v803 = vmax.f32 %v719, 0.0
      %v804 = vmax.f32 %v722, 0.0
      %v805 = vmax.f32 %v727, 0.0
      %v806 = vmax.f32 %v730, 0.0
      %v807 = vmax.f32 %v735, 0.0
      %v808 = vmax.f32 %v738, 0.0
      %v809 = vmax.f32 %v743, 0.0
      %v810 = vmax.f32 %v746, 0.0
      %v811 = vmax.f32 %v751, 0.0
      %v812 = vmax.f32 %v754, 0.0
      %v813 = vmax.f32 %v759, 0.0
      %v814 = vmax.f32 %v762, 0.0
      %v815 = vmax.f32 %v767, 0.0
      %v816 = vmax.f32 %v770, 0.0
      %v817 = vmax.f32 %v775, 0.0
      %v818 = vmax.f32 %v778, 0.0
      %v819 = vmax.f32 %v783, 0.0
      %v820 = vmax.f32 %v786, 0.0
      %v821 = vpack.c.bf16 %v790, %v789
      %v822 = vpack.c.bf16 %v792, %v791
      %v823 = vpack.c.bf16 %v794, %v793
      %v824 = vpack.c.bf16 %v796, %v795
      %v825 = vpack.c.bf16 %v798, %v797
      %v826 = vpack.c.bf16 %v800, %v799
      %v827 = vpack.c.bf16 %v802, %v801
      %v828 = vpack.c.bf16 %v804, %v803
      %v829 = vpack.c.bf16 %v806, %v805
      %v830 = vpack.c.bf16 %v808, %v807
      %v831 = vpack.c.bf16 %v810, %v809
      %v832 = vpack.c.bf16 %v812, %v811
      %v833 = vpack.c.bf16 %v814, %v813
      %v834 = vpack.c.bf16 %v816, %v815
      %v835 = vpack.c.bf16 %v818, %v817
      %v836 = vpack.c.bf16 %v820, %v819
      %v837 = vld [vmem:[%s6] sm:$0xf]
      %v838 = vld [vmem:[%s6 + $0x4] sm:$0xf]
      %v839 = vld [vmem:[%s6 + $0x8] sm:$0xf]
      %v840 = vld [vmem:[%s6 + $0xc] sm:$0xf]
      %v841 = vld [vmem:[%s6 + $0x10] sm:$0xf]
      %v842 = vld [vmem:[%s6 + $0x14] sm:$0xf]
      %v843 = vld [vmem:[%s6 + $0x18] sm:$0xf]
      %v844 = vld [vmem:[%s6 + $0x1c] sm:$0xf]
      %v845 = vld [vmem:[%s6 + $0x20] sm:$0xf]
      %v846 = vld [vmem:[%s6 + $0x24] sm:$0xf]
      %v847 = vld [vmem:[%s6 + $0x28] sm:$0xf]
      %v848 = vld [vmem:[%s6 + $0x2c] sm:$0xf]
      %v849 = vld [vmem:[%s6 + $0x30] sm:$0xf]
      %v850 = vld [vmem:[%s6 + $0x34] sm:$0xf]
      %v851 = vld [vmem:[%s6 + $0x38] sm:$0xf]
      %v852 = vld [vmem:[%s6 + $0x3c] sm:$0xf]
      %v853 = vld [vmem:[%s7] sm:$0x1]
      %v855 = vlaneseq
      %v856 = vshrl.u32 %v855, 7
      %v857 = vsub.s32 0, %v856
      %v858 = vrot.slane %v853, %v857
      %v876 = vunpack.c.l.b16 %v837
      %v877 = vunpack.c.l.b16 %v838
      %v878 = vunpack.c.l.b16 %v839
      %v879 = vunpack.c.l.b16 %v840
      %v880 = vunpack.c.l.b16 %v841
      %v881 = vunpack.c.l.b16 %v842
      %v882 = vunpack.c.l.b16 %v843
      %v883 = vunpack.c.l.b16 %v844
      %v884 = vunpack.c.l.b16 %v845
      %v885 = vunpack.c.l.b16 %v846
      %v886 = vunpack.c.l.b16 %v847
      %v887 = vunpack.c.l.b16 %v848
      %v888 = vunpack.c.l.b16 %v849
      %v889 = vunpack.c.l.b16 %v850
      %v890 = vunpack.c.l.b16 %v851
      %v891 = vunpack.c.l.b16 %v852
      %v892 = vpack.c.b16 %v877, %v876
      %v893 = vpack.c.b16 %v879, %v878
      %v894 = vpack.c.b16 %v881, %v880
      %v895 = vpack.c.b16 %v883, %v882
      %v896 = vpack.c.b16 %v885, %v884
      %v897 = vpack.c.b16 %v887, %v886
      %v898 = vpack.c.b16 %v889, %v888
      %v899 = vpack.c.b16 %v891, %v890
      %908 = vmatprep.subr.bf16.mxu0 0
      %909 = vmatpush1.bf16.msra.mxu0 %v899
      %910 = vmatprep.subr.bf16.mxu0 0
      %911 = vmatpush1.bf16.msra.mxu0 %v898
      %912 = vmatprep.subr.bf16.mxu0 0
      %913 = vmatpush1.bf16.msra.mxu0 %v897
      %914 = vmatprep.subr.bf16.mxu0 0
      %915 = vmatpush1.bf16.msra.mxu0 %v896
      %916 = vmatprep.subr.bf16.mxu0 0
      %917 = vmatpush1.bf16.msra.mxu0 %v895
      %918 = vmatprep.subr.bf16.mxu0 0
      %919 = vmatpush1.bf16.msra.mxu0 %v894
      %920 = vmatprep.subr.bf16.mxu0 0
      %921 = vmatpush1.bf16.msra.mxu0 %v893
      %922 = vmatprep.subr.bf16.mxu0 0
      %923 = vmatpush1.bf16.msra.mxu0 %v892
      %924 = vmatprep.subr.bf16.mxu0 0
      %925 = vmatpush2.bf16.msra.mxu0 0
      %926 = vmatprep.subr.bf16.mxu0 0
      %927 = vmatpush2.bf16.msra.mxu0 0
      %928 = vmatprep.subr.bf16.mxu0 0
      %929 = vmatpush2.bf16.msra.mxu0 0
      %930 = vmatprep.subr.bf16.mxu0 0
      %931 = vmatpush2.bf16.msra.mxu0 0
      %932 = vmatprep.subr.bf16.mxu0 0
      %933 = vmatpush2.bf16.msra.mxu0 0
      %934 = vmatprep.subr.bf16.mxu0 0
      %935 = vmatpush2.bf16.msra.mxu0 0
      %936 = vmatprep.subr.bf16.mxu0 0
      %937 = vmatpush2.bf16.msra.mxu0 0
      %938 = vmatprep.subr.bf16.mxu0 0
      %939 = vmatpush2.bf16.msra.mxu0 0
      %940 = vmatprep.mubr.bf16.mxu0 0
      %941 = vmatmul.mubr.bf16.gmra.mxu0 %v821
      %v942 = vpop.f32.mrf.mxu0
      %v943 = vadd.f32 %v858, %v942
      %v944 = vpop.f32.mrf.mxu0
      %v945 = vpop.f32.mrf.mxu0
      %v946 = vadd.f32 %v858, %v945
      %v947 = vpop.f32.mrf.mxu0
      %948 = vmatprep.mubr.bf16.mxu0 0
      %949 = vmatmul.mubr.bf16.gmra.mxu0 %v822
      %v950 = vpop.f32.mrf.mxu0
      %v951 = vadd.f32 %v858, %v950
      %v952 = vpop.f32.mrf.mxu0
      %v953 = vpop.f32.mrf.mxu0
      %v954 = vadd.f32 %v858, %v953
      %v955 = vpop.f32.mrf.mxu0
      %956 = vmatprep.mubr.bf16.mxu0 0
      %957 = vmatmul.mubr.bf16.gmra.mxu0 %v823
      %v958 = vpop.f32.mrf.mxu0
      %v959 = vadd.f32 %v858, %v958
      %v960 = vpop.f32.mrf.mxu0
      %v961 = vpop.f32.mrf.mxu0
      %v962 = vadd.f32 %v858, %v961
      %v963 = vpop.f32.mrf.mxu0
      %964 = vmatprep.mubr.bf16.mxu0 0
      %965 = vmatmul.mubr.bf16.gmra.mxu0 %v824
      %v966 = vpop.f32.mrf.mxu0
      %v967 = vadd.f32 %v858, %v966
      %v968 = vpop.f32.mrf.mxu0
      %v969 = vpop.f32.mrf.mxu0
      %v970 = vadd.f32 %v858, %v969
      %v971 = vpop.f32.mrf.mxu0
      %972 = vmatprep.mubr.bf16.mxu0 0
      %973 = vmatmul.mubr.bf16.gmra.mxu0 %v825
      %v974 = vpop.f32.mrf.mxu0
      %v975 = vadd.f32 %v858, %v974
      %v976 = vpop.f32.mrf.mxu0
      %v977 = vpop.f32.mrf.mxu0
      %v978 = vadd.f32 %v858, %v977
      %v979 = vpop.f32.mrf.mxu0
      %980 = vmatprep.mubr.bf16.mxu0 0
      %981 = vmatmul.mubr.bf16.gmra.mxu0 %v826
      %v982 = vpop.f32.mrf.mxu0
      %v983 = vadd.f32 %v858, %v982
      %v984 = vpop.f32.mrf.mxu0
      %v985 = vpop.f32.mrf.mxu0
      %v986 = vadd.f32 %v858, %v985
      %v987 = vpop.f32.mrf.mxu0
      %988 = vmatprep.mubr.bf16.mxu0 0
      %989 = vmatmul.mubr.bf16.gmra.mxu0 %v827
      %v990 = vpop.f32.mrf.mxu0
      %v991 = vadd.f32 %v858, %v990
      %v992 = vpop.f32.mrf.mxu0
      %v993 = vpop.f32.mrf.mxu0
      %v994 = vadd.f32 %v858, %v993
      %v995 = vpop.f32.mrf.mxu0
      %996 = vmatprep.mubr.bf16.mxu0 0
      %997 = vmatmul.mubr.bf16.gmra.mxu0 %v828
      %v998 = vpop.f32.mrf.mxu0
      %v999 = vadd.f32 %v858, %v998
      %v1000 = vpop.f32.mrf.mxu0
      %v1001 = vpop.f32.mrf.mxu0
      %v1002 = vadd.f32 %v858, %v1001
      %v1003 = vpop.f32.mrf.mxu0
      %1004 = vmatprep.mubr.bf16.mxu0 0
      %1005 = vmatmul.mubr.bf16.gmra.mxu0 %v829
      %v1006 = vpop.f32.mrf.mxu0
      %v1007 = vadd.f32 %v858, %v1006
      %v1008 = vpop.f32.mrf.mxu0
      %v1009 = vpop.f32.mrf.mxu0
      %v1010 = vadd.f32 %v858, %v1009
      %v1011 = vpop.f32.mrf.mxu0
      %1012 = vmatprep.mubr.bf16.mxu0 0
      %1013 = vmatmul.mubr.bf16.gmra.mxu0 %v830
      %v1014 = vpop.f32.mrf.mxu0
      %v1015 = vadd.f32 %v858, %v1014
      %v1016 = vpop.f32.mrf.mxu0
      %v1017 = vpop.f32.mrf.mxu0
      %v1018 = vadd.f32 %v858, %v1017
      %v1019 = vpop.f32.mrf.mxu0
      %1020 = vmatprep.mubr.bf16.mxu0 0
      %1021 = vmatmul.mubr.bf16.gmra.mxu0 %v831
      %v1022 = vpop.f32.mrf.mxu0
      %v1023 = vadd.f32 %v858, %v1022
      %v1024 = vpop.f32.mrf.mxu0
      %v1025 = vpop.f32.mrf.mxu0
      %v1026 = vadd.f32 %v858, %v1025
      %v1027 = vpop.f32.mrf.mxu0
      %1028 = vmatprep.mubr.bf16.mxu0 0
      %1029 = vmatmul.mubr.bf16.gmra.mxu0 %v832
      %v1030 = vpop.f32.mrf.mxu0
      %v1031 = vadd.f32 %v858, %v1030
      %v1032 = vpop.f32.mrf.mxu0
      %v1033 = vpop.f32.mrf.mxu0
      %v1034 = vadd.f32 %v858, %v1033
      %v1035 = vpop.f32.mrf.mxu0
      %1036 = vmatprep.mubr.bf16.mxu0 0
      %1037 = vmatmul.mubr.bf16.gmra.mxu0 %v833
      %v1038 = vpop.f32.mrf.mxu0
      %v1039 = vadd.f32 %v858, %v1038
      %v1040 = vpop.f32.mrf.mxu0
      %v1041 = vpop.f32.mrf.mxu0
      %v1042 = vadd.f32 %v858, %v1041
      %v1043 = vpop.f32.mrf.mxu0
      %1044 = vmatprep.mubr.bf16.mxu0 0
      %1045 = vmatmul.mubr.bf16.gmra.mxu0 %v834
      %v1046 = vpop.f32.mrf.mxu0
      %v1047 = vadd.f32 %v858, %v1046
      %v1048 = vpop.f32.mrf.mxu0
      %v1049 = vpop.f32.mrf.mxu0
      %v1050 = vadd.f32 %v858, %v1049
      %v1051 = vpop.f32.mrf.mxu0
      %1052 = vmatprep.mubr.bf16.mxu0 0
      %1053 = vmatmul.mubr.bf16.gmra.mxu0 %v835
      %v1054 = vpop.f32.mrf.mxu0
      %v1055 = vadd.f32 %v858, %v1054
      %v1056 = vpop.f32.mrf.mxu0
      %v1057 = vpop.f32.mrf.mxu0
      %v1058 = vadd.f32 %v858, %v1057
      %v1059 = vpop.f32.mrf.mxu0
      %1060 = vmatprep.mubr.bf16.mxu0 0
      %1061 = vmatmul.mubr.bf16.gmra.mxu0 %v836
      %v1062 = vpop.f32.mrf.mxu0
      %v1063 = vadd.f32 %v858, %v1062
      %v1064 = vpop.f32.mrf.mxu0
      %v1065 = vpop.f32.mrf.mxu0
      %v1066 = vadd.f32 %v858, %v1065
      %v1067 = vpop.f32.mrf.mxu0
      %1068 = vdwg.mxu0
      %v1069 = vmul.f32 %v943, %v943
      %v1070 = vmul.f32 %v946, %v946
      %v1071 = vmul.f32 %v951, %v951
      %v1072 = vmul.f32 %v954, %v954
      %v1073 = vmul.f32 %v959, %v959
      %v1074 = vmul.f32 %v962, %v962
      %v1075 = vmul.f32 %v967, %v967
      %v1076 = vmul.f32 %v970, %v970
      %v1077 = vmul.f32 %v975, %v975
      %v1078 = vmul.f32 %v978, %v978
      %v1079 = vmul.f32 %v983, %v983
      %v1080 = vmul.f32 %v986, %v986
      %v1081 = vmul.f32 %v991, %v991
      %v1082 = vmul.f32 %v994, %v994
      %v1083 = vmul.f32 %v999, %v999
      %v1084 = vmul.f32 %v1002, %v1002
      %v1085 = vmul.f32 %v1007, %v1007
      %v1086 = vmul.f32 %v1010, %v1010
      %v1087 = vmul.f32 %v1015, %v1015
      %v1088 = vmul.f32 %v1018, %v1018
      %v1089 = vmul.f32 %v1023, %v1023
      %v1090 = vmul.f32 %v1026, %v1026
      %v1091 = vmul.f32 %v1031, %v1031
      %v1092 = vmul.f32 %v1034, %v1034
      %v1093 = vmul.f32 %v1039, %v1039
      %v1094 = vmul.f32 %v1042, %v1042
      %v1095 = vmul.f32 %v1047, %v1047
      %v1096 = vmul.f32 %v1050, %v1050
      %v1097 = vmul.f32 %v1055, %v1055
      %v1098 = vmul.f32 %v1058, %v1058
      %v1099 = vmul.f32 %v1063, %v1063
      %v1100 = vmul.f32 %v1066, %v1066
      %vm1101 = vcmask 523264
      %v1102 = vsel %vm1101, %v1069, 0.0
      %1103 = vadd.xlane.f32.xlu0 %v1102
      %v1104 = vpop.xlane.xlu0 %1103
      %v1105 = vsel %vm1101, %v1070, 0.0
      %1106 = vadd.xlane.f32.xlu0 %v1105
      %v1107 = vpop.xlane.xlu0 %1106
      %v1108 = vsel %vm1101, %v1071, 0.0
      %1109 = vadd.xlane.f32.xlu0 %v1108
      %v1110 = vpop.xlane.xlu0 %1109
      %v1111 = vsel %vm1101, %v1072, 0.0
      %1112 = vadd.xlane.f32.xlu0 %v1111
      %v1113 = vpop.xlane.xlu0 %1112
      %v1114 = vsel %vm1101, %v1073, 0.0
      %1115 = vadd.xlane.f32.xlu0 %v1114
      %v1116 = vpop.xlane.xlu0 %1115
      %v1117 = vsel %vm1101, %v1074, 0.0
      %1118 = vadd.xlane.f32.xlu0 %v1117
      %v1119 = vpop.xlane.xlu0 %1118
      %v1120 = vsel %vm1101, %v1075, 0.0
      %1121 = vadd.xlane.f32.xlu0 %v1120
      %v1122 = vpop.xlane.xlu0 %1121
      %v1123 = vsel %vm1101, %v1076, 0.0
      %1124 = vadd.xlane.f32.xlu0 %v1123
      %v1125 = vpop.xlane.xlu0 %1124
      %v1126 = vsel %vm1101, %v1077, 0.0
      %1127 = vadd.xlane.f32.xlu0 %v1126
      %v1128 = vpop.xlane.xlu0 %1127
      %v1129 = vsel %vm1101, %v1078, 0.0
      %1130 = vadd.xlane.f32.xlu0 %v1129
      %v1131 = vpop.xlane.xlu0 %1130
      %v1132 = vsel %vm1101, %v1079, 0.0
      %1133 = vadd.xlane.f32.xlu0 %v1132
      %v1134 = vpop.xlane.xlu0 %1133
      %v1135 = vsel %vm1101, %v1080, 0.0
      %1136 = vadd.xlane.f32.xlu0 %v1135
      %v1137 = vpop.xlane.xlu0 %1136
      %v1138 = vsel %vm1101, %v1081, 0.0
      %1139 = vadd.xlane.f32.xlu0 %v1138
      %v1140 = vpop.xlane.xlu0 %1139
      %v1141 = vsel %vm1101, %v1082, 0.0
      %1142 = vadd.xlane.f32.xlu0 %v1141
      %v1143 = vpop.xlane.xlu0 %1142
      %v1144 = vsel %vm1101, %v1083, 0.0
      %1145 = vadd.xlane.f32.xlu0 %v1144
      %v1146 = vpop.xlane.xlu0 %1145
      %v1147 = vsel %vm1101, %v1084, 0.0
      %1148 = vadd.xlane.f32.xlu0 %v1147
      %v1149 = vpop.xlane.xlu0 %1148
      %v1150 = vsel %vm1101, %v1085, 0.0
      %1151 = vadd.xlane.f32.xlu0 %v1150
      %v1152 = vpop.xlane.xlu0 %1151
      %v1153 = vsel %vm1101, %v1086, 0.0
      %1154 = vadd.xlane.f32.xlu0 %v1153
      %v1155 = vpop.xlane.xlu0 %1154
      %v1156 = vsel %vm1101, %v1087, 0.0
      %1157 = vadd.xlane.f32.xlu0 %v1156
      %v1158 = vpop.xlane.xlu0 %1157
      %v1159 = vsel %vm1101, %v1088, 0.0
      %1160 = vadd.xlane.f32.xlu0 %v1159
      %v1161 = vpop.xlane.xlu0 %1160
      %v1162 = vsel %vm1101, %v1089, 0.0
      %1163 = vadd.xlane.f32.xlu0 %v1162
      %v1164 = vpop.xlane.xlu0 %1163
      %v1165 = vsel %vm1101, %v1090, 0.0
      %1166 = vadd.xlane.f32.xlu0 %v1165
      %v1167 = vpop.xlane.xlu0 %1166
      %v1168 = vsel %vm1101, %v1091, 0.0
      %1169 = vadd.xlane.f32.xlu0 %v1168
      %v1170 = vpop.xlane.xlu0 %1169
      %v1171 = vsel %vm1101, %v1092, 0.0
      %1172 = vadd.xlane.f32.xlu0 %v1171
      %v1173 = vpop.xlane.xlu0 %1172
      %v1174 = vsel %vm1101, %v1093, 0.0
      %1175 = vadd.xlane.f32.xlu0 %v1174
      %v1176 = vpop.xlane.xlu0 %1175
      %v1177 = vsel %vm1101, %v1094, 0.0
      %1178 = vadd.xlane.f32.xlu0 %v1177
      %v1179 = vpop.xlane.xlu0 %1178
      %v1180 = vsel %vm1101, %v1095, 0.0
      %1181 = vadd.xlane.f32.xlu0 %v1180
      %v1182 = vpop.xlane.xlu0 %1181
      %v1183 = vsel %vm1101, %v1096, 0.0
      %1184 = vadd.xlane.f32.xlu0 %v1183
      %v1185 = vpop.xlane.xlu0 %1184
      %v1186 = vsel %vm1101, %v1097, 0.0
      %1187 = vadd.xlane.f32.xlu0 %v1186
      %v1188 = vpop.xlane.xlu0 %1187
      %v1189 = vsel %vm1101, %v1098, 0.0
      %1190 = vadd.xlane.f32.xlu0 %v1189
      %v1191 = vpop.xlane.xlu0 %1190
      %v1192 = vsel %vm1101, %v1099, 0.0
      %1193 = vadd.xlane.f32.xlu0 %v1192
      %v1194 = vpop.xlane.xlu0 %1193
      %v1195 = vsel %vm1101, %v1100, 0.0
      %1196 = vadd.xlane.f32.xlu0 %v1195
      %v1197 = vpop.xlane.xlu0 %1196
      %v1198 = vstv %s517
      %v1199 = vmul.f32 %v1198, %v1104
      %v1200 = vmul.f32 %v1198, %v1107
      %v1201 = vmul.f32 %v1198, %v1110
      %v1202 = vmul.f32 %v1198, %v1113
      %v1203 = vmul.f32 %v1198, %v1116
      %v1204 = vmul.f32 %v1198, %v1119
      %v1205 = vmul.f32 %v1198, %v1122
      %v1206 = vmul.f32 %v1198, %v1125
      %v1207 = vmul.f32 %v1198, %v1128
      %v1208 = vmul.f32 %v1198, %v1131
      %v1209 = vmul.f32 %v1198, %v1134
      %v1210 = vmul.f32 %v1198, %v1137
      %v1211 = vmul.f32 %v1198, %v1140
      %v1212 = vmul.f32 %v1198, %v1143
      %v1213 = vmul.f32 %v1198, %v1146
      %v1214 = vmul.f32 %v1198, %v1149
      %v1215 = vmul.f32 %v1198, %v1152
      %v1216 = vmul.f32 %v1198, %v1155
      %v1217 = vmul.f32 %v1198, %v1158
      %v1218 = vmul.f32 %v1198, %v1161
      %v1219 = vmul.f32 %v1198, %v1164
      %v1220 = vmul.f32 %v1198, %v1167
      %v1221 = vmul.f32 %v1198, %v1170
      %v1222 = vmul.f32 %v1198, %v1173
      %v1223 = vmul.f32 %v1198, %v1176
      %v1224 = vmul.f32 %v1198, %v1179
      %v1225 = vmul.f32 %v1198, %v1182
      %v1226 = vmul.f32 %v1198, %v1185
      %v1227 = vmul.f32 %v1198, %v1188
      %v1228 = vmul.f32 %v1198, %v1191
      %v1229 = vmul.f32 %v1198, %v1194
      %v1230 = vmul.f32 %v1198, %v1197
      %v1231 = vld [vmem:[%s8] sm:$0xf]
      %v1232 = vld [vmem:[%s8 + $0x4] sm:$0xf]
      %v1233 = vld [vmem:[%s8 + $0x8] sm:$0xf]
      %v1234 = vld [vmem:[%s8 + $0xc] sm:$0xf]
      %v1235 = vld [vmem:[%s8 + $0x10] sm:$0xf]
      %v1236 = vld [vmem:[%s8 + $0x14] sm:$0xf]
      %v1237 = vld [vmem:[%s8 + $0x18] sm:$0xf]
      %v1238 = vld [vmem:[%s8 + $0x1c] sm:$0xf]
      %v1239 = vld [vmem:[%s8 + $0x20] sm:$0xf]
      %v1240 = vld [vmem:[%s8 + $0x24] sm:$0xf]
      %v1241 = vld [vmem:[%s8 + $0x28] sm:$0xf]
      %v1242 = vld [vmem:[%s8 + $0x2c] sm:$0xf]
      %v1243 = vld [vmem:[%s8 + $0x30] sm:$0xf]
      %v1244 = vld [vmem:[%s8 + $0x34] sm:$0xf]
      %v1245 = vld [vmem:[%s8 + $0x38] sm:$0xf]
      %v1246 = vld [vmem:[%s8 + $0x3c] sm:$0xf]
      %v1247 = vld [vmem:[%s9] sm:$0x1]
      %v1249 = vlaneseq
      %v1250 = vshrl.u32 %v1249, 7
      %v1251 = vsub.s32 0, %v1250
      %v1252 = vrot.slane %v1247, %v1251
      %v1270 = vunpack.c.l.b16 %v1231
      %v1271 = vunpack.c.l.b16 %v1232
      %v1272 = vunpack.c.l.b16 %v1233
      %v1273 = vunpack.c.l.b16 %v1234
      %v1274 = vunpack.c.l.b16 %v1235
      %v1275 = vunpack.c.l.b16 %v1236
      %v1276 = vunpack.c.l.b16 %v1237
      %v1277 = vunpack.c.l.b16 %v1238
      %v1278 = vunpack.c.l.b16 %v1239
      %v1279 = vunpack.c.l.b16 %v1240
      %v1280 = vunpack.c.l.b16 %v1241
      %v1281 = vunpack.c.l.b16 %v1242
      %v1282 = vunpack.c.l.b16 %v1243
      %v1283 = vunpack.c.l.b16 %v1244
      %v1284 = vunpack.c.l.b16 %v1245
      %v1285 = vunpack.c.l.b16 %v1246
      %v1286 = vpack.c.b16 %v1271, %v1270
      %v1287 = vpack.c.b16 %v1273, %v1272
      %v1288 = vpack.c.b16 %v1275, %v1274
      %v1289 = vpack.c.b16 %v1277, %v1276
      %v1290 = vpack.c.b16 %v1279, %v1278
      %v1291 = vpack.c.b16 %v1281, %v1280
      %v1292 = vpack.c.b16 %v1283, %v1282
      %v1293 = vpack.c.b16 %v1285, %v1284
      %1302 = vmatprep.subr.bf16.mxu0 0
      %1303 = vmatpush1.bf16.msra.mxu0 %v1293
      %1304 = vmatprep.subr.bf16.mxu0 0
      %1305 = vmatpush1.bf16.msra.mxu0 %v1292
      %1306 = vmatprep.subr.bf16.mxu0 0
      %1307 = vmatpush1.bf16.msra.mxu0 %v1291
      %1308 = vmatprep.subr.bf16.mxu0 0
      %1309 = vmatpush1.bf16.msra.mxu0 %v1290
      %1310 = vmatprep.subr.bf16.mxu0 0
      %1311 = vmatpush1.bf16.msra.mxu0 %v1289
      %1312 = vmatprep.subr.bf16.mxu0 0
      %1313 = vmatpush1.bf16.msra.mxu0 %v1288
      %1314 = vmatprep.subr.bf16.mxu0 0
      %1315 = vmatpush1.bf16.msra.mxu0 %v1287
      %1316 = vmatprep.subr.bf16.mxu0 0
      %1317 = vmatpush1.bf16.msra.mxu0 %v1286
      %1318 = vmatprep.subr.bf16.mxu0 0
      %1319 = vmatpush2.bf16.msra.mxu0 0
      %1320 = vmatprep.subr.bf16.mxu0 0
      %1321 = vmatpush2.bf16.msra.mxu0 0
      %1322 = vmatprep.subr.bf16.mxu0 0
      %1323 = vmatpush2.bf16.msra.mxu0 0
      %1324 = vmatprep.subr.bf16.mxu0 0
      %1325 = vmatpush2.bf16.msra.mxu0 0
      %1326 = vmatprep.subr.bf16.mxu0 0
      %1327 = vmatpush2.bf16.msra.mxu0 0
      %1328 = vmatprep.subr.bf16.mxu0 0
      %1329 = vmatpush2.bf16.msra.mxu0 0
      %1330 = vmatprep.subr.bf16.mxu0 0
      %1331 = vmatpush2.bf16.msra.mxu0 0
      %1332 = vmatprep.subr.bf16.mxu0 0
      %1333 = vmatpush2.bf16.msra.mxu0 0
      %1334 = vmatprep.mubr.bf16.mxu0 0
      %1335 = vmatmul.mubr.bf16.gmra.mxu0 %v821
      %v1336 = vpop.f32.mrf.mxu0
      %v1337 = vadd.f32 %v1252, %v1336
      %v1338 = vpop.f32.mrf.mxu0
      %v1339 = vpop.f32.mrf.mxu0
      %v1340 = vadd.f32 %v1252, %v1339
      %v1341 = vpop.f32.mrf.mxu0
      %1342 = vmatprep.mubr.bf16.mxu0 0
      %1343 = vmatmul.mubr.bf16.gmra.mxu0 %v822
      %v1344 = vpop.f32.mrf.mxu0
      %v1345 = vadd.f32 %v1252, %v1344
      %v1346 = vpop.f32.mrf.mxu0
      %v1347 = vpop.f32.mrf.mxu0
      %v1348 = vadd.f32 %v1252, %v1347
      %v1349 = vpop.f32.mrf.mxu0
      %1350 = vmatprep.mubr.bf16.mxu0 0
      %1351 = vmatmul.mubr.bf16.gmra.mxu0 %v823
      %v1352 = vpop.f32.mrf.mxu0
      %v1353 = vadd.f32 %v1252, %v1352
      %v1354 = vpop.f32.mrf.mxu0
      %v1355 = vpop.f32.mrf.mxu0
      %v1356 = vadd.f32 %v1252, %v1355
      %v1357 = vpop.f32.mrf.mxu0
      %1358 = vmatprep.mubr.bf16.mxu0 0
      %1359 = vmatmul.mubr.bf16.gmra.mxu0 %v824
      %v1360 = vpop.f32.mrf.mxu0
      %v1361 = vadd.f32 %v1252, %v1360
      %v1362 = vpop.f32.mrf.mxu0
      %v1363 = vpop.f32.mrf.mxu0
      %v1364 = vadd.f32 %v1252, %v1363
      %v1365 = vpop.f32.mrf.mxu0
      %1366 = vmatprep.mubr.bf16.mxu0 0
      %1367 = vmatmul.mubr.bf16.gmra.mxu0 %v825
      %v1368 = vpop.f32.mrf.mxu0
      %v1369 = vadd.f32 %v1252, %v1368
      %v1370 = vpop.f32.mrf.mxu0
      %v1371 = vpop.f32.mrf.mxu0
      %v1372 = vadd.f32 %v1252, %v1371
      %v1373 = vpop.f32.mrf.mxu0
      %1374 = vmatprep.mubr.bf16.mxu0 0
      %1375 = vmatmul.mubr.bf16.gmra.mxu0 %v826
      %v1376 = vpop.f32.mrf.mxu0
      %v1377 = vadd.f32 %v1252, %v1376
      %v1378 = vpop.f32.mrf.mxu0
      %v1379 = vpop.f32.mrf.mxu0
      %v1380 = vadd.f32 %v1252, %v1379
      %v1381 = vpop.f32.mrf.mxu0
      %1382 = vmatprep.mubr.bf16.mxu0 0
      %1383 = vmatmul.mubr.bf16.gmra.mxu0 %v827
      %v1384 = vpop.f32.mrf.mxu0
      %v1385 = vadd.f32 %v1252, %v1384
      %v1386 = vpop.f32.mrf.mxu0
      %v1387 = vpop.f32.mrf.mxu0
      %v1388 = vadd.f32 %v1252, %v1387
      %v1389 = vpop.f32.mrf.mxu0
      %1390 = vmatprep.mubr.bf16.mxu0 0
      %1391 = vmatmul.mubr.bf16.gmra.mxu0 %v828
      %v1392 = vpop.f32.mrf.mxu0
      %v1393 = vadd.f32 %v1252, %v1392
      %v1394 = vpop.f32.mrf.mxu0
      %v1395 = vpop.f32.mrf.mxu0
      %v1396 = vadd.f32 %v1252, %v1395
      %v1397 = vpop.f32.mrf.mxu0
      %1398 = vmatprep.mubr.bf16.mxu0 0
      %1399 = vmatmul.mubr.bf16.gmra.mxu0 %v829
      %v1400 = vpop.f32.mrf.mxu0
      %v1401 = vadd.f32 %v1252, %v1400
      %v1402 = vpop.f32.mrf.mxu0
      %v1403 = vpop.f32.mrf.mxu0
      %v1404 = vadd.f32 %v1252, %v1403
      %v1405 = vpop.f32.mrf.mxu0
      %1406 = vmatprep.mubr.bf16.mxu0 0
      %1407 = vmatmul.mubr.bf16.gmra.mxu0 %v830
      %v1408 = vpop.f32.mrf.mxu0
      %v1409 = vadd.f32 %v1252, %v1408
      %v1410 = vpop.f32.mrf.mxu0
      %v1411 = vpop.f32.mrf.mxu0
      %v1412 = vadd.f32 %v1252, %v1411
      %v1413 = vpop.f32.mrf.mxu0
      %1414 = vmatprep.mubr.bf16.mxu0 0
      %1415 = vmatmul.mubr.bf16.gmra.mxu0 %v831
      %v1416 = vpop.f32.mrf.mxu0
      %v1417 = vadd.f32 %v1252, %v1416
      %v1418 = vpop.f32.mrf.mxu0
      %v1419 = vpop.f32.mrf.mxu0
      %v1420 = vadd.f32 %v1252, %v1419
      %v1421 = vpop.f32.mrf.mxu0
      %1422 = vmatprep.mubr.bf16.mxu0 0
      %1423 = vmatmul.mubr.bf16.gmra.mxu0 %v832
      %v1424 = vpop.f32.mrf.mxu0
      %v1425 = vadd.f32 %v1252, %v1424
      %v1426 = vpop.f32.mrf.mxu0
      %v1427 = vpop.f32.mrf.mxu0
      %v1428 = vadd.f32 %v1252, %v1427
      %v1429 = vpop.f32.mrf.mxu0
      %1430 = vmatprep.mubr.bf16.mxu0 0
      %1431 = vmatmul.mubr.bf16.gmra.mxu0 %v833
      %v1432 = vpop.f32.mrf.mxu0
      %v1433 = vadd.f32 %v1252, %v1432
      %v1434 = vpop.f32.mrf.mxu0
      %v1435 = vpop.f32.mrf.mxu0
      %v1436 = vadd.f32 %v1252, %v1435
      %v1437 = vpop.f32.mrf.mxu0
      %1438 = vmatprep.mubr.bf16.mxu0 0
      %1439 = vmatmul.mubr.bf16.gmra.mxu0 %v834
      %v1440 = vpop.f32.mrf.mxu0
      %v1441 = vadd.f32 %v1252, %v1440
      %v1442 = vpop.f32.mrf.mxu0
      %v1443 = vpop.f32.mrf.mxu0
      %v1444 = vadd.f32 %v1252, %v1443
      %v1445 = vpop.f32.mrf.mxu0
      %1446 = vmatprep.mubr.bf16.mxu0 0
      %1447 = vmatmul.mubr.bf16.gmra.mxu0 %v835
      %v1448 = vpop.f32.mrf.mxu0
      %v1449 = vadd.f32 %v1252, %v1448
      %v1450 = vpop.f32.mrf.mxu0
      %v1451 = vpop.f32.mrf.mxu0
      %v1452 = vadd.f32 %v1252, %v1451
      %v1453 = vpop.f32.mrf.mxu0
      %1454 = vmatprep.mubr.bf16.mxu0 0
      %1455 = vmatmul.mubr.bf16.gmra.mxu0 %v836
      %v1456 = vpop.f32.mrf.mxu0
      %v1457 = vadd.f32 %v1252, %v1456
      %v1458 = vpop.f32.mrf.mxu0
      %v1459 = vpop.f32.mrf.mxu0
      %v1460 = vadd.f32 %v1252, %v1459
      %v1461 = vpop.f32.mrf.mxu0
      %1462 = vdwg.mxu0
      %1463 = vmax.xlane.f32.xlu0 %v1337
      %v1464 = vpop.xlane.xlu0 %1463
      %1465 = vmax.xlane.f32.xlu0 %v1340
      %v1466 = vpop.xlane.xlu0 %1465
      %1467 = vmax.xlane.f32.xlu0 %v1345
      %v1468 = vpop.xlane.xlu0 %1467
      %1469 = vmax.xlane.f32.xlu0 %v1348
      %v1470 = vpop.xlane.xlu0 %1469
      %1471 = vmax.xlane.f32.xlu0 %v1353
      %v1472 = vpop.xlane.xlu0 %1471
      %1473 = vmax.xlane.f32.xlu0 %v1356
      %v1474 = vpop.xlane.xlu0 %1473
      %1475 = vmax.xlane.f32.xlu0 %v1361
      %v1476 = vpop.xlane.xlu0 %1475
      %1477 = vmax.xlane.f32.xlu0 %v1364
      %v1478 = vpop.xlane.xlu0 %1477
      %1479 = vmax.xlane.f32.xlu0 %v1369
      %v1480 = vpop.xlane.xlu0 %1479
      %1481 = vmax.xlane.f32.xlu0 %v1372
      %v1482 = vpop.xlane.xlu0 %1481
      %1483 = vmax.xlane.f32.xlu0 %v1377
      %v1484 = vpop.xlane.xlu0 %1483
      %1485 = vmax.xlane.f32.xlu0 %v1380
      %v1486 = vpop.xlane.xlu0 %1485
      %1487 = vmax.xlane.f32.xlu0 %v1385
      %v1488 = vpop.xlane.xlu0 %1487
      %1489 = vmax.xlane.f32.xlu0 %v1388
      %v1490 = vpop.xlane.xlu0 %1489
      %1491 = vmax.xlane.f32.xlu0 %v1393
      %v1492 = vpop.xlane.xlu0 %1491
      %1493 = vmax.xlane.f32.xlu0 %v1396
      %v1494 = vpop.xlane.xlu0 %1493
      %1495 = vmax.xlane.f32.xlu0 %v1401
      %v1496 = vpop.xlane.xlu0 %1495
      %1497 = vmax.xlane.f32.xlu0 %v1404
      %v1498 = vpop.xlane.xlu0 %1497
      %1499 = vmax.xlane.f32.xlu0 %v1409
      %v1500 = vpop.xlane.xlu0 %1499
      %1501 = vmax.xlane.f32.xlu0 %v1412
      %v1502 = vpop.xlane.xlu0 %1501
      %1503 = vmax.xlane.f32.xlu0 %v1417
      %v1504 = vpop.xlane.xlu0 %1503
      %1505 = vmax.xlane.f32.xlu0 %v1420
      %v1506 = vpop.xlane.xlu0 %1505
      %1507 = vmax.xlane.f32.xlu0 %v1425
      %v1508 = vpop.xlane.xlu0 %1507
      %1509 = vmax.xlane.f32.xlu0 %v1428
      %v1510 = vpop.xlane.xlu0 %1509
      %1511 = vmax.xlane.f32.xlu0 %v1433
      %v1512 = vpop.xlane.xlu0 %1511
      %1513 = vmax.xlane.f32.xlu0 %v1436
      %v1514 = vpop.xlane.xlu0 %1513
      %1515 = vmax.xlane.f32.xlu0 %v1441
      %v1516 = vpop.xlane.xlu0 %1515
      %1517 = vmax.xlane.f32.xlu0 %v1444
      %v1518 = vpop.xlane.xlu0 %1517
      %1519 = vmax.xlane.f32.xlu0 %v1449
      %v1520 = vpop.xlane.xlu0 %1519
      %1521 = vmax.xlane.f32.xlu0 %v1452
      %v1522 = vpop.xlane.xlu0 %1521
      %1523 = vmax.xlane.f32.xlu0 %v1457
      %v1524 = vpop.xlane.xlu0 %1523
      %1525 = vmax.xlane.f32.xlu0 %v1460
      %v1526 = vpop.xlane.xlu0 %1525
      %v1527 = vsub.f32 %v1337, %v1464
      %v1528 = vsub.f32 %v1340, %v1466
      %v1529 = vsub.f32 %v1345, %v1468
      %v1530 = vsub.f32 %v1348, %v1470
      %v1531 = vsub.f32 %v1353, %v1472
      %v1532 = vsub.f32 %v1356, %v1474
      %v1533 = vsub.f32 %v1361, %v1476
      %v1534 = vsub.f32 %v1364, %v1478
      %v1535 = vsub.f32 %v1369, %v1480
      %v1536 = vsub.f32 %v1372, %v1482
      %v1537 = vsub.f32 %v1377, %v1484
      %v1538 = vsub.f32 %v1380, %v1486
      %v1539 = vsub.f32 %v1385, %v1488
      %v1540 = vsub.f32 %v1388, %v1490
      %v1541 = vsub.f32 %v1393, %v1492
      %v1542 = vsub.f32 %v1396, %v1494
      %v1543 = vsub.f32 %v1401, %v1496
      %v1544 = vsub.f32 %v1404, %v1498
      %v1545 = vsub.f32 %v1409, %v1500
      %v1546 = vsub.f32 %v1412, %v1502
      %v1547 = vsub.f32 %v1417, %v1504
      %v1548 = vsub.f32 %v1420, %v1506
      %v1549 = vsub.f32 %v1425, %v1508
      %v1550 = vsub.f32 %v1428, %v1510
      %v1551 = vsub.f32 %v1433, %v1512
      %v1552 = vsub.f32 %v1436, %v1514
      %v1553 = vsub.f32 %v1441, %v1516
      %v1554 = vsub.f32 %v1444, %v1518
      %v1555 = vsub.f32 %v1449, %v1520
      %v1556 = vsub.f32 %v1452, %v1522
      %v1557 = vsub.f32 %v1457, %v1524
      %v1558 = vsub.f32 %v1460, %v1526
      %v1559 = vmul.f32 %v1527, 1.442695
      %v1560 = vpow.pop %v1559
      %v1561 = vmul.f32 %v1528, 1.442695
      %v1562 = vpow.pop %v1561
      %v1563 = vmul.f32 %v1529, 1.442695
      %v1564 = vpow.pop %v1563
      %v1565 = vmul.f32 %v1530, 1.442695
      %v1566 = vpow.pop %v1565
      %v1567 = vmul.f32 %v1531, 1.442695
      %v1568 = vpow.pop %v1567
      %v1569 = vmul.f32 %v1532, 1.442695
      %v1570 = vpow.pop %v1569
      %v1571 = vmul.f32 %v1533, 1.442695
      %v1572 = vpow.pop %v1571
      %v1573 = vmul.f32 %v1534, 1.442695
      %v1574 = vpow.pop %v1573
      %v1575 = vmul.f32 %v1535, 1.442695
      %v1576 = vpow.pop %v1575
      %v1577 = vmul.f32 %v1536, 1.442695
      %v1578 = vpow.pop %v1577
      %v1579 = vmul.f32 %v1537, 1.442695
      %v1580 = vpow.pop %v1579
      %v1581 = vmul.f32 %v1538, 1.442695
      %v1582 = vpow.pop %v1581
      %v1583 = vmul.f32 %v1539, 1.442695
      %v1584 = vpow.pop %v1583
      %v1585 = vmul.f32 %v1540, 1.442695
      %v1586 = vpow.pop %v1585
      %v1587 = vmul.f32 %v1541, 1.442695
      %v1588 = vpow.pop %v1587
      %v1589 = vmul.f32 %v1542, 1.442695
      %v1590 = vpow.pop %v1589
      %v1591 = vmul.f32 %v1543, 1.442695
      %v1592 = vpow.pop %v1591
      %v1593 = vmul.f32 %v1544, 1.442695
      %v1594 = vpow.pop %v1593
      %v1595 = vmul.f32 %v1545, 1.442695
      %v1596 = vpow.pop %v1595
      %v1597 = vmul.f32 %v1546, 1.442695
      %v1598 = vpow.pop %v1597
      %v1599 = vmul.f32 %v1547, 1.442695
      %v1600 = vpow.pop %v1599
      %v1601 = vmul.f32 %v1548, 1.442695
      %v1602 = vpow.pop %v1601
      %v1603 = vmul.f32 %v1549, 1.442695
      %v1604 = vpow.pop %v1603
      %v1605 = vmul.f32 %v1550, 1.442695
      %v1606 = vpow.pop %v1605
      %v1607 = vmul.f32 %v1551, 1.442695
      %v1608 = vpow.pop %v1607
      %v1609 = vmul.f32 %v1552, 1.442695
      %v1610 = vpow.pop %v1609
      %v1611 = vmul.f32 %v1553, 1.442695
      %v1612 = vpow.pop %v1611
      %v1613 = vmul.f32 %v1554, 1.442695
      %v1614 = vpow.pop %v1613
      %v1615 = vmul.f32 %v1555, 1.442695
      %v1616 = vpow.pop %v1615
      %v1617 = vmul.f32 %v1556, 1.442695
      %v1618 = vpow.pop %v1617
      %v1619 = vmul.f32 %v1557, 1.442695
      %v1620 = vpow.pop %v1619
      %v1621 = vmul.f32 %v1558, 1.442695
      %v1622 = vpow.pop %v1621
      %1623 = vadd.xlane.f32.xlu0 %v1560
      %v1624 = vpop.xlane.xlu0 %1623
      %1625 = vadd.xlane.f32.xlu0 %v1562
      %v1626 = vpop.xlane.xlu0 %1625
      %1627 = vadd.xlane.f32.xlu0 %v1564
      %v1628 = vpop.xlane.xlu0 %1627
      %1629 = vadd.xlane.f32.xlu0 %v1566
      %v1630 = vpop.xlane.xlu0 %1629
      %1631 = vadd.xlane.f32.xlu0 %v1568
      %v1632 = vpop.xlane.xlu0 %1631
      %1633 = vadd.xlane.f32.xlu0 %v1570
      %v1634 = vpop.xlane.xlu0 %1633
      %1635 = vadd.xlane.f32.xlu0 %v1572
      %v1636 = vpop.xlane.xlu0 %1635
      %1637 = vadd.xlane.f32.xlu0 %v1574
      %v1638 = vpop.xlane.xlu0 %1637
      %1639 = vadd.xlane.f32.xlu0 %v1576
      %v1640 = vpop.xlane.xlu0 %1639
      %1641 = vadd.xlane.f32.xlu0 %v1578
      %v1642 = vpop.xlane.xlu0 %1641
      %1643 = vadd.xlane.f32.xlu0 %v1580
      %v1644 = vpop.xlane.xlu0 %1643
      %1645 = vadd.xlane.f32.xlu0 %v1582
      %v1646 = vpop.xlane.xlu0 %1645
      %1647 = vadd.xlane.f32.xlu0 %v1584
      %v1648 = vpop.xlane.xlu0 %1647
      %1649 = vadd.xlane.f32.xlu0 %v1586
      %v1650 = vpop.xlane.xlu0 %1649
      %1651 = vadd.xlane.f32.xlu0 %v1588
      %v1652 = vpop.xlane.xlu0 %1651
      %1653 = vadd.xlane.f32.xlu0 %v1590
      %v1654 = vpop.xlane.xlu0 %1653
      %1655 = vadd.xlane.f32.xlu0 %v1592
      %v1656 = vpop.xlane.xlu0 %1655
      %1657 = vadd.xlane.f32.xlu0 %v1594
      %v1658 = vpop.xlane.xlu0 %1657
      %1659 = vadd.xlane.f32.xlu0 %v1596
      %v1660 = vpop.xlane.xlu0 %1659
      %1661 = vadd.xlane.f32.xlu0 %v1598
      %v1662 = vpop.xlane.xlu0 %1661
      %1663 = vadd.xlane.f32.xlu0 %v1600
      %v1664 = vpop.xlane.xlu0 %1663
      %1665 = vadd.xlane.f32.xlu0 %v1602
      %v1666 = vpop.xlane.xlu0 %1665
      %1667 = vadd.xlane.f32.xlu0 %v1604
      %v1668 = vpop.xlane.xlu0 %1667
      %1669 = vadd.xlane.f32.xlu0 %v1606
      %v1670 = vpop.xlane.xlu0 %1669
      %1671 = vadd.xlane.f32.xlu0 %v1608
      %v1672 = vpop.xlane.xlu0 %1671
      %1673 = vadd.xlane.f32.xlu0 %v1610
      %v1674 = vpop.xlane.xlu0 %1673
      %1675 = vadd.xlane.f32.xlu0 %v1612
      %v1676 = vpop.xlane.xlu0 %1675
      %1677 = vadd.xlane.f32.xlu0 %v1614
      %v1678 = vpop.xlane.xlu0 %1677
      %1679 = vadd.xlane.f32.xlu0 %v1616
      %v1680 = vpop.xlane.xlu0 %1679
      %1681 = vadd.xlane.f32.xlu0 %v1618
      %v1682 = vpop.xlane.xlu0 %1681
      %1683 = vadd.xlane.f32.xlu0 %v1620
      %v1684 = vpop.xlane.xlu0 %1683
      %1685 = vadd.xlane.f32.xlu0 %v1622
      %v1686 = vpop.xlane.xlu0 %1685
      %v1687 = vmul.f32 %v1560, %v1527
      %v1688 = vmul.f32 %v1562, %v1528
      %v1689 = vmul.f32 %v1564, %v1529
      %v1690 = vmul.f32 %v1566, %v1530
      %v1691 = vmul.f32 %v1568, %v1531
      %v1692 = vmul.f32 %v1570, %v1532
      %v1693 = vmul.f32 %v1572, %v1533
      %v1694 = vmul.f32 %v1574, %v1534
      %v1695 = vmul.f32 %v1576, %v1535
      %v1696 = vmul.f32 %v1578, %v1536
      %v1697 = vmul.f32 %v1580, %v1537
      %v1698 = vmul.f32 %v1582, %v1538
      %v1699 = vmul.f32 %v1584, %v1539
      %v1700 = vmul.f32 %v1586, %v1540
      %v1701 = vmul.f32 %v1588, %v1541
      %v1702 = vmul.f32 %v1590, %v1542
      %v1703 = vmul.f32 %v1592, %v1543
      %v1704 = vmul.f32 %v1594, %v1544
      %v1705 = vmul.f32 %v1596, %v1545
      %v1706 = vmul.f32 %v1598, %v1546
      %v1707 = vmul.f32 %v1600, %v1547
      %v1708 = vmul.f32 %v1602, %v1548
      %v1709 = vmul.f32 %v1604, %v1549
      %v1710 = vmul.f32 %v1606, %v1550
      %v1711 = vmul.f32 %v1608, %v1551
      %v1712 = vmul.f32 %v1610, %v1552
      %v1713 = vmul.f32 %v1612, %v1553
      %v1714 = vmul.f32 %v1614, %v1554
      %v1715 = vmul.f32 %v1616, %v1555
      %v1716 = vmul.f32 %v1618, %v1556
      %v1717 = vmul.f32 %v1620, %v1557
      %v1718 = vmul.f32 %v1622, %v1558
      %1719 = vadd.xlane.f32.xlu0 %v1687
      %v1720 = vpop.xlane.xlu0 %1719
      %1721 = vadd.xlane.f32.xlu0 %v1688
      %v1722 = vpop.xlane.xlu0 %1721
      %1723 = vadd.xlane.f32.xlu0 %v1689
      %v1724 = vpop.xlane.xlu0 %1723
      %1725 = vadd.xlane.f32.xlu0 %v1690
      %v1726 = vpop.xlane.xlu0 %1725
      %1727 = vadd.xlane.f32.xlu0 %v1691
      %v1728 = vpop.xlane.xlu0 %1727
      %1729 = vadd.xlane.f32.xlu0 %v1692
      %v1730 = vpop.xlane.xlu0 %1729
      %1731 = vadd.xlane.f32.xlu0 %v1693
      %v1732 = vpop.xlane.xlu0 %1731
      %1733 = vadd.xlane.f32.xlu0 %v1694
      %v1734 = vpop.xlane.xlu0 %1733
      %1735 = vadd.xlane.f32.xlu0 %v1695
      %v1736 = vpop.xlane.xlu0 %1735
      %1737 = vadd.xlane.f32.xlu0 %v1696
      %v1738 = vpop.xlane.xlu0 %1737
      %1739 = vadd.xlane.f32.xlu0 %v1697
      %v1740 = vpop.xlane.xlu0 %1739
      %1741 = vadd.xlane.f32.xlu0 %v1698
      %v1742 = vpop.xlane.xlu0 %1741
      %1743 = vadd.xlane.f32.xlu0 %v1699
      %v1744 = vpop.xlane.xlu0 %1743
      %1745 = vadd.xlane.f32.xlu0 %v1700
      %v1746 = vpop.xlane.xlu0 %1745
      %1747 = vadd.xlane.f32.xlu0 %v1701
      %v1748 = vpop.xlane.xlu0 %1747
      %1749 = vadd.xlane.f32.xlu0 %v1702
      %v1750 = vpop.xlane.xlu0 %1749
      %1751 = vadd.xlane.f32.xlu0 %v1703
      %v1752 = vpop.xlane.xlu0 %1751
      %1753 = vadd.xlane.f32.xlu0 %v1704
      %v1754 = vpop.xlane.xlu0 %1753
      %1755 = vadd.xlane.f32.xlu0 %v1705
      %v1756 = vpop.xlane.xlu0 %1755
      %1757 = vadd.xlane.f32.xlu0 %v1706
      %v1758 = vpop.xlane.xlu0 %1757
      %1759 = vadd.xlane.f32.xlu0 %v1707
      %v1760 = vpop.xlane.xlu0 %1759
      %1761 = vadd.xlane.f32.xlu0 %v1708
      %v1762 = vpop.xlane.xlu0 %1761
      %1763 = vadd.xlane.f32.xlu0 %v1709
      %v1764 = vpop.xlane.xlu0 %1763
      %1765 = vadd.xlane.f32.xlu0 %v1710
      %v1766 = vpop.xlane.xlu0 %1765
      %1767 = vadd.xlane.f32.xlu0 %v1711
      %v1768 = vpop.xlane.xlu0 %1767
      %1769 = vadd.xlane.f32.xlu0 %v1712
      %v1770 = vpop.xlane.xlu0 %1769
      %1771 = vadd.xlane.f32.xlu0 %v1713
      %v1772 = vpop.xlane.xlu0 %1771
      %1773 = vadd.xlane.f32.xlu0 %v1714
      %v1774 = vpop.xlane.xlu0 %1773
      %1775 = vadd.xlane.f32.xlu0 %v1715
      %v1776 = vpop.xlane.xlu0 %1775
      %1777 = vadd.xlane.f32.xlu0 %v1716
      %v1778 = vpop.xlane.xlu0 %1777
      %1779 = vadd.xlane.f32.xlu0 %v1717
      %v1780 = vpop.xlane.xlu0 %1779
      %1781 = vadd.xlane.f32.xlu0 %v1718
      %v1782 = vpop.xlane.xlu0 %1781
      %v1783 = vrcp.pop %v1624
      %v1784 = vmul.f32 %v1720, %v1783
      %v1785 = vrcp.pop %v1626
      %v1786 = vmul.f32 %v1722, %v1785
      %v1787 = vrcp.pop %v1628
      %v1788 = vmul.f32 %v1724, %v1787
      %v1789 = vrcp.pop %v1630
      %v1790 = vmul.f32 %v1726, %v1789
      %v1791 = vrcp.pop %v1632
      %v1792 = vmul.f32 %v1728, %v1791
      %v1793 = vrcp.pop %v1634
      %v1794 = vmul.f32 %v1730, %v1793
      %v1795 = vrcp.pop %v1636
      %v1796 = vmul.f32 %v1732, %v1795
      %v1797 = vrcp.pop %v1638
      %v1798 = vmul.f32 %v1734, %v1797
      %v1799 = vrcp.pop %v1640
      %v1800 = vmul.f32 %v1736, %v1799
      %v1801 = vrcp.pop %v1642
      %v1802 = vmul.f32 %v1738, %v1801
      %v1803 = vrcp.pop %v1644
      %v1804 = vmul.f32 %v1740, %v1803
      %v1805 = vrcp.pop %v1646
      %v1806 = vmul.f32 %v1742, %v1805
      %v1807 = vrcp.pop %v1648
      %v1808 = vmul.f32 %v1744, %v1807
      %v1809 = vrcp.pop %v1650
      %v1810 = vmul.f32 %v1746, %v1809
      %v1811 = vrcp.pop %v1652
      %v1812 = vmul.f32 %v1748, %v1811
      %v1813 = vrcp.pop %v1654
      %v1814 = vmul.f32 %v1750, %v1813
      %v1815 = vrcp.pop %v1656
      %v1816 = vmul.f32 %v1752, %v1815
      %v1817 = vrcp.pop %v1658
      %v1818 = vmul.f32 %v1754, %v1817
      %v1819 = vrcp.pop %v1660
      %v1820 = vmul.f32 %v1756, %v1819
      %v1821 = vrcp.pop %v1662
      %v1822 = vmul.f32 %v1758, %v1821
      %v1823 = vrcp.pop %v1664
      %v1824 = vmul.f32 %v1760, %v1823
      %v1825 = vrcp.pop %v1666
      %v1826 = vmul.f32 %v1762, %v1825
      %v1827 = vrcp.pop %v1668
      %v1828 = vmul.f32 %v1764, %v1827
      %v1829 = vrcp.pop %v1670
      %v1830 = vmul.f32 %v1766, %v1829
      %v1831 = vrcp.pop %v1672
      %v1832 = vmul.f32 %v1768, %v1831
      %v1833 = vrcp.pop %v1674
      %v1834 = vmul.f32 %v1770, %v1833
      %v1835 = vrcp.pop %v1676
      %v1836 = vmul.f32 %v1772, %v1835
      %v1837 = vrcp.pop %v1678
      %v1838 = vmul.f32 %v1774, %v1837
      %v1839 = vrcp.pop %v1680
      %v1840 = vmul.f32 %v1776, %v1839
      %v1841 = vrcp.pop %v1682
      %v1842 = vmul.f32 %v1778, %v1841
      %v1843 = vrcp.pop %v1684
      %v1844 = vmul.f32 %v1780, %v1843
      %v1845 = vrcp.pop %v1686
      %v1846 = vmul.f32 %v1782, %v1845
      %v1847 = vlog2.pop %v1624
      %v1848 = vmul.f32 %v1847, 0.6931472
      %v1849 = vlog2.pop %v1626
      %v1850 = vmul.f32 %v1849, 0.6931472
      %v1851 = vlog2.pop %v1628
      %v1852 = vmul.f32 %v1851, 0.6931472
      %v1853 = vlog2.pop %v1630
      %v1854 = vmul.f32 %v1853, 0.6931472
      %v1855 = vlog2.pop %v1632
      %v1856 = vmul.f32 %v1855, 0.6931472
      %v1857 = vlog2.pop %v1634
      %v1858 = vmul.f32 %v1857, 0.6931472
      %v1859 = vlog2.pop %v1636
      %v1860 = vmul.f32 %v1859, 0.6931472
      %v1861 = vlog2.pop %v1638
      %v1862 = vmul.f32 %v1861, 0.6931472
      %v1863 = vlog2.pop %v1640
      %v1864 = vmul.f32 %v1863, 0.6931472
      %v1865 = vlog2.pop %v1642
      %v1866 = vmul.f32 %v1865, 0.6931472
      %v1867 = vlog2.pop %v1644
      %v1868 = vmul.f32 %v1867, 0.6931472
      %v1869 = vlog2.pop %v1646
      %v1870 = vmul.f32 %v1869, 0.6931472
      %v1871 = vlog2.pop %v1648
      %v1872 = vmul.f32 %v1871, 0.6931472
      %v1873 = vlog2.pop %v1650
      %v1874 = vmul.f32 %v1873, 0.6931472
      %v1875 = vlog2.pop %v1652
      %v1876 = vmul.f32 %v1875, 0.6931472
      %v1877 = vlog2.pop %v1654
      %v1878 = vmul.f32 %v1877, 0.6931472
      %v1879 = vlog2.pop %v1656
      %v1880 = vmul.f32 %v1879, 0.6931472
      %v1881 = vlog2.pop %v1658
      %v1882 = vmul.f32 %v1881, 0.6931472
      %v1883 = vlog2.pop %v1660
      %v1884 = vmul.f32 %v1883, 0.6931472
      %v1885 = vlog2.pop %v1662
      %v1886 = vmul.f32 %v1885, 0.6931472
      %v1887 = vlog2.pop %v1664
      %v1888 = vmul.f32 %v1887, 0.6931472
      %v1889 = vlog2.pop %v1666
      %v1890 = vmul.f32 %v1889, 0.6931472
      %v1891 = vlog2.pop %v1668
      %v1892 = vmul.f32 %v1891, 0.6931472
      %v1893 = vlog2.pop %v1670
      %v1894 = vmul.f32 %v1893, 0.6931472
      %v1895 = vlog2.pop %v1672
      %v1896 = vmul.f32 %v1895, 0.6931472
      %v1897 = vlog2.pop %v1674
      %v1898 = vmul.f32 %v1897, 0.6931472
      %v1899 = vlog2.pop %v1676
      %v1900 = vmul.f32 %v1899, 0.6931472
      %v1901 = vlog2.pop %v1678
      %v1902 = vmul.f32 %v1901, 0.6931472
      %v1903 = vlog2.pop %v1680
      %v1904 = vmul.f32 %v1903, 0.6931472
      %v1905 = vlog2.pop %v1682
      %v1906 = vmul.f32 %v1905, 0.6931472
      %v1907 = vlog2.pop %v1684
      %v1908 = vmul.f32 %v1907, 0.6931472
      %v1909 = vlog2.pop %v1686
      %v1910 = vmul.f32 %v1909, 0.6931472
      %v1911 = vsub.f32 %v1784, %v1848
      %v1912 = vsub.f32 %v1786, %v1850
      %v1913 = vsub.f32 %v1788, %v1852
      %v1914 = vsub.f32 %v1790, %v1854
      %v1915 = vsub.f32 %v1792, %v1856
      %v1916 = vsub.f32 %v1794, %v1858
      %v1917 = vsub.f32 %v1796, %v1860
      %v1918 = vsub.f32 %v1798, %v1862
      %v1919 = vsub.f32 %v1800, %v1864
      %v1920 = vsub.f32 %v1802, %v1866
      %v1921 = vsub.f32 %v1804, %v1868
      %v1922 = vsub.f32 %v1806, %v1870
      %v1923 = vsub.f32 %v1808, %v1872
      %v1924 = vsub.f32 %v1810, %v1874
      %v1925 = vsub.f32 %v1812, %v1876
      %v1926 = vsub.f32 %v1814, %v1878
      %v1927 = vsub.f32 %v1816, %v1880
      %v1928 = vsub.f32 %v1818, %v1882
      %v1929 = vsub.f32 %v1820, %v1884
      %v1930 = vsub.f32 %v1822, %v1886
      %v1931 = vsub.f32 %v1824, %v1888
      %v1932 = vsub.f32 %v1826, %v1890
      %v1933 = vsub.f32 %v1828, %v1892
      %v1934 = vsub.f32 %v1830, %v1894
      %v1935 = vsub.f32 %v1832, %v1896
      %v1936 = vsub.f32 %v1834, %v1898
      %v1937 = vsub.f32 %v1836, %v1900
      %v1938 = vsub.f32 %v1838, %v1902
      %v1939 = vsub.f32 %v1840, %v1904
      %v1940 = vsub.f32 %v1842, %v1906
      %v1941 = vsub.f32 %v1844, %v1908
      %v1942 = vsub.f32 %v1846, %v1910
      %v1943 = vlaneseq
      %v1944 = vand.u32 %v1943, 127
      %vm1945 = vcmp.eq.f32.partialorder %v1337, %v1464
      %vm1946 = vcmp.eq.f32.partialorder %v1340, %v1466
      %vm1947 = vcmp.eq.f32.partialorder %v1345, %v1468
      %vm1948 = vcmp.eq.f32.partialorder %v1348, %v1470
      %vm1949 = vcmp.eq.f32.partialorder %v1353, %v1472
      %vm1950 = vcmp.eq.f32.partialorder %v1356, %v1474
      %vm1951 = vcmp.eq.f32.partialorder %v1361, %v1476
      %vm1952 = vcmp.eq.f32.partialorder %v1364, %v1478
      %vm1953 = vcmp.eq.f32.partialorder %v1369, %v1480
      %vm1954 = vcmp.eq.f32.partialorder %v1372, %v1482
      %vm1955 = vcmp.eq.f32.partialorder %v1377, %v1484
      %vm1956 = vcmp.eq.f32.partialorder %v1380, %v1486
      %vm1957 = vcmp.eq.f32.partialorder %v1385, %v1488
      %vm1958 = vcmp.eq.f32.partialorder %v1388, %v1490
      %vm1959 = vcmp.eq.f32.partialorder %v1393, %v1492
      %vm1960 = vcmp.eq.f32.partialorder %v1396, %v1494
      %vm1961 = vcmp.eq.f32.partialorder %v1401, %v1496
      %vm1962 = vcmp.eq.f32.partialorder %v1404, %v1498
      %vm1963 = vcmp.eq.f32.partialorder %v1409, %v1500
      %vm1964 = vcmp.eq.f32.partialorder %v1412, %v1502
      %vm1965 = vcmp.eq.f32.partialorder %v1417, %v1504
      %vm1966 = vcmp.eq.f32.partialorder %v1420, %v1506
      %vm1967 = vcmp.eq.f32.partialorder %v1425, %v1508
      %vm1968 = vcmp.eq.f32.partialorder %v1428, %v1510
      %vm1969 = vcmp.eq.f32.partialorder %v1433, %v1512
      %vm1970 = vcmp.eq.f32.partialorder %v1436, %v1514
      %vm1971 = vcmp.eq.f32.partialorder %v1441, %v1516
      %vm1972 = vcmp.eq.f32.partialorder %v1444, %v1518
      %vm1973 = vcmp.eq.f32.partialorder %v1449, %v1520
      %vm1974 = vcmp.eq.f32.partialorder %v1452, %v1522
      %vm1975 = vcmp.eq.f32.partialorder %v1457, %v1524
      %vm1976 = vcmp.eq.f32.partialorder %v1460, %v1526
      %v1977 = vsel %vm1945, %v1944, 128
      %v1978 = vsel %vm1946, %v1944, 128
      %v1979 = vsel %vm1947, %v1944, 128
      %v1980 = vsel %vm1948, %v1944, 128
      %v1981 = vsel %vm1949, %v1944, 128
      %v1982 = vsel %vm1950, %v1944, 128
      %v1983 = vsel %vm1951, %v1944, 128
      %v1984 = vsel %vm1952, %v1944, 128
      %v1985 = vsel %vm1953, %v1944, 128
      %v1986 = vsel %vm1954, %v1944, 128
      %v1987 = vsel %vm1955, %v1944, 128
      %v1988 = vsel %vm1956, %v1944, 128
      %v1989 = vsel %vm1957, %v1944, 128
      %v1990 = vsel %vm1958, %v1944, 128
      %v1991 = vsel %vm1959, %v1944, 128
      %v1992 = vsel %vm1960, %v1944, 128
      %v1993 = vsel %vm1961, %v1944, 128
      %v1994 = vsel %vm1962, %v1944, 128
      %v1995 = vsel %vm1963, %v1944, 128
      %v1996 = vsel %vm1964, %v1944, 128
      %v1997 = vsel %vm1965, %v1944, 128
      %v1998 = vsel %vm1966, %v1944, 128
      %v1999 = vsel %vm1967, %v1944, 128
      %v2000 = vsel %vm1968, %v1944, 128
      %v2001 = vsel %vm1969, %v1944, 128
      %v2002 = vsel %vm1970, %v1944, 128
      %v2003 = vsel %vm1971, %v1944, 128
      %v2004 = vsel %vm1972, %v1944, 128
      %v2005 = vsel %vm1973, %v1944, 128
      %v2006 = vsel %vm1974, %v1944, 128
      %v2007 = vsel %vm1975, %v1944, 128
      %v2008 = vsel %vm1976, %v1944, 128
      %v2009 = vand.u32 %v1977, 65535
      %v2010 = vshra.s32 %v1977, 16
      %v2011 = vcvt.s32.f32 %v2009
      %v2012 = vcvt.s32.f32 %v2010
      %2013 = vmin.xlane.f32.xlu0 %v2012
      %v2014 = vpop.xlane.xlu0 %2013
      %vm2015 = vcmp.eq.f32.partialorder %v2012, %v2014
      %v2016 = vsel %vm2015, %v2011, inf
      %2017 = vmin.xlane.f32.xlu0 %v2016
      %v2018 = vpop.xlane.xlu0 %2017
      %v2019 = vcvt.f32.s32 %v2018
      %v2020 = vcvt.f32.s32 %v2014
      %v2021 = vshll.u32 %v2020, 16
      %v2022 = vadd.s32 %v2021, %v2019
      %v2023 = vand.u32 %v1978, 65535
      %v2024 = vshra.s32 %v1978, 16
      %v2025 = vcvt.s32.f32 %v2023
      %v2026 = vcvt.s32.f32 %v2024
      %2027 = vmin.xlane.f32.xlu0 %v2026
      %v2028 = vpop.xlane.xlu0 %2027
      %vm2029 = vcmp.eq.f32.partialorder %v2026, %v2028
      %v2030 = vsel %vm2029, %v2025, inf
      %2031 = vmin.xlane.f32.xlu0 %v2030
      %v2032 = vpop.xlane.xlu0 %2031
      %v2033 = vcvt.f32.s32 %v2032
      %v2034 = vcvt.f32.s32 %v2028
      %v2035 = vshll.u32 %v2034, 16
      %v2036 = vadd.s32 %v2035, %v2033
      %v2037 = vand.u32 %v1979, 65535
      %v2038 = vshra.s32 %v1979, 16
      %v2039 = vcvt.s32.f32 %v2037
      %v2040 = vcvt.s32.f32 %v2038
      %2041 = vmin.xlane.f32.xlu0 %v2040
      %v2042 = vpop.xlane.xlu0 %2041
      %vm2043 = vcmp.eq.f32.partialorder %v2040, %v2042
      %v2044 = vsel %vm2043, %v2039, inf
      %2045 = vmin.xlane.f32.xlu0 %v2044
      %v2046 = vpop.xlane.xlu0 %2045
      %v2047 = vcvt.f32.s32 %v2046
      %v2048 = vcvt.f32.s32 %v2042
      %v2049 = vshll.u32 %v2048, 16
      %v2050 = vadd.s32 %v2049, %v2047
      %v2051 = vand.u32 %v1980, 65535
      %v2052 = vshra.s32 %v1980, 16
      %v2053 = vcvt.s32.f32 %v2051
      %v2054 = vcvt.s32.f32 %v2052
      %2055 = vmin.xlane.f32.xlu0 %v2054
      %v2056 = vpop.xlane.xlu0 %2055
      %vm2057 = vcmp.eq.f32.partialorder %v2054, %v2056
      %v2058 = vsel %vm2057, %v2053, inf
      %2059 = vmin.xlane.f32.xlu0 %v2058
      %v2060 = vpop.xlane.xlu0 %2059
      %v2061 = vcvt.f32.s32 %v2060
      %v2062 = vcvt.f32.s32 %v2056
      %v2063 = vshll.u32 %v2062, 16
      %v2064 = vadd.s32 %v2063, %v2061
      %v2065 = vand.u32 %v1981, 65535
      %v2066 = vshra.s32 %v1981, 16
      %v2067 = vcvt.s32.f32 %v2065
      %v2068 = vcvt.s32.f32 %v2066
      %2069 = vmin.xlane.f32.xlu0 %v2068
      %v2070 = vpop.xlane.xlu0 %2069
      %vm2071 = vcmp.eq.f32.partialorder %v2068, %v2070
      %v2072 = vsel %vm2071, %v2067, inf
      %2073 = vmin.xlane.f32.xlu0 %v2072
      %v2074 = vpop.xlane.xlu0 %2073
      %v2075 = vcvt.f32.s32 %v2074
      %v2076 = vcvt.f32.s32 %v2070
      %v2077 = vshll.u32 %v2076, 16
      %v2078 = vadd.s32 %v2077, %v2075
      %v2079 = vand.u32 %v1982, 65535
      %v2080 = vshra.s32 %v1982, 16
      %v2081 = vcvt.s32.f32 %v2079
      %v2082 = vcvt.s32.f32 %v2080
      %2083 = vmin.xlane.f32.xlu0 %v2082
      %v2084 = vpop.xlane.xlu0 %2083
      %vm2085 = vcmp.eq.f32.partialorder %v2082, %v2084
      %v2086 = vsel %vm2085, %v2081, inf
      %2087 = vmin.xlane.f32.xlu0 %v2086
      %v2088 = vpop.xlane.xlu0 %2087
      %v2089 = vcvt.f32.s32 %v2088
      %v2090 = vcvt.f32.s32 %v2084
      %v2091 = vshll.u32 %v2090, 16
      %v2092 = vadd.s32 %v2091, %v2089
      %v2093 = vand.u32 %v1983, 65535
      %v2094 = vshra.s32 %v1983, 16
      %v2095 = vcvt.s32.f32 %v2093
      %v2096 = vcvt.s32.f32 %v2094
      %2097 = vmin.xlane.f32.xlu0 %v2096
      %v2098 = vpop.xlane.xlu0 %2097
      %vm2099 = vcmp.eq.f32.partialorder %v2096, %v2098
      %v2100 = vsel %vm2099, %v2095, inf
      %2101 = vmin.xlane.f32.xlu0 %v2100
      %v2102 = vpop.xlane.xlu0 %2101
      %v2103 = vcvt.f32.s32 %v2102
      %v2104 = vcvt.f32.s32 %v2098
      %v2105 = vshll.u32 %v2104, 16
      %v2106 = vadd.s32 %v2105, %v2103
      %v2107 = vand.u32 %v1984, 65535
      %v2108 = vshra.s32 %v1984, 16
      %v2109 = vcvt.s32.f32 %v2107
      %v2110 = vcvt.s32.f32 %v2108
      %2111 = vmin.xlane.f32.xlu0 %v2110
      %v2112 = vpop.xlane.xlu0 %2111
      %vm2113 = vcmp.eq.f32.partialorder %v2110, %v2112
      %v2114 = vsel %vm2113, %v2109, inf
      %2115 = vmin.xlane.f32.xlu0 %v2114
      %v2116 = vpop.xlane.xlu0 %2115
      %v2117 = vcvt.f32.s32 %v2116
      %v2118 = vcvt.f32.s32 %v2112
      %v2119 = vshll.u32 %v2118, 16
      %v2120 = vadd.s32 %v2119, %v2117
      %v2121 = vand.u32 %v1985, 65535
      %v2122 = vshra.s32 %v1985, 16
      %v2123 = vcvt.s32.f32 %v2121
      %v2124 = vcvt.s32.f32 %v2122
      %2125 = vmin.xlane.f32.xlu0 %v2124
      %v2126 = vpop.xlane.xlu0 %2125
      %vm2127 = vcmp.eq.f32.partialorder %v2124, %v2126
      %v2128 = vsel %vm2127, %v2123, inf
      %2129 = vmin.xlane.f32.xlu0 %v2128
      %v2130 = vpop.xlane.xlu0 %2129
      %v2131 = vcvt.f32.s32 %v2130
      %v2132 = vcvt.f32.s32 %v2126
      %v2133 = vshll.u32 %v2132, 16
      %v2134 = vadd.s32 %v2133, %v2131
      %v2135 = vand.u32 %v1986, 65535
      %v2136 = vshra.s32 %v1986, 16
      %v2137 = vcvt.s32.f32 %v2135
      %v2138 = vcvt.s32.f32 %v2136
      %2139 = vmin.xlane.f32.xlu0 %v2138
      %v2140 = vpop.xlane.xlu0 %2139
      %vm2141 = vcmp.eq.f32.partialorder %v2138, %v2140
      %v2142 = vsel %vm2141, %v2137, inf
      %2143 = vmin.xlane.f32.xlu0 %v2142
      %v2144 = vpop.xlane.xlu0 %2143
      %v2145 = vcvt.f32.s32 %v2144
      %v2146 = vcvt.f32.s32 %v2140
      %v2147 = vshll.u32 %v2146, 16
      %v2148 = vadd.s32 %v2147, %v2145
      %v2149 = vand.u32 %v1987, 65535
      %v2150 = vshra.s32 %v1987, 16
      %v2151 = vcvt.s32.f32 %v2149
      %v2152 = vcvt.s32.f32 %v2150
      %2153 = vmin.xlane.f32.xlu0 %v2152
      %v2154 = vpop.xlane.xlu0 %2153
      %vm2155 = vcmp.eq.f32.partialorder %v2152, %v2154
      %v2156 = vsel %vm2155, %v2151, inf
      %2157 = vmin.xlane.f32.xlu0 %v2156
      %v2158 = vpop.xlane.xlu0 %2157
      %v2159 = vcvt.f32.s32 %v2158
      %v2160 = vcvt.f32.s32 %v2154
      %v2161 = vshll.u32 %v2160, 16
      %v2162 = vadd.s32 %v2161, %v2159
      %v2163 = vand.u32 %v1988, 65535
      %v2164 = vshra.s32 %v1988, 16
      %v2165 = vcvt.s32.f32 %v2163
      %v2166 = vcvt.s32.f32 %v2164
      %2167 = vmin.xlane.f32.xlu0 %v2166
      %v2168 = vpop.xlane.xlu0 %2167
      %vm2169 = vcmp.eq.f32.partialorder %v2166, %v2168
      %v2170 = vsel %vm2169, %v2165, inf
      %2171 = vmin.xlane.f32.xlu0 %v2170
      %v2172 = vpop.xlane.xlu0 %2171
      %v2173 = vcvt.f32.s32 %v2172
      %v2174 = vcvt.f32.s32 %v2168
      %v2175 = vshll.u32 %v2174, 16
      %v2176 = vadd.s32 %v2175, %v2173
      %v2177 = vand.u32 %v1989, 65535
      %v2178 = vshra.s32 %v1989, 16
      %v2179 = vcvt.s32.f32 %v2177
      %v2180 = vcvt.s32.f32 %v2178
      %2181 = vmin.xlane.f32.xlu0 %v2180
      %v2182 = vpop.xlane.xlu0 %2181
      %vm2183 = vcmp.eq.f32.partialorder %v2180, %v2182
      %v2184 = vsel %vm2183, %v2179, inf
      %2185 = vmin.xlane.f32.xlu0 %v2184
      %v2186 = vpop.xlane.xlu0 %2185
      %v2187 = vcvt.f32.s32 %v2186
      %v2188 = vcvt.f32.s32 %v2182
      %v2189 = vshll.u32 %v2188, 16
      %v2190 = vadd.s32 %v2189, %v2187
      %v2191 = vand.u32 %v1990, 65535
      %v2192 = vshra.s32 %v1990, 16
      %v2193 = vcvt.s32.f32 %v2191
      %v2194 = vcvt.s32.f32 %v2192
      %2195 = vmin.xlane.f32.xlu0 %v2194
      %v2196 = vpop.xlane.xlu0 %2195
      %vm2197 = vcmp.eq.f32.partialorder %v2194, %v2196
      %v2198 = vsel %vm2197, %v2193, inf
      %2199 = vmin.xlane.f32.xlu0 %v2198
      %v2200 = vpop.xlane.xlu0 %2199
      %v2201 = vcvt.f32.s32 %v2200
      %v2202 = vcvt.f32.s32 %v2196
      %v2203 = vshll.u32 %v2202, 16
      %v2204 = vadd.s32 %v2203, %v2201
      %v2205 = vand.u32 %v1991, 65535
      %v2206 = vshra.s32 %v1991, 16
      %v2207 = vcvt.s32.f32 %v2205
      %v2208 = vcvt.s32.f32 %v2206
      %2209 = vmin.xlane.f32.xlu0 %v2208
      %v2210 = vpop.xlane.xlu0 %2209
      %vm2211 = vcmp.eq.f32.partialorder %v2208, %v2210
      %v2212 = vsel %vm2211, %v2207, inf
      %2213 = vmin.xlane.f32.xlu0 %v2212
      %v2214 = vpop.xlane.xlu0 %2213
      %v2215 = vcvt.f32.s32 %v2214
      %v2216 = vcvt.f32.s32 %v2210
      %v2217 = vshll.u32 %v2216, 16
      %v2218 = vadd.s32 %v2217, %v2215
      %v2219 = vand.u32 %v1992, 65535
      %v2220 = vshra.s32 %v1992, 16
      %v2221 = vcvt.s32.f32 %v2219
      %v2222 = vcvt.s32.f32 %v2220
      %2223 = vmin.xlane.f32.xlu0 %v2222
      %v2224 = vpop.xlane.xlu0 %2223
      %vm2225 = vcmp.eq.f32.partialorder %v2222, %v2224
      %v2226 = vsel %vm2225, %v2221, inf
      %2227 = vmin.xlane.f32.xlu0 %v2226
      %v2228 = vpop.xlane.xlu0 %2227
      %v2229 = vcvt.f32.s32 %v2228
      %v2230 = vcvt.f32.s32 %v2224
      %v2231 = vshll.u32 %v2230, 16
      %v2232 = vadd.s32 %v2231, %v2229
      %v2233 = vand.u32 %v1993, 65535
      %v2234 = vshra.s32 %v1993, 16
      %v2235 = vcvt.s32.f32 %v2233
      %v2236 = vcvt.s32.f32 %v2234
      %2237 = vmin.xlane.f32.xlu0 %v2236
      %v2238 = vpop.xlane.xlu0 %2237
      %vm2239 = vcmp.eq.f32.partialorder %v2236, %v2238
      %v2240 = vsel %vm2239, %v2235, inf
      %2241 = vmin.xlane.f32.xlu0 %v2240
      %v2242 = vpop.xlane.xlu0 %2241
      %v2243 = vcvt.f32.s32 %v2242
      %v2244 = vcvt.f32.s32 %v2238
      %v2245 = vshll.u32 %v2244, 16
      %v2246 = vadd.s32 %v2245, %v2243
      %v2247 = vand.u32 %v1994, 65535
      %v2248 = vshra.s32 %v1994, 16
      %v2249 = vcvt.s32.f32 %v2247
      %v2250 = vcvt.s32.f32 %v2248
      %2251 = vmin.xlane.f32.xlu0 %v2250
      %v2252 = vpop.xlane.xlu0 %2251
      %vm2253 = vcmp.eq.f32.partialorder %v2250, %v2252
      %v2254 = vsel %vm2253, %v2249, inf
      %2255 = vmin.xlane.f32.xlu0 %v2254
      %v2256 = vpop.xlane.xlu0 %2255
      %v2257 = vcvt.f32.s32 %v2256
      %v2258 = vcvt.f32.s32 %v2252
      %v2259 = vshll.u32 %v2258, 16
      %v2260 = vadd.s32 %v2259, %v2257
      %v2261 = vand.u32 %v1995, 65535
      %v2262 = vshra.s32 %v1995, 16
      %v2263 = vcvt.s32.f32 %v2261
      %v2264 = vcvt.s32.f32 %v2262
      %2265 = vmin.xlane.f32.xlu0 %v2264
      %v2266 = vpop.xlane.xlu0 %2265
      %vm2267 = vcmp.eq.f32.partialorder %v2264, %v2266
      %v2268 = vsel %vm2267, %v2263, inf
      %2269 = vmin.xlane.f32.xlu0 %v2268
      %v2270 = vpop.xlane.xlu0 %2269
      %v2271 = vcvt.f32.s32 %v2270
      %v2272 = vcvt.f32.s32 %v2266
      %v2273 = vshll.u32 %v2272, 16
      %v2274 = vadd.s32 %v2273, %v2271
      %v2275 = vand.u32 %v1996, 65535
      %v2276 = vshra.s32 %v1996, 16
      %v2277 = vcvt.s32.f32 %v2275
      %v2278 = vcvt.s32.f32 %v2276
      %2279 = vmin.xlane.f32.xlu0 %v2278
      %v2280 = vpop.xlane.xlu0 %2279
      %vm2281 = vcmp.eq.f32.partialorder %v2278, %v2280
      %v2282 = vsel %vm2281, %v2277, inf
      %2283 = vmin.xlane.f32.xlu0 %v2282
      %v2284 = vpop.xlane.xlu0 %2283
      %v2285 = vcvt.f32.s32 %v2284
      %v2286 = vcvt.f32.s32 %v2280
      %v2287 = vshll.u32 %v2286, 16
      %v2288 = vadd.s32 %v2287, %v2285
      %v2289 = vand.u32 %v1997, 65535
      %v2290 = vshra.s32 %v1997, 16
      %v2291 = vcvt.s32.f32 %v2289
      %v2292 = vcvt.s32.f32 %v2290
      %2293 = vmin.xlane.f32.xlu0 %v2292
      %v2294 = vpop.xlane.xlu0 %2293
      %vm2295 = vcmp.eq.f32.partialorder %v2292, %v2294
      %v2296 = vsel %vm2295, %v2291, inf
      %2297 = vmin.xlane.f32.xlu0 %v2296
      %v2298 = vpop.xlane.xlu0 %2297
      %v2299 = vcvt.f32.s32 %v2298
      %v2300 = vcvt.f32.s32 %v2294
      %v2301 = vshll.u32 %v2300, 16
      %v2302 = vadd.s32 %v2301, %v2299
      %v2303 = vand.u32 %v1998, 65535
      %v2304 = vshra.s32 %v1998, 16
      %v2305 = vcvt.s32.f32 %v2303
      %v2306 = vcvt.s32.f32 %v2304
      %2307 = vmin.xlane.f32.xlu0 %v2306
      %v2308 = vpop.xlane.xlu0 %2307
      %vm2309 = vcmp.eq.f32.partialorder %v2306, %v2308
      %v2310 = vsel %vm2309, %v2305, inf
      %2311 = vmin.xlane.f32.xlu0 %v2310
      %v2312 = vpop.xlane.xlu0 %2311
      %v2313 = vcvt.f32.s32 %v2312
      %v2314 = vcvt.f32.s32 %v2308
      %v2315 = vshll.u32 %v2314, 16
      %v2316 = vadd.s32 %v2315, %v2313
      %v2317 = vand.u32 %v1999, 65535
      %v2318 = vshra.s32 %v1999, 16
      %v2319 = vcvt.s32.f32 %v2317
      %v2320 = vcvt.s32.f32 %v2318
      %2321 = vmin.xlane.f32.xlu0 %v2320
      %v2322 = vpop.xlane.xlu0 %2321
      %vm2323 = vcmp.eq.f32.partialorder %v2320, %v2322
      %v2324 = vsel %vm2323, %v2319, inf
      %2325 = vmin.xlane.f32.xlu0 %v2324
      %v2326 = vpop.xlane.xlu0 %2325
      %v2327 = vcvt.f32.s32 %v2326
      %v2328 = vcvt.f32.s32 %v2322
      %v2329 = vshll.u32 %v2328, 16
      %v2330 = vadd.s32 %v2329, %v2327
      %v2331 = vand.u32 %v2000, 65535
      %v2332 = vshra.s32 %v2000, 16
      %v2333 = vcvt.s32.f32 %v2331
      %v2334 = vcvt.s32.f32 %v2332
      %2335 = vmin.xlane.f32.xlu0 %v2334
      %v2336 = vpop.xlane.xlu0 %2335
      %vm2337 = vcmp.eq.f32.partialorder %v2334, %v2336
      %v2338 = vsel %vm2337, %v2333, inf
      %2339 = vmin.xlane.f32.xlu0 %v2338
      %v2340 = vpop.xlane.xlu0 %2339
      %v2341 = vcvt.f32.s32 %v2340
      %v2342 = vcvt.f32.s32 %v2336
      %v2343 = vshll.u32 %v2342, 16
      %v2344 = vadd.s32 %v2343, %v2341
      %v2345 = vand.u32 %v2001, 65535
      %v2346 = vshra.s32 %v2001, 16
      %v2347 = vcvt.s32.f32 %v2345
      %v2348 = vcvt.s32.f32 %v2346
      %2349 = vmin.xlane.f32.xlu0 %v2348
      %v2350 = vpop.xlane.xlu0 %2349
      %vm2351 = vcmp.eq.f32.partialorder %v2348, %v2350
      %v2352 = vsel %vm2351, %v2347, inf
      %2353 = vmin.xlane.f32.xlu0 %v2352
      %v2354 = vpop.xlane.xlu0 %2353
      %v2355 = vcvt.f32.s32 %v2354
      %v2356 = vcvt.f32.s32 %v2350
      %v2357 = vshll.u32 %v2356, 16
      %v2358 = vadd.s32 %v2357, %v2355
      %v2359 = vand.u32 %v2002, 65535
      %v2360 = vshra.s32 %v2002, 16
      %v2361 = vcvt.s32.f32 %v2359
      %v2362 = vcvt.s32.f32 %v2360
      %2363 = vmin.xlane.f32.xlu0 %v2362
      %v2364 = vpop.xlane.xlu0 %2363
      %vm2365 = vcmp.eq.f32.partialorder %v2362, %v2364
      %v2366 = vsel %vm2365, %v2361, inf
      %2367 = vmin.xlane.f32.xlu0 %v2366
      %v2368 = vpop.xlane.xlu0 %2367
      %v2369 = vcvt.f32.s32 %v2368
      %v2370 = vcvt.f32.s32 %v2364
      %v2371 = vshll.u32 %v2370, 16
      %v2372 = vadd.s32 %v2371, %v2369
      %v2373 = vand.u32 %v2003, 65535
      %v2374 = vshra.s32 %v2003, 16
      %v2375 = vcvt.s32.f32 %v2373
      %v2376 = vcvt.s32.f32 %v2374
      %2377 = vmin.xlane.f32.xlu0 %v2376
      %v2378 = vpop.xlane.xlu0 %2377
      %vm2379 = vcmp.eq.f32.partialorder %v2376, %v2378
      %v2380 = vsel %vm2379, %v2375, inf
      %2381 = vmin.xlane.f32.xlu0 %v2380
      %v2382 = vpop.xlane.xlu0 %2381
      %v2383 = vcvt.f32.s32 %v2382
      %v2384 = vcvt.f32.s32 %v2378
      %v2385 = vshll.u32 %v2384, 16
      %v2386 = vadd.s32 %v2385, %v2383
      %v2387 = vand.u32 %v2004, 65535
      %v2388 = vshra.s32 %v2004, 16
      %v2389 = vcvt.s32.f32 %v2387
      %v2390 = vcvt.s32.f32 %v2388
      %2391 = vmin.xlane.f32.xlu0 %v2390
      %v2392 = vpop.xlane.xlu0 %2391
      %vm2393 = vcmp.eq.f32.partialorder %v2390, %v2392
      %v2394 = vsel %vm2393, %v2389, inf
      %2395 = vmin.xlane.f32.xlu0 %v2394
      %v2396 = vpop.xlane.xlu0 %2395
      %v2397 = vcvt.f32.s32 %v2396
      %v2398 = vcvt.f32.s32 %v2392
      %v2399 = vshll.u32 %v2398, 16
      %v2400 = vadd.s32 %v2399, %v2397
      %v2401 = vand.u32 %v2005, 65535
      %v2402 = vshra.s32 %v2005, 16
      %v2403 = vcvt.s32.f32 %v2401
      %v2404 = vcvt.s32.f32 %v2402
      %2405 = vmin.xlane.f32.xlu0 %v2404
      %v2406 = vpop.xlane.xlu0 %2405
      %vm2407 = vcmp.eq.f32.partialorder %v2404, %v2406
      %v2408 = vsel %vm2407, %v2403, inf
      %2409 = vmin.xlane.f32.xlu0 %v2408
      %v2410 = vpop.xlane.xlu0 %2409
      %v2411 = vcvt.f32.s32 %v2410
      %v2412 = vcvt.f32.s32 %v2406
      %v2413 = vshll.u32 %v2412, 16
      %v2414 = vadd.s32 %v2413, %v2411
      %v2415 = vand.u32 %v2006, 65535
      %v2416 = vshra.s32 %v2006, 16
      %v2417 = vcvt.s32.f32 %v2415
      %v2418 = vcvt.s32.f32 %v2416
      %2419 = vmin.xlane.f32.xlu0 %v2418
      %v2420 = vpop.xlane.xlu0 %2419
      %vm2421 = vcmp.eq.f32.partialorder %v2418, %v2420
      %v2422 = vsel %vm2421, %v2417, inf
      %2423 = vmin.xlane.f32.xlu0 %v2422
      %v2424 = vpop.xlane.xlu0 %2423
      %v2425 = vcvt.f32.s32 %v2424
      %v2426 = vcvt.f32.s32 %v2420
      %v2427 = vshll.u32 %v2426, 16
      %v2428 = vadd.s32 %v2427, %v2425
      %v2429 = vand.u32 %v2007, 65535
      %v2430 = vshra.s32 %v2007, 16
      %v2431 = vcvt.s32.f32 %v2429
      %v2432 = vcvt.s32.f32 %v2430
      %2433 = vmin.xlane.f32.xlu0 %v2432
      %v2434 = vpop.xlane.xlu0 %2433
      %vm2435 = vcmp.eq.f32.partialorder %v2432, %v2434
      %v2436 = vsel %vm2435, %v2431, inf
      %2437 = vmin.xlane.f32.xlu0 %v2436
      %v2438 = vpop.xlane.xlu0 %2437
      %v2439 = vcvt.f32.s32 %v2438
      %v2440 = vcvt.f32.s32 %v2434
      %v2441 = vshll.u32 %v2440, 16
      %v2442 = vadd.s32 %v2441, %v2439
      %v2443 = vand.u32 %v2008, 65535
      %v2444 = vshra.s32 %v2008, 16
      %v2445 = vcvt.s32.f32 %v2443
      %v2446 = vcvt.s32.f32 %v2444
      %2447 = vmin.xlane.f32.xlu0 %v2446
      %v2448 = vpop.xlane.xlu0 %2447
      %vm2449 = vcmp.eq.f32.partialorder %v2446, %v2448
      %v2450 = vsel %vm2449, %v2445, inf
      %2451 = vmin.xlane.f32.xlu0 %v2450
      %v2452 = vpop.xlane.xlu0 %2451
      %v2453 = vcvt.f32.s32 %v2452
      %v2454 = vcvt.f32.s32 %v2448
      %v2455 = vshll.u32 %v2454, 16
      %v2456 = vadd.s32 %v2455, %v2453
      %vm2457 = vcmp.eq.s32.totalorder %v1944, %v2022
      %vm2458 = vcmp.eq.s32.totalorder %v1944, %v2036
      %vm2459 = vcmp.eq.s32.totalorder %v1944, %v2050
      %vm2460 = vcmp.eq.s32.totalorder %v1944, %v2064
      %vm2461 = vcmp.eq.s32.totalorder %v1944, %v2078
      %vm2462 = vcmp.eq.s32.totalorder %v1944, %v2092
      %vm2463 = vcmp.eq.s32.totalorder %v1944, %v2106
      %vm2464 = vcmp.eq.s32.totalorder %v1944, %v2120
      %vm2465 = vcmp.eq.s32.totalorder %v1944, %v2134
      %vm2466 = vcmp.eq.s32.totalorder %v1944, %v2148
      %vm2467 = vcmp.eq.s32.totalorder %v1944, %v2162
      %vm2468 = vcmp.eq.s32.totalorder %v1944, %v2176
      %vm2469 = vcmp.eq.s32.totalorder %v1944, %v2190
      %vm2470 = vcmp.eq.s32.totalorder %v1944, %v2204
      %vm2471 = vcmp.eq.s32.totalorder %v1944, %v2218
      %vm2472 = vcmp.eq.s32.totalorder %v1944, %v2232
      %vm2473 = vcmp.eq.s32.totalorder %v1944, %v2246
      %vm2474 = vcmp.eq.s32.totalorder %v1944, %v2260
      %vm2475 = vcmp.eq.s32.totalorder %v1944, %v2274
      %vm2476 = vcmp.eq.s32.totalorder %v1944, %v2288
      %vm2477 = vcmp.eq.s32.totalorder %v1944, %v2302
      %vm2478 = vcmp.eq.s32.totalorder %v1944, %v2316
      %vm2479 = vcmp.eq.s32.totalorder %v1944, %v2330
      %vm2480 = vcmp.eq.s32.totalorder %v1944, %v2344
      %vm2481 = vcmp.eq.s32.totalorder %v1944, %v2358
      %vm2482 = vcmp.eq.s32.totalorder %v1944, %v2372
      %vm2483 = vcmp.eq.s32.totalorder %v1944, %v2386
      %vm2484 = vcmp.eq.s32.totalorder %v1944, %v2400
      %vm2485 = vcmp.eq.s32.totalorder %v1944, %v2414
      %vm2486 = vcmp.eq.s32.totalorder %v1944, %v2428
      %vm2487 = vcmp.eq.s32.totalorder %v1944, %v2442
      %vm2488 = vcmp.eq.s32.totalorder %v1944, %v2456
      %v2489 = vsel %vm2457, 1, 0
      %v2490 = vsel %vm2458, 1, 0
      %v2491 = vsel %vm2459, 1, 0
      %v2492 = vsel %vm2460, 1, 0
      %v2493 = vsel %vm2461, 1, 0
      %v2494 = vsel %vm2462, 1, 0
      %v2495 = vsel %vm2463, 1, 0
      %v2496 = vsel %vm2464, 1, 0
      %v2497 = vsel %vm2465, 1, 0
      %v2498 = vsel %vm2466, 1, 0
      %v2499 = vsel %vm2467, 1, 0
      %v2500 = vsel %vm2468, 1, 0
      %v2501 = vsel %vm2469, 1, 0
      %v2502 = vsel %vm2470, 1, 0
      %v2503 = vsel %vm2471, 1, 0
      %v2504 = vsel %vm2472, 1, 0
      %v2505 = vsel %vm2473, 1, 0
      %v2506 = vsel %vm2474, 1, 0
      %v2507 = vsel %vm2475, 1, 0
      %v2508 = vsel %vm2476, 1, 0
      %v2509 = vsel %vm2477, 1, 0
      %v2510 = vsel %vm2478, 1, 0
      %v2511 = vsel %vm2479, 1, 0
      %v2512 = vsel %vm2480, 1, 0
      %v2513 = vsel %vm2481, 1, 0
      %v2514 = vsel %vm2482, 1, 0
      %v2515 = vsel %vm2483, 1, 0
      %v2516 = vsel %vm2484, 1, 0
      %v2517 = vsel %vm2485, 1, 0
      %v2518 = vsel %vm2486, 1, 0
      %v2519 = vsel %vm2487, 1, 0
      %v2520 = vsel %vm2488, 1, 0
      %v2521 = vcvt.s32.f32 %v2489
      %v2522 = vcvt.s32.f32 %v2490
      %v2523 = vcvt.s32.f32 %v2491
      %v2524 = vcvt.s32.f32 %v2492
      %v2525 = vcvt.s32.f32 %v2493
      %v2526 = vcvt.s32.f32 %v2494
      %v2527 = vcvt.s32.f32 %v2495
      %v2528 = vcvt.s32.f32 %v2496
      %v2529 = vcvt.s32.f32 %v2497
      %v2530 = vcvt.s32.f32 %v2498
      %v2531 = vcvt.s32.f32 %v2499
      %v2532 = vcvt.s32.f32 %v2500
      %v2533 = vcvt.s32.f32 %v2501
      %v2534 = vcvt.s32.f32 %v2502
      %v2535 = vcvt.s32.f32 %v2503
      %v2536 = vcvt.s32.f32 %v2504
      %v2537 = vcvt.s32.f32 %v2505
      %v2538 = vcvt.s32.f32 %v2506
      %v2539 = vcvt.s32.f32 %v2507
      %v2540 = vcvt.s32.f32 %v2508
      %v2541 = vcvt.s32.f32 %v2509
      %v2542 = vcvt.s32.f32 %v2510
      %v2543 = vcvt.s32.f32 %v2511
      %v2544 = vcvt.s32.f32 %v2512
      %v2545 = vcvt.s32.f32 %v2513
      %v2546 = vcvt.s32.f32 %v2514
      %v2547 = vcvt.s32.f32 %v2515
      %v2548 = vcvt.s32.f32 %v2516
      %v2549 = vcvt.s32.f32 %v2517
      %v2550 = vcvt.s32.f32 %v2518
      %v2551 = vcvt.s32.f32 %v2519
      %v2552 = vcvt.s32.f32 %v2520
      %v2553 = vpack.c.bf16 %v2522, %v2521
      %v2554 = vpack.c.bf16 %v2524, %v2523
      %v2555 = vpack.c.bf16 %v2526, %v2525
      %v2556 = vpack.c.bf16 %v2528, %v2527
      %v2557 = vpack.c.bf16 %v2530, %v2529
      %v2558 = vpack.c.bf16 %v2532, %v2531
      %v2559 = vpack.c.bf16 %v2534, %v2533
      %v2560 = vpack.c.bf16 %v2536, %v2535
      %v2561 = vpack.c.bf16 %v2538, %v2537
      %v2562 = vpack.c.bf16 %v2540, %v2539
      %v2563 = vpack.c.bf16 %v2542, %v2541
      %v2564 = vpack.c.bf16 %v2544, %v2543
      %v2565 = vpack.c.bf16 %v2546, %v2545
      %v2566 = vpack.c.bf16 %v2548, %v2547
      %v2567 = vpack.c.bf16 %v2550, %v2549
      %v2568 = vpack.c.bf16 %v2552, %v2551
      %v2569 = vsub.f32 %v1199, %v1464
      %v2570 = vsub.f32 %v1200, %v1466
      %v2571 = vsub.f32 %v1201, %v1468
      %v2572 = vsub.f32 %v1202, %v1470
      %v2573 = vsub.f32 %v1203, %v1472
      %v2574 = vsub.f32 %v1204, %v1474
      %v2575 = vsub.f32 %v1205, %v1476
      %v2576 = vsub.f32 %v1206, %v1478
      %v2577 = vsub.f32 %v1207, %v1480
      %v2578 = vsub.f32 %v1208, %v1482
      %v2579 = vsub.f32 %v1209, %v1484
      %v2580 = vsub.f32 %v1210, %v1486
      %v2581 = vsub.f32 %v1211, %v1488
      %v2582 = vsub.f32 %v1212, %v1490
      %v2583 = vsub.f32 %v1213, %v1492
      %v2584 = vsub.f32 %v1214, %v1494
      %v2585 = vsub.f32 %v1215, %v1496
      %v2586 = vsub.f32 %v1216, %v1498
      %v2587 = vsub.f32 %v1217, %v1500
      %v2588 = vsub.f32 %v1218, %v1502
      %v2589 = vsub.f32 %v1219, %v1504
      %v2590 = vsub.f32 %v1220, %v1506
      %v2591 = vsub.f32 %v1221, %v1508
      %v2592 = vsub.f32 %v1222, %v1510
      %v2593 = vsub.f32 %v1223, %v1512
      %v2594 = vsub.f32 %v1224, %v1514
      %v2595 = vsub.f32 %v1225, %v1516
      %v2596 = vsub.f32 %v1226, %v1518
      %v2597 = vsub.f32 %v1227, %v1520
      %v2598 = vsub.f32 %v1228, %v1522
      %v2599 = vsub.f32 %v1229, %v1524
      %v2600 = vsub.f32 %v1230, %v1526
      %v2601 = vld [vmem:[%s10] sm:$0x3]
      %v2602 = vld [vmem:[%s11] sm:$0xf]
      %2604 = vset.pattern.permute.xlu0 0
      %2605 = vperm.xlu0 %2604, %v2602
      %v2606 = vpop.permute.xlu0 %2605
      %2608 = vmatprep.subr.bf16.mxu0 0
      %2609 = vmatpush1.bf16.xpose.msra.mxu0 %v2560
      %2610 = vmatprep.subr.bf16.mxu0 0
      %2611 = vmatpush1.bf16.xpose.msra.mxu0 %v2559
      %2612 = vmatprep.subr.bf16.mxu0 0
      %2613 = vmatpush1.bf16.xpose.msra.mxu0 %v2558
      %2614 = vmatprep.subr.bf16.mxu0 0
      %2615 = vmatpush1.bf16.xpose.msra.mxu0 %v2557
      %2616 = vmatprep.subr.bf16.mxu0 0
      %2617 = vmatpush1.bf16.xpose.msra.mxu0 %v2556
      %2618 = vmatprep.subr.bf16.mxu0 0
      %2619 = vmatpush1.bf16.xpose.msra.mxu0 %v2555
      %2620 = vmatprep.subr.bf16.mxu0 0
      %2621 = vmatpush1.bf16.xpose.msra.mxu0 %v2554
      %2622 = vmatprep.subr.bf16.mxu0 0
      %2623 = vmatpush1.bf16.xpose.msra.mxu0 %v2553
      %2624 = vmatprep.subr.bf16.mxu0 0
      %2625 = vmatpush2.bf16.xpose.msra.mxu0 %v2568
      %2626 = vmatprep.subr.bf16.mxu0 0
      %2627 = vmatpush2.bf16.xpose.msra.mxu0 %v2567
      %2628 = vmatprep.subr.bf16.mxu0 0
      %2629 = vmatpush2.bf16.xpose.msra.mxu0 %v2566
      %2630 = vmatprep.subr.bf16.mxu0 0
      %2631 = vmatpush2.bf16.xpose.msra.mxu0 %v2565
      %2632 = vmatprep.subr.bf16.mxu0 0
      %2633 = vmatpush2.bf16.xpose.msra.mxu0 %v2564
      %2634 = vmatprep.subr.bf16.mxu0 0
      %2635 = vmatpush2.bf16.xpose.msra.mxu0 %v2563
      %2636 = vmatprep.subr.bf16.mxu0 0
      %2637 = vmatpush2.bf16.xpose.msra.mxu0 %v2562
      %2638 = vmatprep.subr.bf16.mxu0 0
      %2639 = vmatpush2.bf16.xpose.msra.mxu0 %v2561
      %2640 = vmatprep.mubr.bf16.mxu0 0
      %2641 = vmatmul.mubr.bf16.gmra.mxu0 %v2601
      %v2642 = vpop.f32.mrf.mxu0
      %v2643 = vadd.f32 %v2606, %v2642
      %v2644 = vpop.f32.mrf.mxu0
      %v2645 = vadd.f32 %v2606, %v2644
      %v2646 = vpop.f32.mrf.mxu0
      %v2647 = vpop.f32.mrf.mxu0
      %2648 = vdwg.mxu0
      %v2649 = vxor.u32 %v2643, 2147483648
      %v2650 = vxor.u32 %v2645, 2147483648
      %v2651 = vmul.f32 %v2649, 1.442695
      %v2652 = vpow.pop %v2651
      %v2653 = vmul.f32 %v2650, 1.442695
      %v2654 = vpow.pop %v2653
      %v2655 = vadd.f32 %v2652, 1.0
      %v2656 = vadd.f32 %v2654, 1.0
      %v2657 = vrcp.pop %v2655
      %v2658 = vmul.f32 1.0, %v2657
      %v2659 = vrcp.pop %v2656
      %v2660 = vmul.f32 1.0, %v2659
      %v2661 = vld [vmem:[%s500] sm:$0xff]
      %v2663 = vcombine.high %v2661, %v2661
      %v2665 = vsub.f32 %v2658, %v2661
      %v2666 = vsub.f32 %v2660, %v2663
      %v2667 = vmul.f32 %v2665, %v2665
      %v2668 = vmul.f32 %v2666, %v2666
      %v2669 = vcvt.s32.f32 %v1944
      %v2670 = vpack.c.bf16 %v2669, %v2669
      %2671 = vmatprep.subr.bf16.mxu0 0
      %2672 = vmatpush1.bf16.xpose.msra.mxu0 %v2560
      %2673 = vmatprep.subr.bf16.mxu0 0
      %2674 = vmatpush1.bf16.xpose.msra.mxu0 %v2559
      %2675 = vmatprep.subr.bf16.mxu0 0
      %2676 = vmatpush1.bf16.xpose.msra.mxu0 %v2558
      %2677 = vmatprep.subr.bf16.mxu0 0
      %2678 = vmatpush1.bf16.xpose.msra.mxu0 %v2557
      %2679 = vmatprep.subr.bf16.mxu0 0
      %2680 = vmatpush1.bf16.xpose.msra.mxu0 %v2556
      %2681 = vmatprep.subr.bf16.mxu0 0
      %2682 = vmatpush1.bf16.xpose.msra.mxu0 %v2555
      %2683 = vmatprep.subr.bf16.mxu0 0
      %2684 = vmatpush1.bf16.xpose.msra.mxu0 %v2554
      %2685 = vmatprep.subr.bf16.mxu0 0
      %2686 = vmatpush1.bf16.xpose.msra.mxu0 %v2553
      %2687 = vmatprep.subr.bf16.mxu0 0
      %2688 = vmatpush2.bf16.xpose.msra.mxu0 %v2568
      %2689 = vmatprep.subr.bf16.mxu0 0
      %2690 = vmatpush2.bf16.xpose.msra.mxu0 %v2567
      %2691 = vmatprep.subr.bf16.mxu0 0
      %2692 = vmatpush2.bf16.xpose.msra.mxu0 %v2566
      %2693 = vmatprep.subr.bf16.mxu0 0
      %2694 = vmatpush2.bf16.xpose.msra.mxu0 %v2565
      %2695 = vmatprep.subr.bf16.mxu0 0
      %2696 = vmatpush2.bf16.xpose.msra.mxu0 %v2564
      %2697 = vmatprep.subr.bf16.mxu0 0
      %2698 = vmatpush2.bf16.xpose.msra.mxu0 %v2563
      %2699 = vmatprep.subr.bf16.mxu0 0
      %2700 = vmatpush2.bf16.xpose.msra.mxu0 %v2562
      %2701 = vmatprep.subr.bf16.mxu0 0
      %2702 = vmatpush2.bf16.xpose.msra.mxu0 %v2561
      %2703 = vmatprep.mubr.bf16.mxu0 0
      %2704 = vmatmul.mubr.bf16.gmra.mxu0 %v2670
      %v2705 = vpop.f32.mrf.mxu0
      %v2706 = vadd.f32 0.0, %v2705
      %v2707 = vpop.f32.mrf.mxu0
      %v2708 = vadd.f32 0.0, %v2707
      %v2709 = vpop.f32.mrf.mxu0
      %v2710 = vpop.f32.mrf.mxu0
      %2711 = vdwg.mxu0
      %s2712 = smul.u32 %s28, 256
      %v2713 = vlaneseq
      %v2714 = vshrl.u32 %v2713, 7
      %v2715 = vadd.s32 %v2714, 8
      %v2716 = vadd.s32 %v2714, 16
      %v2717 = vadd.s32 %v2714, 24
      %v2718 = vadd.s32 %v2714, 32
      %v2719 = vadd.s32 %v2714, 40
      %v2720 = vadd.s32 %v2714, 48
      %v2721 = vadd.s32 %v2714, 56
      %v2722 = vadd.s32 %v2714, 64
      %v2723 = vadd.s32 %v2714, 72
      %v2724 = vadd.s32 %v2714, 80
      %v2725 = vadd.s32 %v2714, 88
      %v2726 = vadd.s32 %v2714, 96
      %v2727 = vadd.s32 %v2714, 104
      %v2728 = vadd.s32 %v2714, 112
      %v2729 = vadd.s32 %v2714, 120
      %v2730 = vadd.s32 %v2714, 128
      %v2731 = vadd.s32 %v2714, 136
      %v2732 = vadd.s32 %v2714, 144
      %v2733 = vadd.s32 %v2714, 152
      %v2734 = vadd.s32 %v2714, 160
      %v2735 = vadd.s32 %v2714, 168
      %v2736 = vadd.s32 %v2714, 176
      %v2737 = vadd.s32 %v2714, 184
      %v2738 = vadd.s32 %v2714, 192
      %v2739 = vadd.s32 %v2714, 200
      %v2740 = vadd.s32 %v2714, 208
      %v2741 = vadd.s32 %v2714, 216
      %v2742 = vadd.s32 %v2714, 224
      %v2743 = vadd.s32 %v2714, 232
      %v2744 = vadd.s32 %v2714, 240
      %v2745 = vadd.s32 %v2714, 248
      %v2746 = vstv %s2712
      %v2747 = vadd.s32 %v2746, %v2714
      %v2748 = vadd.s32 %v2746, %v2715
      %v2749 = vadd.s32 %v2746, %v2716
      %v2750 = vadd.s32 %v2746, %v2717
      %v2751 = vadd.s32 %v2746, %v2718
      %v2752 = vadd.s32 %v2746, %v2719
      %v2753 = vadd.s32 %v2746, %v2720
      %v2754 = vadd.s32 %v2746, %v2721
      %v2755 = vadd.s32 %v2746, %v2722
      %v2756 = vadd.s32 %v2746, %v2723
      %v2757 = vadd.s32 %v2746, %v2724
      %v2758 = vadd.s32 %v2746, %v2725
      %v2759 = vadd.s32 %v2746, %v2726
      %v2760 = vadd.s32 %v2746, %v2727
      %v2761 = vadd.s32 %v2746, %v2728
      %v2762 = vadd.s32 %v2746, %v2729
      %v2763 = vadd.s32 %v2746, %v2730
      %v2764 = vadd.s32 %v2746, %v2731
      %v2765 = vadd.s32 %v2746, %v2732
      %v2766 = vadd.s32 %v2746, %v2733
      %v2767 = vadd.s32 %v2746, %v2734
      %v2768 = vadd.s32 %v2746, %v2735
      %v2769 = vadd.s32 %v2746, %v2736
      %v2770 = vadd.s32 %v2746, %v2737
      %v2771 = vadd.s32 %v2746, %v2738
      %v2772 = vadd.s32 %v2746, %v2739
      %v2773 = vadd.s32 %v2746, %v2740
      %v2774 = vadd.s32 %v2746, %v2741
      %v2775 = vadd.s32 %v2746, %v2742
      %v2776 = vadd.s32 %v2746, %v2743
      %v2777 = vadd.s32 %v2746, %v2744
      %v2778 = vadd.s32 %v2746, %v2745
      %v2779 = vstv %s518
      %vm2780 = vcmp.lt.s32.totalorder %v2747, %v2779
      %vm2781 = vcmp.lt.s32.totalorder %v2748, %v2779
      %vm2782 = vcmp.lt.s32.totalorder %v2749, %v2779
      %vm2783 = vcmp.lt.s32.totalorder %v2750, %v2779
      %vm2784 = vcmp.lt.s32.totalorder %v2751, %v2779
      %vm2785 = vcmp.lt.s32.totalorder %v2752, %v2779
      %vm2786 = vcmp.lt.s32.totalorder %v2753, %v2779
      %vm2787 = vcmp.lt.s32.totalorder %v2754, %v2779
      %vm2788 = vcmp.lt.s32.totalorder %v2755, %v2779
      %vm2789 = vcmp.lt.s32.totalorder %v2756, %v2779
      %vm2790 = vcmp.lt.s32.totalorder %v2757, %v2779
      %vm2791 = vcmp.lt.s32.totalorder %v2758, %v2779
      %vm2792 = vcmp.lt.s32.totalorder %v2759, %v2779
      %vm2793 = vcmp.lt.s32.totalorder %v2760, %v2779
      %vm2794 = vcmp.lt.s32.totalorder %v2761, %v2779
      %vm2795 = vcmp.lt.s32.totalorder %v2762, %v2779
      %vm2796 = vcmp.lt.s32.totalorder %v2763, %v2779
      %vm2797 = vcmp.lt.s32.totalorder %v2764, %v2779
      %vm2798 = vcmp.lt.s32.totalorder %v2765, %v2779
      %vm2799 = vcmp.lt.s32.totalorder %v2766, %v2779
      %vm2800 = vcmp.lt.s32.totalorder %v2767, %v2779
      %vm2801 = vcmp.lt.s32.totalorder %v2768, %v2779
      %vm2802 = vcmp.lt.s32.totalorder %v2769, %v2779
      %vm2803 = vcmp.lt.s32.totalorder %v2770, %v2779
      %vm2804 = vcmp.lt.s32.totalorder %v2771, %v2779
      %vm2805 = vcmp.lt.s32.totalorder %v2772, %v2779
      %vm2806 = vcmp.lt.s32.totalorder %v2773, %v2779
      %vm2807 = vcmp.lt.s32.totalorder %v2774, %v2779
      %vm2808 = vcmp.lt.s32.totalorder %v2775, %v2779
      %vm2809 = vcmp.lt.s32.totalorder %v2776, %v2779
      %vm2810 = vcmp.lt.s32.totalorder %v2777, %v2779
      %vm2811 = vcmp.lt.s32.totalorder %v2778, %v2779
      %v2812 = vsel %vm2780, 1, 0
      %v2813 = vsel %vm2781, 1, 0
      %v2814 = vsel %vm2782, 1, 0
      %v2815 = vsel %vm2783, 1, 0
      %v2816 = vsel %vm2784, 1, 0
      %v2817 = vsel %vm2785, 1, 0
      %v2818 = vsel %vm2786, 1, 0
      %v2819 = vsel %vm2787, 1, 0
      %v2820 = vsel %vm2788, 1, 0
      %v2821 = vsel %vm2789, 1, 0
      %v2822 = vsel %vm2790, 1, 0
      %v2823 = vsel %vm2791, 1, 0
      %v2824 = vsel %vm2792, 1, 0
      %v2825 = vsel %vm2793, 1, 0
      %v2826 = vsel %vm2794, 1, 0
      %v2827 = vsel %vm2795, 1, 0
      %v2828 = vsel %vm2796, 1, 0
      %v2829 = vsel %vm2797, 1, 0
      %v2830 = vsel %vm2798, 1, 0
      %v2831 = vsel %vm2799, 1, 0
      %v2832 = vsel %vm2800, 1, 0
      %v2833 = vsel %vm2801, 1, 0
      %v2834 = vsel %vm2802, 1, 0
      %v2835 = vsel %vm2803, 1, 0
      %v2836 = vsel %vm2804, 1, 0
      %v2837 = vsel %vm2805, 1, 0
      %v2838 = vsel %vm2806, 1, 0
      %v2839 = vsel %vm2807, 1, 0
      %v2840 = vsel %vm2808, 1, 0
      %v2841 = vsel %vm2809, 1, 0
      %v2842 = vsel %vm2810, 1, 0
      %v2843 = vsel %vm2811, 1, 0
      %v2844 = vcvt.s32.f32 %v2812
      %v2845 = vcvt.s32.f32 %v2813
      %v2846 = vcvt.s32.f32 %v2814
      %v2847 = vcvt.s32.f32 %v2815
      %v2848 = vcvt.s32.f32 %v2816
      %v2849 = vcvt.s32.f32 %v2817
      %v2850 = vcvt.s32.f32 %v2818
      %v2851 = vcvt.s32.f32 %v2819
      %v2852 = vcvt.s32.f32 %v2820
      %v2853 = vcvt.s32.f32 %v2821
      %v2854 = vcvt.s32.f32 %v2822
      %v2855 = vcvt.s32.f32 %v2823
      %v2856 = vcvt.s32.f32 %v2824
      %v2857 = vcvt.s32.f32 %v2825
      %v2858 = vcvt.s32.f32 %v2826
      %v2859 = vcvt.s32.f32 %v2827
      %v2860 = vcvt.s32.f32 %v2828
      %v2861 = vcvt.s32.f32 %v2829
      %v2862 = vcvt.s32.f32 %v2830
      %v2863 = vcvt.s32.f32 %v2831
      %v2864 = vcvt.s32.f32 %v2832
      %v2865 = vcvt.s32.f32 %v2833
      %v2866 = vcvt.s32.f32 %v2834
      %v2867 = vcvt.s32.f32 %v2835
      %v2868 = vcvt.s32.f32 %v2836
      %v2869 = vcvt.s32.f32 %v2837
      %v2870 = vcvt.s32.f32 %v2838
      %v2871 = vcvt.s32.f32 %v2839
      %v2872 = vcvt.s32.f32 %v2840
      %v2873 = vcvt.s32.f32 %v2841
      %v2874 = vcvt.s32.f32 %v2842
      %v2875 = vcvt.s32.f32 %v2843
      %v2876 = vadd.s32 %v1944, 128
      %v2877 = vadd.s32 %v2746, %v1944
      %v2878 = vadd.s32 %v2746, %v2876
      %vm2879 = vcmp.lt.s32.totalorder %v2877, %v2779
      %vm2880 = vcmp.lt.s32.totalorder %v2878, %v2779
      %v2881 = vsel %vm2879, 1, 0
      %v2882 = vsel %vm2880, 1, 0
      %v2883 = vcvt.s32.f32 %v2881
      %v2884 = vcvt.s32.f32 %v2882
      %v2885 = vmul.f32 %v1911, %v2844
      %v2886 = vmul.f32 %v1912, %v2845
      %v2887 = vmul.f32 %v1913, %v2846
      %v2888 = vmul.f32 %v1914, %v2847
      %v2889 = vmul.f32 %v1915, %v2848
      %v2890 = vmul.f32 %v1916, %v2849
      %v2891 = vmul.f32 %v1917, %v2850
      %v2892 = vmul.f32 %v1918, %v2851
      %v2893 = vmul.f32 %v1919, %v2852
      %v2894 = vmul.f32 %v1920, %v2853
      %v2895 = vmul.f32 %v1921, %v2854
      %v2896 = vmul.f32 %v1922, %v2855
      %v2897 = vmul.f32 %v1923, %v2856
      %v2898 = vmul.f32 %v1924, %v2857
      %v2899 = vmul.f32 %v1925, %v2858
      %v2900 = vmul.f32 %v1926, %v2859
      %v2901 = vmul.f32 %v1927, %v2860
      %v2902 = vmul.f32 %v1928, %v2861
      %v2903 = vmul.f32 %v1929, %v2862
      %v2904 = vmul.f32 %v1930, %v2863
      %v2905 = vmul.f32 %v1931, %v2864
      %v2906 = vmul.f32 %v1932, %v2865
      %v2907 = vmul.f32 %v1933, %v2866
      %v2908 = vmul.f32 %v1934, %v2867
      %v2909 = vmul.f32 %v1935, %v2868
      %v2910 = vmul.f32 %v1936, %v2869
      %v2911 = vmul.f32 %v1937, %v2870
      %v2912 = vmul.f32 %v1938, %v2871
      %v2913 = vmul.f32 %v1939, %v2872
      %v2914 = vmul.f32 %v1940, %v2873
      %v2915 = vmul.f32 %v1941, %v2874
      %v2916 = vmul.f32 %v1942, %v2875
      %vm2917 = vcmask 7168
      %v2918 = vsel %vm2917, %v2885, 0.0
      %v2919 = vsel %vm2917, %v2886, 0.0
      %v2920 = vadd.f32 %v2918, %v2919
      %v2921 = vsel %vm2917, %v2887, 0.0
      %v2922 = vadd.f32 %v2920, %v2921
      %v2923 = vsel %vm2917, %v2888, 0.0
      %v2924 = vadd.f32 %v2922, %v2923
      %v2925 = vsel %vm2917, %v2889, 0.0
      %v2926 = vadd.f32 %v2924, %v2925
      %v2927 = vsel %vm2917, %v2890, 0.0
      %v2928 = vadd.f32 %v2926, %v2927
      %v2929 = vsel %vm2917, %v2891, 0.0
      %v2930 = vadd.f32 %v2928, %v2929
      %v2931 = vsel %vm2917, %v2892, 0.0
      %v2932 = vadd.f32 %v2930, %v2931
      %v2933 = vsel %vm2917, %v2893, 0.0
      %v2934 = vadd.f32 %v2932, %v2933
      %v2935 = vsel %vm2917, %v2894, 0.0
      %v2936 = vadd.f32 %v2934, %v2935
      %v2937 = vsel %vm2917, %v2895, 0.0
      %v2938 = vadd.f32 %v2936, %v2937
      %v2939 = vsel %vm2917, %v2896, 0.0
      %v2940 = vadd.f32 %v2938, %v2939
      %v2941 = vsel %vm2917, %v2897, 0.0
      %v2942 = vadd.f32 %v2940, %v2941
      %v2943 = vsel %vm2917, %v2898, 0.0
      %v2944 = vadd.f32 %v2942, %v2943
      %v2945 = vsel %vm2917, %v2899, 0.0
      %v2946 = vadd.f32 %v2944, %v2945
      %v2947 = vsel %vm2917, %v2900, 0.0
      %v2948 = vadd.f32 %v2946, %v2947
      %v2949 = vsel %vm2917, %v2901, 0.0
      %v2950 = vadd.f32 %v2948, %v2949
      %v2951 = vsel %vm2917, %v2902, 0.0
      %v2952 = vadd.f32 %v2950, %v2951
      %v2953 = vsel %vm2917, %v2903, 0.0
      %v2954 = vadd.f32 %v2952, %v2953
      %v2955 = vsel %vm2917, %v2904, 0.0
      %v2956 = vadd.f32 %v2954, %v2955
      %v2957 = vsel %vm2917, %v2905, 0.0
      %v2958 = vadd.f32 %v2956, %v2957
      %v2959 = vsel %vm2917, %v2906, 0.0
      %v2960 = vadd.f32 %v2958, %v2959
      %v2961 = vsel %vm2917, %v2907, 0.0
      %v2962 = vadd.f32 %v2960, %v2961
      %v2963 = vsel %vm2917, %v2908, 0.0
      %v2964 = vadd.f32 %v2962, %v2963
      %v2965 = vsel %vm2917, %v2909, 0.0
      %v2966 = vadd.f32 %v2964, %v2965
      %v2967 = vsel %vm2917, %v2910, 0.0
      %v2968 = vadd.f32 %v2966, %v2967
      %v2969 = vsel %vm2917, %v2911, 0.0
      %v2970 = vadd.f32 %v2968, %v2969
      %v2971 = vsel %vm2917, %v2912, 0.0
      %v2972 = vadd.f32 %v2970, %v2971
      %v2973 = vsel %vm2917, %v2913, 0.0
      %v2974 = vadd.f32 %v2972, %v2973
      %v2975 = vsel %vm2917, %v2914, 0.0
      %v2976 = vadd.f32 %v2974, %v2975
      %v2977 = vsel %vm2917, %v2915, 0.0
      %v2978 = vadd.f32 %v2976, %v2977
      %v2979 = vsel %vm2917, %v2916, 0.0
      %v2980 = vadd.f32 %v2978, %v2979
      %2981 = vadd.xlane.f32.xlu0 %v2980
      %v2982 = vpop.xlane.xlu0 %2981
      %v2983 = vrot.slane %v2982, 4
      %v2984 = vadd.f32 %v2982, %v2983
      %v2985 = vrot.slane %v2984, 2
      %v2986 = vadd.f32 %v2984, %v2985
      %v2987 = vrot.slane %v2986, 1
      %v2988 = vadd.f32 %v2986, %v2987
      %s2989 = vtos %v2988
      %v2990 = vmul.f32 %v2569, %v2844
      %v2991 = vmul.f32 %v2570, %v2845
      %v2992 = vmul.f32 %v2571, %v2846
      %v2993 = vmul.f32 %v2572, %v2847
      %v2994 = vmul.f32 %v2573, %v2848
      %v2995 = vmul.f32 %v2574, %v2849
      %v2996 = vmul.f32 %v2575, %v2850
      %v2997 = vmul.f32 %v2576, %v2851
      %v2998 = vmul.f32 %v2577, %v2852
      %v2999 = vmul.f32 %v2578, %v2853
      %v3000 = vmul.f32 %v2579, %v2854
      %v3001 = vmul.f32 %v2580, %v2855
      %v3002 = vmul.f32 %v2581, %v2856
      %v3003 = vmul.f32 %v2582, %v2857
      %v3004 = vmul.f32 %v2583, %v2858
      %v3005 = vmul.f32 %v2584, %v2859
      %v3006 = vmul.f32 %v2585, %v2860
      %v3007 = vmul.f32 %v2586, %v2861
      %v3008 = vmul.f32 %v2587, %v2862
      %v3009 = vmul.f32 %v2588, %v2863
      %v3010 = vmul.f32 %v2589, %v2864
      %v3011 = vmul.f32 %v2590, %v2865
      %v3012 = vmul.f32 %v2591, %v2866
      %v3013 = vmul.f32 %v2592, %v2867
      %v3014 = vmul.f32 %v2593, %v2868
      %v3015 = vmul.f32 %v2594, %v2869
      %v3016 = vmul.f32 %v2595, %v2870
      %v3017 = vmul.f32 %v2596, %v2871
      %v3018 = vmul.f32 %v2597, %v2872
      %v3019 = vmul.f32 %v2598, %v2873
      %v3020 = vmul.f32 %v2599, %v2874
      %v3021 = vmul.f32 %v2600, %v2875
      %v3022 = vsel %vm2917, %v2990, 0.0
      %v3023 = vsel %vm2917, %v2991, 0.0
      %v3024 = vadd.f32 %v3022, %v3023
      %v3025 = vsel %vm2917, %v2992, 0.0
      %v3026 = vadd.f32 %v3024, %v3025
      %v3027 = vsel %vm2917, %v2993, 0.0
      %v3028 = vadd.f32 %v3026, %v3027
      %v3029 = vsel %vm2917, %v2994, 0.0
      %v3030 = vadd.f32 %v3028, %v3029
      %v3031 = vsel %vm2917, %v2995, 0.0
      %v3032 = vadd.f32 %v3030, %v3031
      %v3033 = vsel %vm2917, %v2996, 0.0
      %v3034 = vadd.f32 %v3032, %v3033
      %v3035 = vsel %vm2917, %v2997, 0.0
      %v3036 = vadd.f32 %v3034, %v3035
      %v3037 = vsel %vm2917, %v2998, 0.0
      %v3038 = vadd.f32 %v3036, %v3037
      %v3039 = vsel %vm2917, %v2999, 0.0
      %v3040 = vadd.f32 %v3038, %v3039
      %v3041 = vsel %vm2917, %v3000, 0.0
      %v3042 = vadd.f32 %v3040, %v3041
      %v3043 = vsel %vm2917, %v3001, 0.0
      %v3044 = vadd.f32 %v3042, %v3043
      %v3045 = vsel %vm2917, %v3002, 0.0
      %v3046 = vadd.f32 %v3044, %v3045
      %v3047 = vsel %vm2917, %v3003, 0.0
      %v3048 = vadd.f32 %v3046, %v3047
      %v3049 = vsel %vm2917, %v3004, 0.0
      %v3050 = vadd.f32 %v3048, %v3049
      %v3051 = vsel %vm2917, %v3005, 0.0
      %v3052 = vadd.f32 %v3050, %v3051
      %v3053 = vsel %vm2917, %v3006, 0.0
      %v3054 = vadd.f32 %v3052, %v3053
      %v3055 = vsel %vm2917, %v3007, 0.0
      %v3056 = vadd.f32 %v3054, %v3055
      %v3057 = vsel %vm2917, %v3008, 0.0
      %v3058 = vadd.f32 %v3056, %v3057
      %v3059 = vsel %vm2917, %v3009, 0.0
      %v3060 = vadd.f32 %v3058, %v3059
      %v3061 = vsel %vm2917, %v3010, 0.0
      %v3062 = vadd.f32 %v3060, %v3061
      %v3063 = vsel %vm2917, %v3011, 0.0
      %v3064 = vadd.f32 %v3062, %v3063
      %v3065 = vsel %vm2917, %v3012, 0.0
      %v3066 = vadd.f32 %v3064, %v3065
      %v3067 = vsel %vm2917, %v3013, 0.0
      %v3068 = vadd.f32 %v3066, %v3067
      %v3069 = vsel %vm2917, %v3014, 0.0
      %v3070 = vadd.f32 %v3068, %v3069
      %v3071 = vsel %vm2917, %v3015, 0.0
      %v3072 = vadd.f32 %v3070, %v3071
      %v3073 = vsel %vm2917, %v3016, 0.0
      %v3074 = vadd.f32 %v3072, %v3073
      %v3075 = vsel %vm2917, %v3017, 0.0
      %v3076 = vadd.f32 %v3074, %v3075
      %v3077 = vsel %vm2917, %v3018, 0.0
      %v3078 = vadd.f32 %v3076, %v3077
      %v3079 = vsel %vm2917, %v3019, 0.0
      %v3080 = vadd.f32 %v3078, %v3079
      %v3081 = vsel %vm2917, %v3020, 0.0
      %v3082 = vadd.f32 %v3080, %v3081
      %v3083 = vsel %vm2917, %v3021, 0.0
      %v3084 = vadd.f32 %v3082, %v3083
      %3085 = vadd.xlane.f32.xlu0 %v3084
      %v3086 = vpop.xlane.xlu0 %3085
      %v3087 = vrot.slane %v3086, 4
      %v3088 = vadd.f32 %v3086, %v3087
      %v3089 = vrot.slane %v3088, 2
      %v3090 = vadd.f32 %v3088, %v3089
      %v3091 = vrot.slane %v3090, 1
      %v3092 = vadd.f32 %v3090, %v3091
      %s3093 = vtos %v3092
      %v3094 = vmul.f32 %v2667, %v2883
      %v3095 = vmul.f32 %v2668, %v2884
      %vm3096 = vcmask 1043456
      %v3097 = vsel %vm3096, %v3094, 0.0
      %v3098 = vsel %vm3096, %v3095, 0.0
      %v3099 = vadd.f32 %v3097, %v3098
      %3100 = vadd.xlane.f32.xlu0 %v3099
      %v3101 = vpop.xlane.xlu0 %3100
      %v3102 = vrot.slane %v3101, 4
      %v3103 = vadd.f32 %v3101, %v3102
      %v3104 = vrot.slane %v3103, 2
      %v3105 = vadd.f32 %v3103, %v3104
      %v3106 = vrot.slane %v3105, 1
      %v3107 = vadd.f32 %v3105, %v3106
      %s3108 = vtos %v3107
      %v3109 = vsel %vm2917, %v2844, 0.0
      %v3110 = vsel %vm2917, %v2845, 0.0
      %v3111 = vadd.f32 %v3109, %v3110
      %v3112 = vsel %vm2917, %v2846, 0.0
      %v3113 = vadd.f32 %v3111, %v3112
      %v3114 = vsel %vm2917, %v2847, 0.0
      %v3115 = vadd.f32 %v3113, %v3114
      %v3116 = vsel %vm2917, %v2848, 0.0
      %v3117 = vadd.f32 %v3115, %v3116
      %v3118 = vsel %vm2917, %v2849, 0.0
      %v3119 = vadd.f32 %v3117, %v3118
      %v3120 = vsel %vm2917, %v2850, 0.0
      %v3121 = vadd.f32 %v3119, %v3120
      %v3122 = vsel %vm2917, %v2851, 0.0
      %v3123 = vadd.f32 %v3121, %v3122
      %v3124 = vsel %vm2917, %v2852, 0.0
      %v3125 = vadd.f32 %v3123, %v3124
      %v3126 = vsel %vm2917, %v2853, 0.0
      %v3127 = vadd.f32 %v3125, %v3126
      %v3128 = vsel %vm2917, %v2854, 0.0
      %v3129 = vadd.f32 %v3127, %v3128
      %v3130 = vsel %vm2917, %v2855, 0.0
      %v3131 = vadd.f32 %v3129, %v3130
      %v3132 = vsel %vm2917, %v2856, 0.0
      %v3133 = vadd.f32 %v3131, %v3132
      %v3134 = vsel %vm2917, %v2857, 0.0
      %v3135 = vadd.f32 %v3133, %v3134
      %v3136 = vsel %vm2917, %v2858, 0.0
      %v3137 = vadd.f32 %v3135, %v3136
      %v3138 = vsel %vm2917, %v2859, 0.0
      %v3139 = vadd.f32 %v3137, %v3138
      %v3140 = vsel %vm2917, %v2860, 0.0
      %v3141 = vadd.f32 %v3139, %v3140
      %v3142 = vsel %vm2917, %v2861, 0.0
      %v3143 = vadd.f32 %v3141, %v3142
      %v3144 = vsel %vm2917, %v2862, 0.0
      %v3145 = vadd.f32 %v3143, %v3144
      %v3146 = vsel %vm2917, %v2863, 0.0
      %v3147 = vadd.f32 %v3145, %v3146
      %v3148 = vsel %vm2917, %v2864, 0.0
      %v3149 = vadd.f32 %v3147, %v3148
      %v3150 = vsel %vm2917, %v2865, 0.0
      %v3151 = vadd.f32 %v3149, %v3150
      %v3152 = vsel %vm2917, %v2866, 0.0
      %v3153 = vadd.f32 %v3151, %v3152
      %v3154 = vsel %vm2917, %v2867, 0.0
      %v3155 = vadd.f32 %v3153, %v3154
      %v3156 = vsel %vm2917, %v2868, 0.0
      %v3157 = vadd.f32 %v3155, %v3156
      %v3158 = vsel %vm2917, %v2869, 0.0
      %v3159 = vadd.f32 %v3157, %v3158
      %v3160 = vsel %vm2917, %v2870, 0.0
      %v3161 = vadd.f32 %v3159, %v3160
      %v3162 = vsel %vm2917, %v2871, 0.0
      %v3163 = vadd.f32 %v3161, %v3162
      %v3164 = vsel %vm2917, %v2872, 0.0
      %v3165 = vadd.f32 %v3163, %v3164
      %v3166 = vsel %vm2917, %v2873, 0.0
      %v3167 = vadd.f32 %v3165, %v3166
      %v3168 = vsel %vm2917, %v2874, 0.0
      %v3169 = vadd.f32 %v3167, %v3168
      %v3170 = vsel %vm2917, %v2875, 0.0
      %v3171 = vadd.f32 %v3169, %v3170
      %3172 = vadd.xlane.f32.xlu0 %v3171
      %v3173 = vpop.xlane.xlu0 %3172
      %v3174 = vrot.slane %v3173, 4
      %v3175 = vadd.f32 %v3173, %v3174
      %v3176 = vrot.slane %v3175, 2
      %v3177 = vadd.f32 %v3175, %v3176
      %v3178 = vrot.slane %v3177, 1
      %v3179 = vadd.f32 %v3177, %v3178
      %s3180 = vtos %v3179
      %v3183 = vcombine.low %v2658, %v2660
      %3185 = vst [vmem:[%s506] sm:$0xff] %v3183
      %v3186 = vcvt.f32.s32.to.zero.pseudo %v2706
      %v3187 = vcvt.f32.s32.to.zero.pseudo %v2708
      %v3188 = vcombine.low %v3186, %v3187
      %v3190 = vunpack.c.l.s4 1966171168
      %v3191 = vunpack.c.0.s8 %v3190
      %v3192 = vlaneseq
      %v3193 = vshrl.u32 %v3192, 7
      %v3194 = vsub.s32 %v3191, %v3193
      %v3195 = vrot.slane %v3188, %v3194
      %v3197 = vunpack.c.l.s4 1966171168
      %v3198 = vunpack.c.0.s8 %v3197
      %v3199 = vlaneseq
      %v3200 = vshrl.u32 %v3199, 7
      %v3201 = vsub.s32 %v3198, %v3200
      %v3202 = vrot.slane %v3195, %v3201
      %v3203 = vlaneseq
      %vm3204 = vcmp.ge.s32.totalorder %v3203, 0
      %vm3205 = vcmp.lt.s32.totalorder %v3203, 256
      %vm3206 = vmand %vm3204, %vm3205
      %3207 = vst.msk [vmem:[%s511] sm:$0x3] %vm3206, %v3202
      %vm3208 = vcmp.eq.s32.totalorder %v1944, 0
      %v3209 = vstv %s2989
      %v3210 = vsel %vm3208, %v3209, 0.0
      %vm3211 = vcmp.eq.s32.totalorder %v1944, 1
      %v3212 = vstv %s3093
      %v3213 = vsel %vm3211, %v3212, 0.0
      %v3214 = vadd.f32 %v3210, %v3213
      %vm3215 = vcmp.eq.s32.totalorder %v1944, 2
      %v3216 = vstv %s3108
      %v3217 = vsel %vm3215, %v3216, 0.0
      %v3218 = vadd.f32 %v3214, %v3217
      %vm3219 = vcmp.eq.s32.totalorder %v1944, 3
      %v3220 = vstv %s3180
      %v3221 = vsel %vm3219, %v3220, 0.0
      %v3222 = vadd.f32 %v3218, %v3221
      %3223 = vst [vmem:[%s515] sm:$0xff] %v3222
      %s3224 = smul.u32 2, %s28
      %p3225 = scmp.lt.s32.totalorder %s3224, 3
      %s3226 = scalar_select %p3225, %s3224, 3
      %s3227 = smul.addr %s3226, 4
      %s3228 = scalar_lea.vmem %s12, %s3227
      %p3229 = scmp.lt.s32.totalorder %s28, 1
      %s3230 = scalar_select %p3229, %s28, 1
      %s3231 = smul.addr %s3230, 2
      %s3232 = scalar_lea.vmem %s13, %s3231
      %p3233 = scmp.lt.s32.totalorder %s28, 1
      %s3234 = scalar_select %p3233, %s28, 1
      %s3235 = smul.addr %s3234, 8
      %s3236 = scalar_lea.vmem %s14, %s3235
      // Predicated region
      $region69: #{sqvae_forward.1} parent=67 // pred_check
        %p3237 = pneg %p308
      $region70: #{sqvae_forward.1} parent=67 // pred_check_branch
        %3239 = sbr.rel (%p3237) target = $region72
      $region71: #{sqvae_forward.1} parent=67 // pred_region
        %s3240 = smul.u32 2, %s28
      $region72: #{sqvae_forward.1} parent=67 // pred_fallthru
        _
      // Predicated region
      $region73: #{sqvae_forward.1} parent=67 // pred_check
        %p3241 = pneg %p334
      $region74: #{sqvae_forward.1} parent=67 // pred_check_branch
        %3243 = sbr.rel (%p3241) target = $region76
      $region75: #{sqvae_forward.1} parent=67 // pred_region
        _
      $region76: #{sqvae_forward.1} parent=67 // pred_fallthru
        _
      // Predicated region
      $region77: #{sqvae_forward.1} parent=67 // pred_check
        %p3244 = pneg %p360
      $region78: #{sqvae_forward.1} parent=67 // pred_check_branch
        %3246 = sbr.rel (%p3244) target = $region80
      $region79: #{sqvae_forward.1} parent=67 // pred_region
        _
      $region80: #{sqvae_forward.1} parent=67 // pred_fallthru
        _
    $region68: #{sqvae_forward.1} parent=5 // pred_fallthru
      _
    %p3247 = scmp.le.s32.totalorder 2, %s23
    // Predicated region
    $region81: #{sqvae_forward.1} parent=5 // pred_check
      %p3248 = pneg %p3247
    $region82: #{sqvae_forward.1} parent=5 // pred_check_branch
      %3250 = sbr.rel (%p3248) target = $region84
    $region83: #{sqvae_forward.1} parent=5 // pred_region
      %s3251 = ssub.s32 %s23, 2
      // Predicated region
      $region85: #{sqvae_forward.1} parent=83 // pred_check
        %p3252 = pneg %p314
      $region86: #{sqvae_forward.1} parent=83 // pred_check_branch
        %3254 = sbr.rel (%p3252) target = $region88
      $region87: #{sqvae_forward.1} parent=83 // pred_region
        %s3255 = smul.u32 2, %s29
        %p3256 = scmp.lt.s32.totalorder %s3255, 3
        %s3257 = scalar_select %p3256, %s3255, 3
        %s3258 = smul.addr %s3257, 4
        %s3259 = scalar_lea.vmem %s12, %s3258
      $region88: #{sqvae_forward.1} parent=83 // pred_fallthru
        _
      // Predicated region
      $region89: #{sqvae_forward.1} parent=83 // pred_check
        %p3260 = pneg %p340
      $region90: #{sqvae_forward.1} parent=83 // pred_check_branch
        %3262 = sbr.rel (%p3260) target = $region92
      $region91: #{sqvae_forward.1} parent=83 // pred_region
        %p3263 = scmp.lt.s32.totalorder %s29, 1
        %s3264 = scalar_select %p3263, %s29, 1
        %s3265 = smul.addr %s3264, 2
        %s3266 = scalar_lea.vmem %s13, %s3265
      $region92: #{sqvae_forward.1} parent=83 // pred_fallthru
        _
      // Predicated region
      $region93: #{sqvae_forward.1} parent=83 // pred_check
        %p3267 = pneg %p366
      $region94: #{sqvae_forward.1} parent=83 // pred_check_branch
        %3269 = sbr.rel (%p3267) target = $region96
      $region95: #{sqvae_forward.1} parent=83 // pred_region
        %p3270 = scmp.lt.s32.totalorder %s29, 1
        %s3271 = scalar_select %p3270, %s29, 1
        %s3272 = smul.addr %s3271, 8
        %s3273 = scalar_lea.vmem %s14, %s3272
      $region96: #{sqvae_forward.1} parent=83 // pred_fallthru
        _
    $region84: #{sqvae_forward.1} parent=5 // pred_fallthru
      _
  $region6: #{sqvae_forward.1} parent=0 // loop_footer
    %s27 = sadd.s32 1, %s23
  $region7: #{sqvae_forward.1} parent=0 // loop_footer_branch
    %22 = sbr.rel target = $region3
  $region8: #{sqvae_forward.1} parent=0 // loop_exit
    _

</llo_original>
